<compile_context>
chip_gen: v7x
topology: tpu7x:2x2x1
jax: 0.10.0
libtpu: 0.0.40
codegen_flags: <defaults>
</compile_context>

<pallas_src>
import functools

import numpy as np
import jax
import jax.numpy as jnp
from jax import lax
from jax.experimental import pallas as pl
from jax.experimental.pallas import tpu as pltpu


# ----------------------------------------------------------------------------
# Fused Encoder kernel: all DyConv stages + MaxPools for ONE sample per grid step
# ----------------------------------------------------------------------------
def _encoder_kernel(x_ref, gmat_ref, *refs, n_stages, H0, W0, C_out, K,
                    num_groups, inv_temp, eps, neg_slope):
    HW0 = H0 * W0
    stage_in = [refs[s * 7:(s + 1) * 7] for s in range(n_stages)]
    out_refs = refs[n_stages * 7:]

    gmat = gmat_ref[...]                                   # (C_out, C_out) same-group indicator
    gsz = C_out // num_groups

    act = x_ref[0].astype(jnp.float32)                     # (C_in0, HW0), lanes = i*W0 + j

    for s in range(n_stages):
        masks_ref, wexp_ref, w1t_ref, w2_ref, b2_ref, gamma_ref, beta_ref = stage_in[s]
        t = 1 << s                                         # lane stride of valid pixels
        Hs, Ws = H0 // t, W0 // t
        HWs = Hs * Ws
        inv_hw = 1.0 / float(HWs)
        inv_n = 1.0 / float(gsz * HWs)

        masks = masks_ref[...]                             # (10, HW0): row0 valid, rows 1..9 taps
        valid = masks[0:1, :]                              # (1, HW0)
        x = act                                            # (C_in, HW0), valid lanes at stride t

        # ---- attention: GAP -> 1x1 -> ReLU -> 1x1(+bias) -> softmax(logits/T)  (VPU)
        pooled = jnp.sum(x * valid, axis=1, keepdims=True) * inv_hw        # (C_in, 1)
        h = jnp.sum(w1t_ref[...] * pooled, axis=0, keepdims=True)          # (1, hidden)
        h = jnp.maximum(h, 0.0)
        logits = jnp.sum(w2_ref[...] * h, axis=1, keepdims=True) + b2_ref[...]   # (K, 1)
        logits = logits * inv_temp
        m = jnp.max(logits, axis=0, keepdims=True)
        e = jnp.exp(logits - m)
        attn = e / jnp.sum(e, axis=0, keepdims=True)                        # (K, 1)

        # ---- nine shifted 3x3 taps (implicit zero padding via masks, XLU rolls)
        slabs = []
        for kh in range(3):
            for kw in range(3):
                d = ((kh - 1) * W0 + (kw - 1)) * t          # frame-lane shift of this tap
                shifted = x if d == 0 else pltpu.roll(x, (-d) % HW0, axis=1)
                r = 1 + kh * 3 + kw
                slabs.append(shifted * masks[r:r + 1, :])
        patches = jnp.concatenate(slabs, axis=0).astype(jnp.bfloat16)       # (9*C_in, HW0)

        # ---- both expert convs in ONE bf16 MXU matmul, f32 accumulate
        acc = jnp.dot(wexp_ref[...], patches,
                      preferred_element_type=jnp.float32)                   # (K*C_out, HW0)

        # ---- per-sample expert mixing (VPU); conv is linear in the filter so
        #      mixing outputs == PyTorch's mixing of filters (conv has no bias).
        y = acc[0:C_out, :] * attn[0:1, 0:1]
        for k in range(1, K):
            y = y + acc[k * C_out:(k + 1) * C_out, :] * attn[k:k + 1, 0:1]

        # ---- GroupNorm(num_groups) + LeakyReLU(0.01), stats over valid lanes only
        yv = y * valid
        csum = jnp.sum(yv, axis=1, keepdims=True)                           # (C_out, 1)
        csq = jnp.sum(yv * y, axis=1, keepdims=True)                        # (C_out, 1)
        stats = jnp.concatenate([csum, csq], axis=1)                        # (C_out, 2)
        gstats = jnp.dot(gmat, stats, preferred_element_type=jnp.float32)   # group sums (MXU)
        mean = gstats[:, 0:1] * inv_n
        var = gstats[:, 1:2] * inv_n - mean * mean                          # biased, as in GroupNorm
        inv_std = lax.rsqrt(var + eps)
        yn = (y - mean) * inv_std * gamma_ref[...] + beta_ref[...]
        yo = jnp.where(yn >= 0.0, yn, neg_slope * yn)

        out_refs[s][0] = yo.astype(out_refs[s].dtype)       # full-frame, lane-dense store

        # ---- fused MaxPool2d(2,2): roll+max, valid pixels stay on a 2t-strided grid
        if s < n_stages - 1:
            hmax = jnp.maximum(yo, pltpu.roll(yo, (-t) % HW0, axis=1))
            vmax = jnp.maximum(hmax, pltpu.roll(hmax, (-(t * W0)) % HW0, axis=1))
            act = vmax


# ----------------------------------------------------------------------------
# Host-side per-stage constants (valid-lane mask + 9 tap boundary masks)
# ----------------------------------------------------------------------------
def _stage_masks(H0, W0, s):
    t = 1 << s
    lane = np.arange(H0 * W0)
    row, col = lane // W0, lane % W0
    rows = [((row % t == 0) & (col % t == 0))]
    for kh in range(3):
        for kw in range(3):
            dh, dw = kh - 1, kw - 1
            rows.append((row + dh * t >= 0) & (row + dh * t <= H0 - 1) &
                        (col + dw * t >= 0) & (col + dw * t <= W0 - 1))
    return jnp.asarray(np.stack(rows).astype(np.float32))   # (10, H0*W0)


# ----------------------------------------------------------------------------
# Parameter init (deterministic, matches module __init__ shapes)
# ----------------------------------------------------------------------------
def init_dyconv_params(key, in_c, out_c, num_experts=2, ks=3):
    hidden = num_experts if in_c == 3 else int(in_c * 0.25) + 1
    k1, k2, k3, k4 = jax.random.split(key, 4)
    w1 = jax.random.normal(k1, (hidden, in_c), jnp.float32) * 0.5           # 1x1 conv, no bias
    w2 = jax.random.normal(k2, (num_experts, hidden), jnp.float32) * 0.5    # 1x1 conv
    b2 = jax.random.normal(k3, (num_experts, 1), jnp.float32) * 0.1         # its bias
    w = jax.random.normal(k4, (num_experts, out_c, in_c, ks, ks), jnp.float32)
    # (K, C_out, C_in, kh, kw) -> (K*C_out, (kh*kw)*C_in), matching in-kernel tap order
    wexp = jnp.transpose(w, (0, 1, 3, 4, 2)).reshape(num_experts * out_c, ks * ks * in_c)
    return dict(w1t=jnp.transpose(w1),                      # (C_in, hidden)
                w2=w2, b2=b2,
                wexp=wexp.astype(jnp.bfloat16),              # pre-cast for the MXU
                gamma=jnp.ones((out_c, 1), jnp.float32),     # GroupNorm affine defaults
                beta=jnp.zeros((out_c, 1), jnp.float32))


def init_encoder_params(key, in_channels, out_channels, size, num_experts=2, ks=3):
    params = []
    c_in = in_channels
    for _ in range(size + 1):   # `size` (DyConv, MaxPool) pairs + final DyConv
        key, sub = jax.random.split(key)
        params.append(init_dyconv_params(sub, c_in, out_channels, num_experts, ks))
        c_in = out_channels
    return params


# ----------------------------------------------------------------------------
# Encoder forward: ONE fused pallas_call for all stages
# ----------------------------------------------------------------------------
def encoder_forward(x_nchw, params, *, padding=1, kernel_size=3, num_experts=2,
                    num_groups=8, attn_temp=30.0, eps=1e-5, neg_slope=0.01):
    assert kernel_size == 3 and 2 * padding == kernel_size - 1, \
        "only the 'same'-size 3x3 conv used by this Encoder is implemented"
    B, C_in0, H0, W0 = x_nchw.shape
    n_stages = len(params)
    size = n_stages - 1
    assert H0 % (1 << size) == 0 and W0 % (1 << size) == 0
    HW0 = H0 * W0
    assert HW0 % 128 == 0, "per-sample H*W must be lane-aligned (see TODO)"
    C_out = params[0]["gamma"].shape[0]
    assert C_out % num_groups == 0
    K = num_experts
    gsz = C_out // num_groups

    # same-group indicator matrix (constant, shared by all stages)
    gidx = np.arange(C_out) // gsz
    gmat = jnp.asarray((gidx[:, None] == gidx[None, :]).astype(np.float32))

    x_flat = x_nchw.reshape(B, C_in0, HW0)                  # layout glue only

    inputs = [x_flat, gmat]
    in_specs = [pl.BlockSpec((1, C_in0, HW0), lambda i: (i, 0, 0)),
                pl.BlockSpec((C_out, C_out), lambda i: (0, 0))]
    for s, p in enumerate(params):
        stage_inputs = [_stage_masks(H0, W0, s),
                        p["wexp"], p["w1t"], p["w2"], p["b2"], p["gamma"], p["beta"]]
        inputs += stage_inputs
        in_specs += [pl.BlockSpec(a.shape, lambda i: (0, 0)) for a in stage_inputs]

    out_shape = [jax.ShapeDtypeStruct((B, C_out, HW0), jnp.float32) for _ in range(n_stages)]
    out_specs = [pl.BlockSpec((1, C_out, HW0), lambda i: (i, 0, 0)) for _ in range(n_stages)]

    kern = functools.partial(
        _encoder_kernel, n_stages=n_stages, H0=H0, W0=W0, C_out=C_out, K=K,
        num_groups=num_groups, inv_temp=1.0 / float(attn_temp), eps=eps,
        neg_slope=neg_slope)

    outs = pl.pallas_call(
        kern,
        grid=(B,),                                          # one sample per step -> megacore sharding
        in_specs=in_specs,
        out_specs=out_specs,
        out_shape=out_shape,
        compiler_params=pltpu.CompilerParams(dimension_semantics=("parallel",)),
    )(*inputs)

    # layout glue: stage-s valid pixels live on a 2^s-strided lane grid of the
    # full frame; extract the dense NCHW route tensors with strided slices.
    routes = []
    for s, o in enumerate(outs):
        t = 1 << s
        routes.append(o.reshape(B, C_out, H0, W0)[:, :, ::t, ::t])
    return routes[-1], routes


# ----------------------------------------------------------------------------
if __name__ == "__main__":
    key = jax.random.PRNGKey(0)
    kx, kp = jax.random.split(key)

    # small shapes consistent with the module: NCHW input, out_channels % 8 == 0
    B, C_in, H, W = 2, 4, 16, 16
    C_out = 16
    padding = 1
    size = 2   # 2 (DyConv + MaxPool) stages + final DyConv (keeps spatial >= 4)

    x = jax.random.normal(kx, (B, C_in, H, W), jnp.float32)
    params = init_encoder_params(kp, C_in, C_out, size)

    out, routes = encoder_forward(x, params, padding=padding)
    out = jax.block_until_ready(out)
    for r in routes:
        jax.block_until_ready(r)

    assert out.shape == (B, C_out, 4, 4)
    assert routes[0].shape == (B, C_out, 16, 16)
    assert routes[1].shape == (B, C_out, 8, 8)
    assert routes[2].shape == (B, C_out, 4, 4)
    print("KERNEL_OK")
</pallas_src>

<mosaic_0001>
module attributes {stable_mosaic.version = 11 : i64} {
  func.func @_encoder_kernel(%arg0: i32, %arg1: memref<1x4x256xf32, #tpu.memory_space<vmem>>, %arg2: memref<16x16xf32, #tpu.memory_space<vmem>>, %arg3: memref<10x256xf32, #tpu.memory_space<vmem>>, %arg4: memref<32x36xbf16, #tpu.memory_space<vmem>>, %arg5: memref<4x2xf32, #tpu.memory_space<vmem>>, %arg6: memref<2x2xf32, #tpu.memory_space<vmem>>, %arg7: memref<2x1xf32, #tpu.memory_space<vmem>>, %arg8: memref<16x1xf32, #tpu.memory_space<vmem>>, %arg9: memref<16x1xf32, #tpu.memory_space<vmem>>, %arg10: memref<10x256xf32, #tpu.memory_space<vmem>>, %arg11: memref<32x144xbf16, #tpu.memory_space<vmem>>, %arg12: memref<16x5xf32, #tpu.memory_space<vmem>>, %arg13: memref<2x5xf32, #tpu.memory_space<vmem>>, %arg14: memref<2x1xf32, #tpu.memory_space<vmem>>, %arg15: memref<16x1xf32, #tpu.memory_space<vmem>>, %arg16: memref<16x1xf32, #tpu.memory_space<vmem>>, %arg17: memref<10x256xf32, #tpu.memory_space<vmem>>, %arg18: memref<32x144xbf16, #tpu.memory_space<vmem>>, %arg19: memref<16x5xf32, #tpu.memory_space<vmem>>, %arg20: memref<2x5xf32, #tpu.memory_space<vmem>>, %arg21: memref<2x1xf32, #tpu.memory_space<vmem>>, %arg22: memref<16x1xf32, #tpu.memory_space<vmem>>, %arg23: memref<16x1xf32, #tpu.memory_space<vmem>>, %arg24: memref<1x16x256xf32, #tpu.memory_space<vmem>>, %arg25: memref<1x16x256xf32, #tpu.memory_space<vmem>>, %arg26: memref<1x16x256xf32, #tpu.memory_space<vmem>>) attributes {dimension_semantics = [#tpu.dimension_semantics<parallel>], iteration_bounds = array<i64: 2>, scalar_prefetch = 0 : i64, scratch_operands = 0 : i64, tpu.core_type = #tpu.core_type<tc>, window_params = [{transform_indices = @transform_0, window_bounds = array<i64: 1, 4, 256>}, {pipeline_mode = #tpu.pipeline_mode<synchronous>, transform_indices = @transform_1, window_bounds = array<i64: 16, 16>}, {pipeline_mode = #tpu.pipeline_mode<synchronous>, transform_indices = @transform_2, window_bounds = array<i64: 10, 256>}, {pipeline_mode = #tpu.pipeline_mode<synchronous>, transform_indices = @transform_3, window_bounds = array<i64: 32, 36>}, {pipeline_mode = #tpu.pipeline_mode<synchronous>, transform_indices = @transform_4, window_bounds = array<i64: 4, 2>}, {pipeline_mode = #tpu.pipeline_mode<synchronous>, transform_indices = @transform_5, window_bounds = array<i64: 2, 2>}, {pipeline_mode = #tpu.pipeline_mode<synchronous>, transform_indices = @transform_6, window_bounds = array<i64: 2, 1>}, {pipeline_mode = #tpu.pipeline_mode<synchronous>, transform_indices = @transform_7, window_bounds = array<i64: 16, 1>}, {pipeline_mode = #tpu.pipeline_mode<synchronous>, transform_indices = @transform_8, window_bounds = array<i64: 16, 1>}, {pipeline_mode = #tpu.pipeline_mode<synchronous>, transform_indices = @transform_9, window_bounds = array<i64: 10, 256>}, {pipeline_mode = #tpu.pipeline_mode<synchronous>, transform_indices = @transform_10, window_bounds = array<i64: 32, 144>}, {pipeline_mode = #tpu.pipeline_mode<synchronous>, transform_indices = @transform_11, window_bounds = array<i64: 16, 5>}, {pipeline_mode = #tpu.pipeline_mode<synchronous>, transform_indices = @transform_12, window_bounds = array<i64: 2, 5>}, {pipeline_mode = #tpu.pipeline_mode<synchronous>, transform_indices = @transform_13, window_bounds = array<i64: 2, 1>}, {pipeline_mode = #tpu.pipeline_mode<synchronous>, transform_indices = @transform_14, window_bounds = array<i64: 16, 1>}, {pipeline_mode = #tpu.pipeline_mode<synchronous>, transform_indices = @transform_15, window_bounds = array<i64: 16, 1>}, {pipeline_mode = #tpu.pipeline_mode<synchronous>, transform_indices = @transform_16, window_bounds = array<i64: 10, 256>}, {pipeline_mode = #tpu.pipeline_mode<synchronous>, transform_indices = @transform_17, window_bounds = array<i64: 32, 144>}, {pipeline_mode = #tpu.pipeline_mode<synchronous>, transform_indices = @transform_18, window_bounds = array<i64: 16, 5>}, {pipeline_mode = #tpu.pipeline_mode<synchronous>, transform_indices = @transform_19, window_bounds = array<i64: 2, 5>}, {pipeline_mode = #tpu.pipeline_mode<synchronous>, transform_indices = @transform_20, window_bounds = array<i64: 2, 1>}, {pipeline_mode = #tpu.pipeline_mode<synchronous>, transform_indices = @transform_21, window_bounds = array<i64: 16, 1>}, {pipeline_mode = #tpu.pipeline_mode<synchronous>, transform_indices = @transform_22, window_bounds = array<i64: 16, 1>}, {transform_indices = @transform_23, window_bounds = array<i64: 1, 16, 256>}, {transform_indices = @transform_24, window_bounds = array<i64: 1, 16, 256>}, {transform_indices = @transform_25, window_bounds = array<i64: 1, 16, 256>}]} {
    %c0 = arith.constant 0 : index
    %c0_0 = arith.constant 0 : index
    %0 = vector.load %arg2[%c0, %c0_0] : memref<16x16xf32, #tpu.memory_space<vmem>>, vector<16x16xf32>
    %c0_1 = arith.constant 0 : index
    %c0_2 = arith.constant 0 : index
    %c0_3 = arith.constant 0 : index
    %1 = vector.load %arg1[%c0_1, %c0_2, %c0_3] : memref<1x4x256xf32, #tpu.memory_space<vmem>>, vector<1x4x256xf32>
    %2 = vector.shape_cast %1 : vector<1x4x256xf32> to vector<4x256xf32>
    %c0_4 = arith.constant 0 : index
    %c0_5 = arith.constant 0 : index
    %3 = vector.load %arg3[%c0_4, %c0_5] : memref<10x256xf32, #tpu.memory_space<vmem>>, vector<10x256xf32>
    %4 = vector.extract_strided_slice %3 {offsets = [0, 0], sizes = [1, 256], strides = [1, 1]} : vector<10x256xf32> to vector<1x256xf32>
    %5 = vector.broadcast %4 : vector<1x256xf32> to vector<4x256xf32>
    %6 = arith.mulf %2, %5 : vector<4x256xf32>
    %cst = arith.constant dense<0.000000e+00> : vector<4xf32>
    %7 = vector.multi_reduction <add>, %6, %cst [1] : vector<4x256xf32> to vector<4xf32>
    %8 = vector.shape_cast %7 : vector<4xf32> to vector<4x1xf32>
    %cst_6 = arith.constant 3.906250e-03 : f32
    %9 = vector.broadcast %cst_6 : f32 to vector<4x1xf32>
    %10 = arith.mulf %8, %9 : vector<4x1xf32>
    %c0_7 = arith.constant 0 : index
    %c0_8 = arith.constant 0 : index
    %11 = vector.load %arg5[%c0_7, %c0_8] : memref<4x2xf32, #tpu.memory_space<vmem>>, vector<4x2xf32>
    %12 = vector.broadcast %10 : vector<4x1xf32> to vector<4x2xf32>
    %13 = arith.mulf %11, %12 : vector<4x2xf32>
    %cst_9 = arith.constant dense<0.000000e+00> : vector<2xf32>
    %14 = vector.multi_reduction <add>, %13, %cst_9 [0] : vector<4x2xf32> to vector<2xf32>
    %15 = vector.shape_cast %14 : vector<2xf32> to vector<1x2xf32>
    %cst_10 = arith.constant 0.000000e+00 : f32
    %16 = vector.broadcast %cst_10 : f32 to vector<1x2xf32>
    %17 = arith.maximumf %15, %16 : vector<1x2xf32>
    %c0_11 = arith.constant 0 : index
    %c0_12 = arith.constant 0 : index
    %18 = vector.load %arg6[%c0_11, %c0_12] : memref<2x2xf32, #tpu.memory_space<vmem>>, vector<2x2xf32>
    %19 = vector.broadcast %17 : vector<1x2xf32> to vector<2x2xf32>
    %20 = arith.mulf %18, %19 : vector<2x2xf32>
    %cst_13 = arith.constant dense<0.000000e+00> : vector<2xf32>
    %21 = vector.multi_reduction <add>, %20, %cst_13 [1] : vector<2x2xf32> to vector<2xf32>
    %22 = vector.shape_cast %21 : vector<2xf32> to vector<2x1xf32>
    %c0_14 = arith.constant 0 : index
    %c0_15 = arith.constant 0 : index
    %23 = vector.load %arg7[%c0_14, %c0_15] : memref<2x1xf32, #tpu.memory_space<vmem>>, vector<2x1xf32>
    %24 = arith.addf %22, %23 : vector<2x1xf32>
    %cst_16 = arith.constant 0.0333333351 : f32
    %25 = vector.broadcast %cst_16 : f32 to vector<2x1xf32>
    %26 = arith.mulf %24, %25 : vector<2x1xf32>
    %cst_17 = arith.constant dense<0xFF800000> : vector<1xf32>
    %27 = vector.multi_reduction <maximumf>, %26, %cst_17 [0] : vector<2x1xf32> to vector<1xf32>
    %28 = vector.shape_cast %27 : vector<1xf32> to vector<1x1xf32>
    %29 = vector.broadcast %28 : vector<1x1xf32> to vector<2x1xf32>
    %30 = arith.subf %26, %29 : vector<2x1xf32>
    %31 = math.exp %30 : vector<2x1xf32>
    %cst_18 = arith.constant dense<0.000000e+00> : vector<1xf32>
    %32 = vector.multi_reduction <add>, %31, %cst_18 [0] : vector<2x1xf32> to vector<1xf32>
    %33 = vector.shape_cast %32 : vector<1xf32> to vector<1x1xf32>
    %34 = vector.broadcast %33 : vector<1x1xf32> to vector<2x1xf32>
    %35 = arith.divf %31, %34 : vector<2x1xf32>
    %c17_i32 = arith.constant 17 : i32
    %36 = tpu.dynamic_rotate %2 by %c17_i32 dim 1 : vector<4x256xf32>, i32 -> vector<4x256xf32>
    %37 = vector.extract_strided_slice %3 {offsets = [1, 0], sizes = [1, 256], strides = [1, 1]} : vector<10x256xf32> to vector<1x256xf32>
    %38 = vector.broadcast %37 : vector<1x256xf32> to vector<4x256xf32>
    %39 = arith.mulf %36, %38 : vector<4x256xf32>
    %c16_i32 = arith.constant 16 : i32
    %40 = tpu.dynamic_rotate %2 by %c16_i32 dim 1 : vector<4x256xf32>, i32 -> vector<4x256xf32>
    %41 = vector.extract_strided_slice %3 {offsets = [2, 0], sizes = [1, 256], strides = [1, 1]} : vector<10x256xf32> to vector<1x256xf32>
    %42 = vector.broadcast %41 : vector<1x256xf32> to vector<4x256xf32>
    %43 = arith.mulf %40, %42 : vector<4x256xf32>
    %c15_i32 = arith.constant 15 : i32
    %44 = tpu.dynamic_rotate %2 by %c15_i32 dim 1 : vector<4x256xf32>, i32 -> vector<4x256xf32>
    %45 = vector.extract_strided_slice %3 {offsets = [3, 0], sizes = [1, 256], strides = [1, 1]} : vector<10x256xf32> to vector<1x256xf32>
    %46 = vector.broadcast %45 : vector<1x256xf32> to vector<4x256xf32>
    %47 = arith.mulf %44, %46 : vector<4x256xf32>
    %c1_i32 = arith.constant 1 : i32
    %48 = tpu.dynamic_rotate %2 by %c1_i32 dim 1 : vector<4x256xf32>, i32 -> vector<4x256xf32>
    %49 = vector.extract_strided_slice %3 {offsets = [4, 0], sizes = [1, 256], strides = [1, 1]} : vector<10x256xf32> to vector<1x256xf32>
    %50 = vector.broadcast %49 : vector<1x256xf32> to vector<4x256xf32>
    %51 = arith.mulf %48, %50 : vector<4x256xf32>
    %52 = vector.extract_strided_slice %3 {offsets = [5, 0], sizes = [1, 256], strides = [1, 1]} : vector<10x256xf32> to vector<1x256xf32>
    %53 = vector.broadcast %52 : vector<1x256xf32> to vector<4x256xf32>
    %54 = arith.mulf %2, %53 : vector<4x256xf32>
    %c255_i32 = arith.constant 255 : i32
    %55 = tpu.dynamic_rotate %2 by %c255_i32 dim 1 : vector<4x256xf32>, i32 -> vector<4x256xf32>
    %56 = vector.extract_strided_slice %3 {offsets = [6, 0], sizes = [1, 256], strides = [1, 1]} : vector<10x256xf32> to vector<1x256xf32>
    %57 = vector.broadcast %56 : vector<1x256xf32> to vector<4x256xf32>
    %58 = arith.mulf %55, %57 : vector<4x256xf32>
    %c241_i32 = arith.constant 241 : i32
    %59 = tpu.dynamic_rotate %2 by %c241_i32 dim 1 : vector<4x256xf32>, i32 -> vector<4x256xf32>
    %60 = vector.extract_strided_slice %3 {offsets = [7, 0], sizes = [1, 256], strides = [1, 1]} : vector<10x256xf32> to vector<1x256xf32>
    %61 = vector.broadcast %60 : vector<1x256xf32> to vector<4x256xf32>
    %62 = arith.mulf %59, %61 : vector<4x256xf32>
    %c240_i32 = arith.constant 240 : i32
    %63 = tpu.dynamic_rotate %2 by %c240_i32 dim 1 : vector<4x256xf32>, i32 -> vector<4x256xf32>
    %64 = vector.extract_strided_slice %3 {offsets = [8, 0], sizes = [1, 256], strides = [1, 1]} : vector<10x256xf32> to vector<1x256xf32>
    %65 = vector.broadcast %64 : vector<1x256xf32> to vector<4x256xf32>
    %66 = arith.mulf %63, %65 : vector<4x256xf32>
    %c239_i32 = arith.constant 239 : i32
    %67 = tpu.dynamic_rotate %2 by %c239_i32 dim 1 : vector<4x256xf32>, i32 -> vector<4x256xf32>
    %68 = vector.extract_strided_slice %3 {offsets = [9, 0], sizes = [1, 256], strides = [1, 1]} : vector<10x256xf32> to vector<1x256xf32>
    %69 = vector.broadcast %68 : vector<1x256xf32> to vector<4x256xf32>
    %70 = arith.mulf %67, %69 : vector<4x256xf32>
    %71 = tpu.concatenate %39, %43, %47, %51, %54, %58, %62, %66, %70 in 0 : vector<4x256xf32>, vector<4x256xf32>, vector<4x256xf32>, vector<4x256xf32>, vector<4x256xf32>, vector<4x256xf32>, vector<4x256xf32>, vector<4x256xf32>, vector<4x256xf32> -> vector<36x256xf32>
    %72 = arith.truncf %71 : vector<36x256xf32> to vector<36x256xbf16>
    %c0_19 = arith.constant 0 : index
    %c0_20 = arith.constant 0 : index
    %73 = vector.load %arg4[%c0_19, %c0_20] : memref<32x36xbf16, #tpu.memory_space<vmem>>, vector<32x36xbf16>
    %cst_21 = arith.constant dense<0.000000e+00> : vector<32x256xf32>
    %74 = tpu.matmul %73, %72, %cst_21 {dimension_numbers = #tpu.dot_dimension_numbers<[1], [0], [0], [1], [0, 0, 1, 1], [], []>} : vector<32x36xbf16>, vector<36x256xbf16>, vector<32x256xf32> -> vector<32x256xf32>
    %75 = vector.extract_strided_slice %74 {offsets = [0, 0], sizes = [16, 256], strides = [1, 1]} : vector<32x256xf32> to vector<16x256xf32>
    %76 = vector.extract_strided_slice %35 {offsets = [0, 0], sizes = [1, 1], strides = [1, 1]} : vector<2x1xf32> to vector<1x1xf32>
    %77 = vector.broadcast %76 : vector<1x1xf32> to vector<16x256xf32>
    %78 = arith.mulf %75, %77 : vector<16x256xf32>
    %79 = vector.extract_strided_slice %74 {offsets = [16, 0], sizes = [16, 256], strides = [1, 1]} : vector<32x256xf32> to vector<16x256xf32>
    %80 = vector.extract_strided_slice %35 {offsets = [1, 0], sizes = [1, 1], strides = [1, 1]} : vector<2x1xf32> to vector<1x1xf32>
    %81 = vector.broadcast %80 : vector<1x1xf32> to vector<16x256xf32>
    %82 = arith.mulf %79, %81 : vector<16x256xf32>
    %83 = arith.addf %78, %82 : vector<16x256xf32>
    %84 = vector.broadcast %4 : vector<1x256xf32> to vector<16x256xf32>
    %85 = arith.mulf %83, %84 : vector<16x256xf32>
    %cst_22 = arith.constant dense<0.000000e+00> : vector<16xf32>
    %86 = vector.multi_reduction <add>, %85, %cst_22 [1] : vector<16x256xf32> to vector<16xf32>
    %87 = vector.shape_cast %86 : vector<16xf32> to vector<16x1xf32>
    %88 = arith.mulf %85, %83 : vector<16x256xf32>
    %cst_23 = arith.constant dense<0.000000e+00> : vector<16xf32>
    %89 = vector.multi_reduction <add>, %88, %cst_23 [1] : vector<16x256xf32> to vector<16xf32>
    %90 = vector.shape_cast %89 : vector<16xf32> to vector<16x1xf32>
    %91 = tpu.concatenate %87, %90 in 1 : vector<16x1xf32>, vector<16x1xf32> -> vector<16x2xf32>
    %cst_24 = arith.constant dense<0.000000e+00> : vector<16x2xf32>
    %92 = tpu.matmul %0, %91, %cst_24 {dimension_numbers = #tpu.dot_dimension_numbers<[1], [0], [0], [1], [0, 0, 1, 1], [], []>} : vector<16x16xf32>, vector<16x2xf32>, vector<16x2xf32> -> vector<16x2xf32>
    %93 = vector.extract_strided_slice %92 {offsets = [0, 0], sizes = [16, 1], strides = [1, 1]} : vector<16x2xf32> to vector<16x1xf32>
    %cst_25 = arith.constant 0.001953125 : f32
    %94 = vector.broadcast %cst_25 : f32 to vector<16x1xf32>
    %95 = arith.mulf %93, %94 : vector<16x1xf32>
    %96 = vector.extract_strided_slice %92 {offsets = [0, 1], sizes = [16, 1], strides = [1, 1]} : vector<16x2xf32> to vector<16x1xf32>
    %cst_26 = arith.constant 0.001953125 : f32
    %97 = vector.broadcast %cst_26 : f32 to vector<16x1xf32>
    %98 = arith.mulf %96, %97 : vector<16x1xf32>
    %99 = arith.mulf %95, %95 : vector<16x1xf32>
    %100 = arith.subf %98, %99 : vector<16x1xf32>
    %cst_27 = arith.constant 9.99999974E-6 : f32
    %101 = vector.broadcast %cst_27 : f32 to vector<16x1xf32>
    %102 = arith.addf %100, %101 : vector<16x1xf32>
    %103 = math.rsqrt %102 : vector<16x1xf32>
    %104 = vector.broadcast %95 : vector<16x1xf32> to vector<16x256xf32>
    %105 = arith.subf %83, %104 : vector<16x256xf32>
    %106 = vector.broadcast %103 : vector<16x1xf32> to vector<16x256xf32>
    %107 = arith.mulf %105, %106 : vector<16x256xf32>
    %c0_28 = arith.constant 0 : index
    %c0_29 = arith.constant 0 : index
    %108 = vector.load %arg8[%c0_28, %c0_29] : memref<16x1xf32, #tpu.memory_space<vmem>>, vector<16x1xf32>
    %109 = vector.broadcast %108 : vector<16x1xf32> to vector<16x256xf32>
    %110 = arith.mulf %107, %109 : vector<16x256xf32>
    %c0_30 = arith.constant 0 : index
    %c0_31 = arith.constant 0 : index
    %111 = vector.load %arg9[%c0_30, %c0_31] : memref<16x1xf32, #tpu.memory_space<vmem>>, vector<16x1xf32>
    %112 = vector.broadcast %111 : vector<16x1xf32> to vector<16x256xf32>
    %113 = arith.addf %110, %112 : vector<16x256xf32>
    %cst_32 = arith.constant 0.000000e+00 : f32
    %114 = vector.broadcast %cst_32 : f32 to vector<16x256xf32>
    %115 = arith.cmpf oge, %113, %114 : vector<16x256xf32>
    %cst_33 = arith.constant 0.00999999977 : f32
    %116 = vector.broadcast %cst_33 : f32 to vector<16x256xf32>
    %117 = arith.mulf %116, %113 : vector<16x256xf32>
    %118 = arith.select %115, %113, %117 : vector<16x256xi1>, vector<16x256xf32>
    %c0_34 = arith.constant 0 : index
    %c0_35 = arith.constant 0 : index
    %c0_36 = arith.constant 0 : index
    %119 = vector.load %arg24[%c0_34, %c0_35, %c0_36] : memref<1x16x256xf32, #tpu.memory_space<vmem>>, vector<1x16x256xf32>
    %120 = vector.shape_cast %119 : vector<1x16x256xf32> to vector<16x256xf32>
    %121 = vector.shape_cast %118 : vector<16x256xf32> to vector<1x16x256xf32>
    tpu.vector_store %arg24[%c0_34, %c0_35, %c0_36], %121 {strides = array<i32>} : memref<1x16x256xf32, #tpu.memory_space<vmem>>, vector<1x16x256xf32>,
    %c255_i32_37 = arith.constant 255 : i32
    %122 = tpu.dynamic_rotate %118 by %c255_i32_37 dim 1 : vector<16x256xf32>, i32 -> vector<16x256xf32>
    %123 = arith.maximumf %118, %122 : vector<16x256xf32>
    %c240_i32_38 = arith.constant 240 : i32
    %124 = tpu.dynamic_rotate %123 by %c240_i32_38 dim 1 : vector<16x256xf32>, i32 -> vector<16x256xf32>
    %125 = arith.maximumf %123, %124 : vector<16x256xf32>
    %c0_39 = arith.constant 0 : index
    %c0_40 = arith.constant 0 : index
    %126 = vector.load %arg10[%c0_39, %c0_40] : memref<10x256xf32, #tpu.memory_space<vmem>>, vector<10x256xf32>
    %127 = vector.extract_strided_slice %126 {offsets = [0, 0], sizes = [1, 256], strides = [1, 1]} : vector<10x256xf32> to vector<1x256xf32>
    %128 = vector.broadcast %127 : vector<1x256xf32> to vector<16x256xf32>
    %129 = arith.mulf %125, %128 : vector<16x256xf32>
    %cst_41 = arith.constant dense<0.000000e+00> : vector<16xf32>
    %130 = vector.multi_reduction <add>, %129, %cst_41 [1] : vector<16x256xf32> to vector<16xf32>
    %131 = vector.shape_cast %130 : vector<16xf32> to vector<16x1xf32>
    %cst_42 = arith.constant 1.562500e-02 : f32
    %132 = vector.broadcast %cst_42 : f32 to vector<16x1xf32>
    %133 = arith.mulf %131, %132 : vector<16x1xf32>
    %c0_43 = arith.constant 0 : index
    %c0_44 = arith.constant 0 : index
    %134 = vector.load %arg12[%c0_43, %c0_44] : memref<16x5xf32, #tpu.memory_space<vmem>>, vector<16x5xf32>
    %135 = vector.broadcast %133 : vector<16x1xf32> to vector<16x5xf32>
    %136 = arith.mulf %134, %135 : vector<16x5xf32>
    %cst_45 = arith.constant dense<0.000000e+00> : vector<5xf32>
    %137 = vector.multi_reduction <add>, %136, %cst_45 [0] : vector<16x5xf32> to vector<5xf32>
    %138 = vector.shape_cast %137 : vector<5xf32> to vector<1x5xf32>
    %cst_46 = arith.constant 0.000000e+00 : f32
    %139 = vector.broadcast %cst_46 : f32 to vector<1x5xf32>
    %140 = arith.maximumf %138, %139 : vector<1x5xf32>
    %c0_47 = arith.constant 0 : index
    %c0_48 = arith.constant 0 : index
    %141 = vector.load %arg13[%c0_47, %c0_48] : memref<2x5xf32, #tpu.memory_space<vmem>>, vector<2x5xf32>
    %142 = vector.broadcast %140 : vector<1x5xf32> to vector<2x5xf32>
    %143 = arith.mulf %141, %142 : vector<2x5xf32>
    %cst_49 = arith.constant dense<0.000000e+00> : vector<2xf32>
    %144 = vector.multi_reduction <add>, %143, %cst_49 [1] : vector<2x5xf32> to vector<2xf32>
    %145 = vector.shape_cast %144 : vector<2xf32> to vector<2x1xf32>
    %c0_50 = arith.constant 0 : index
    %c0_51 = arith.constant 0 : index
    %146 = vector.load %arg14[%c0_50, %c0_51] : memref<2x1xf32, #tpu.memory_space<vmem>>, vector<2x1xf32>
    %147 = arith.addf %145, %146 : vector<2x1xf32>
    %cst_52 = arith.constant 0.0333333351 : f32
    %148 = vector.broadcast %cst_52 : f32 to vector<2x1xf32>
    %149 = arith.mulf %147, %148 : vector<2x1xf32>
    %cst_53 = arith.constant dense<0xFF800000> : vector<1xf32>
    %150 = vector.multi_reduction <maximumf>, %149, %cst_53 [0] : vector<2x1xf32> to vector<1xf32>
    %151 = vector.shape_cast %150 : vector<1xf32> to vector<1x1xf32>
    %152 = vector.broadcast %151 : vector<1x1xf32> to vector<2x1xf32>
    %153 = arith.subf %149, %152 : vector<2x1xf32>
    %154 = math.exp %153 : vector<2x1xf32>
    %cst_54 = arith.constant dense<0.000000e+00> : vector<1xf32>
    %155 = vector.multi_reduction <add>, %154, %cst_54 [0] : vector<2x1xf32> to vector<1xf32>
    %156 = vector.shape_cast %155 : vector<1xf32> to vector<1x1xf32>
    %157 = vector.broadcast %156 : vector<1x1xf32> to vector<2x1xf32>
    %158 = arith.divf %154, %157 : vector<2x1xf32>
    %c34_i32 = arith.constant 34 : i32
    %159 = tpu.dynamic_rotate %125 by %c34_i32 dim 1 : vector<16x256xf32>, i32 -> vector<16x256xf32>
    %160 = vector.extract_strided_slice %126 {offsets = [1, 0], sizes = [1, 256], strides = [1, 1]} : vector<10x256xf32> to vector<1x256xf32>
    %161 = vector.broadcast %160 : vector<1x256xf32> to vector<16x256xf32>
    %162 = arith.mulf %159, %161 : vector<16x256xf32>
    %c32_i32 = arith.constant 32 : i32
    %163 = tpu.dynamic_rotate %125 by %c32_i32 dim 1 : vector<16x256xf32>, i32 -> vector<16x256xf32>
    %164 = vector.extract_strided_slice %126 {offsets = [2, 0], sizes = [1, 256], strides = [1, 1]} : vector<10x256xf32> to vector<1x256xf32>
    %165 = vector.broadcast %164 : vector<1x256xf32> to vector<16x256xf32>
    %166 = arith.mulf %163, %165 : vector<16x256xf32>
    %c30_i32 = arith.constant 30 : i32
    %167 = tpu.dynamic_rotate %125 by %c30_i32 dim 1 : vector<16x256xf32>, i32 -> vector<16x256xf32>
    %168 = vector.extract_strided_slice %126 {offsets = [3, 0], sizes = [1, 256], strides = [1, 1]} : vector<10x256xf32> to vector<1x256xf32>
    %169 = vector.broadcast %168 : vector<1x256xf32> to vector<16x256xf32>
    %170 = arith.mulf %167, %169 : vector<16x256xf32>
    %c2_i32 = arith.constant 2 : i32
    %171 = tpu.dynamic_rotate %125 by %c2_i32 dim 1 : vector<16x256xf32>, i32 -> vector<16x256xf32>
    %172 = vector.extract_strided_slice %126 {offsets = [4, 0], sizes = [1, 256], strides = [1, 1]} : vector<10x256xf32> to vector<1x256xf32>
    %173 = vector.broadcast %172 : vector<1x256xf32> to vector<16x256xf32>
    %174 = arith.mulf %171, %173 : vector<16x256xf32>
    %175 = vector.extract_strided_slice %126 {offsets = [5, 0], sizes = [1, 256], strides = [1, 1]} : vector<10x256xf32> to vector<1x256xf32>
    %176 = vector.broadcast %175 : vector<1x256xf32> to vector<16x256xf32>
    %177 = arith.mulf %125, %176 : vector<16x256xf32>
    %c254_i32 = arith.constant 254 : i32
    %178 = tpu.dynamic_rotate %125 by %c254_i32 dim 1 : vector<16x256xf32>, i32 -> vector<16x256xf32>
    %179 = vector.extract_strided_slice %126 {offsets = [6, 0], sizes = [1, 256], strides = [1, 1]} : vector<10x256xf32> to vector<1x256xf32>
    %180 = vector.broadcast %179 : vector<1x256xf32> to vector<16x256xf32>
    %181 = arith.mulf %178, %180 : vector<16x256xf32>
    %c226_i32 = arith.constant 226 : i32
    %182 = tpu.dynamic_rotate %125 by %c226_i32 dim 1 : vector<16x256xf32>, i32 -> vector<16x256xf32>
    %183 = vector.extract_strided_slice %126 {offsets = [7, 0], sizes = [1, 256], strides = [1, 1]} : vector<10x256xf32> to vector<1x256xf32>
    %184 = vector.broadcast %183 : vector<1x256xf32> to vector<16x256xf32>
    %185 = arith.mulf %182, %184 : vector<16x256xf32>
    %c224_i32 = arith.constant 224 : i32
    %186 = tpu.dynamic_rotate %125 by %c224_i32 dim 1 : vector<16x256xf32>, i32 -> vector<16x256xf32>
    %187 = vector.extract_strided_slice %126 {offsets = [8, 0], sizes = [1, 256], strides = [1, 1]} : vector<10x256xf32> to vector<1x256xf32>
    %188 = vector.broadcast %187 : vector<1x256xf32> to vector<16x256xf32>
    %189 = arith.mulf %186, %188 : vector<16x256xf32>
    %c222_i32 = arith.constant 222 : i32
    %190 = tpu.dynamic_rotate %125 by %c222_i32 dim 1 : vector<16x256xf32>, i32 -> vector<16x256xf32>
    %191 = vector.extract_strided_slice %126 {offsets = [9, 0], sizes = [1, 256], strides = [1, 1]} : vector<10x256xf32> to vector<1x256xf32>
    %192 = vector.broadcast %191 : vector<1x256xf32> to vector<16x256xf32>
    %193 = arith.mulf %190, %192 : vector<16x256xf32>
    %194 = tpu.concatenate %162, %166, %170, %174, %177, %181, %185, %189, %193 in 0 : vector<16x256xf32>, vector<16x256xf32>, vector<16x256xf32>, vector<16x256xf32>, vector<16x256xf32>, vector<16x256xf32>, vector<16x256xf32>, vector<16x256xf32>, vector<16x256xf32> -> vector<144x256xf32>
    %195 = arith.truncf %194 : vector<144x256xf32> to vector<144x256xbf16>
    %c0_55 = arith.constant 0 : index
    %c0_56 = arith.constant 0 : index
    %196 = vector.load %arg11[%c0_55, %c0_56] : memref<32x144xbf16, #tpu.memory_space<vmem>>, vector<32x144xbf16>
    %cst_57 = arith.constant dense<0.000000e+00> : vector<32x256xf32>
    %197 = tpu.matmul %196, %195, %cst_57 {dimension_numbers = #tpu.dot_dimension_numbers<[1], [0], [0], [1], [0, 0, 1, 1], [], []>} : vector<32x144xbf16>, vector<144x256xbf16>, vector<32x256xf32> -> vector<32x256xf32>
    %198 = vector.extract_strided_slice %197 {offsets = [0, 0], sizes = [16, 256], strides = [1, 1]} : vector<32x256xf32> to vector<16x256xf32>
    %199 = vector.extract_strided_slice %158 {offsets = [0, 0], sizes = [1, 1], strides = [1, 1]} : vector<2x1xf32> to vector<1x1xf32>
    %200 = vector.broadcast %199 : vector<1x1xf32> to vector<16x256xf32>
    %201 = arith.mulf %198, %200 : vector<16x256xf32>
    %202 = vector.extract_strided_slice %197 {offsets = [16, 0], sizes = [16, 256], strides = [1, 1]} : vector<32x256xf32> to vector<16x256xf32>
    %203 = vector.extract_strided_slice %158 {offsets = [1, 0], sizes = [1, 1], strides = [1, 1]} : vector<2x1xf32> to vector<1x1xf32>
    %204 = vector.broadcast %203 : vector<1x1xf32> to vector<16x256xf32>
    %205 = arith.mulf %202, %204 : vector<16x256xf32>
    %206 = arith.addf %201, %205 : vector<16x256xf32>
    %207 = vector.broadcast %127 : vector<1x256xf32> to vector<16x256xf32>
    %208 = arith.mulf %206, %207 : vector<16x256xf32>
    %cst_58 = arith.constant dense<0.000000e+00> : vector<16xf32>
    %209 = vector.multi_reduction <add>, %208, %cst_58 [1] : vector<16x256xf32> to vector<16xf32>
    %210 = vector.shape_cast %209 : vector<16xf32> to vector<16x1xf32>
    %211 = arith.mulf %208, %206 : vector<16x256xf32>
    %cst_59 = arith.constant dense<0.000000e+00> : vector<16xf32>
    %212 = vector.multi_reduction <add>, %211, %cst_59 [1] : vector<16x256xf32> to vector<16xf32>
    %213 = vector.shape_cast %212 : vector<16xf32> to vector<16x1xf32>
    %214 = tpu.concatenate %210, %213 in 1 : vector<16x1xf32>, vector<16x1xf32> -> vector<16x2xf32>
    %cst_60 = arith.constant dense<0.000000e+00> : vector<16x2xf32>
    %215 = tpu.matmul %0, %214, %cst_60 {dimension_numbers = #tpu.dot_dimension_numbers<[1], [0], [0], [1], [0, 0, 1, 1], [], []>} : vector<16x16xf32>, vector<16x2xf32>, vector<16x2xf32> -> vector<16x2xf32>
    %216 = vector.extract_strided_slice %215 {offsets = [0, 0], sizes = [16, 1], strides = [1, 1]} : vector<16x2xf32> to vector<16x1xf32>
    %cst_61 = arith.constant 7.812500e-03 : f32
    %217 = vector.broadcast %cst_61 : f32 to vector<16x1xf32>
    %218 = arith.mulf %216, %217 : vector<16x1xf32>
    %219 = vector.extract_strided_slice %215 {offsets = [0, 1], sizes = [16, 1], strides = [1, 1]} : vector<16x2xf32> to vector<16x1xf32>
    %cst_62 = arith.constant 7.812500e-03 : f32
    %220 = vector.broadcast %cst_62 : f32 to vector<16x1xf32>
    %221 = arith.mulf %219, %220 : vector<16x1xf32>
    %222 = arith.mulf %218, %218 : vector<16x1xf32>
    %223 = arith.subf %221, %222 : vector<16x1xf32>
    %cst_63 = arith.constant 9.99999974E-6 : f32
    %224 = vector.broadcast %cst_63 : f32 to vector<16x1xf32>
    %225 = arith.addf %223, %224 : vector<16x1xf32>
    %226 = math.rsqrt %225 : vector<16x1xf32>
    %227 = vector.broadcast %218 : vector<16x1xf32> to vector<16x256xf32>
    %228 = arith.subf %206, %227 : vector<16x256xf32>
    %229 = vector.broadcast %226 : vector<16x1xf32> to vector<16x256xf32>
    %230 = arith.mulf %228, %229 : vector<16x256xf32>
    %c0_64 = arith.constant 0 : index
    %c0_65 = arith.constant 0 : index
    %231 = vector.load %arg15[%c0_64, %c0_65] : memref<16x1xf32, #tpu.memory_space<vmem>>, vector<16x1xf32>
    %232 = vector.broadcast %231 : vector<16x1xf32> to vector<16x256xf32>
    %233 = arith.mulf %230, %232 : vector<16x256xf32>
    %c0_66 = arith.constant 0 : index
    %c0_67 = arith.constant 0 : index
    %234 = vector.load %arg16[%c0_66, %c0_67] : memref<16x1xf32, #tpu.memory_space<vmem>>, vector<16x1xf32>
    %235 = vector.broadcast %234 : vector<16x1xf32> to vector<16x256xf32>
    %236 = arith.addf %233, %235 : vector<16x256xf32>
    %cst_68 = arith.constant 0.000000e+00 : f32
    %237 = vector.broadcast %cst_68 : f32 to vector<16x256xf32>
    %238 = arith.cmpf oge, %236, %237 : vector<16x256xf32>
    %cst_69 = arith.constant 0.00999999977 : f32
    %239 = vector.broadcast %cst_69 : f32 to vector<16x256xf32>
    %240 = arith.mulf %239, %236 : vector<16x256xf32>
    %241 = arith.select %238, %236, %240 : vector<16x256xi1>, vector<16x256xf32>
    %c0_70 = arith.constant 0 : index
    %c0_71 = arith.constant 0 : index
    %c0_72 = arith.constant 0 : index
    %242 = vector.load %arg25[%c0_70, %c0_71, %c0_72] : memref<1x16x256xf32, #tpu.memory_space<vmem>>, vector<1x16x256xf32>
    %243 = vector.shape_cast %242 : vector<1x16x256xf32> to vector<16x256xf32>
    %244 = vector.shape_cast %241 : vector<16x256xf32> to vector<1x16x256xf32>
    tpu.vector_store %arg25[%c0_70, %c0_71, %c0_72], %244 {strides = array<i32>} : memref<1x16x256xf32, #tpu.memory_space<vmem>>, vector<1x16x256xf32>,
    %c254_i32_73 = arith.constant 254 : i32
    %245 = tpu.dynamic_rotate %241 by %c254_i32_73 dim 1 : vector<16x256xf32>, i32 -> vector<16x256xf32>
    %246 = arith.maximumf %241, %245 : vector<16x256xf32>
    %c224_i32_74 = arith.constant 224 : i32
    %247 = tpu.dynamic_rotate %246 by %c224_i32_74 dim 1 : vector<16x256xf32>, i32 -> vector<16x256xf32>
    %248 = arith.maximumf %246, %247 : vector<16x256xf32>
    %c0_75 = arith.constant 0 : index
    %c0_76 = arith.constant 0 : index
    %249 = vector.load %arg17[%c0_75, %c0_76] : memref<10x256xf32, #tpu.memory_space<vmem>>, vector<10x256xf32>
    %250 = vector.extract_strided_slice %249 {offsets = [0, 0], sizes = [1, 256], strides = [1, 1]} : vector<10x256xf32> to vector<1x256xf32>
    %251 = vector.broadcast %250 : vector<1x256xf32> to vector<16x256xf32>
    %252 = arith.mulf %248, %251 : vector<16x256xf32>
    %cst_77 = arith.constant dense<0.000000e+00> : vector<16xf32>
    %253 = vector.multi_reduction <add>, %252, %cst_77 [1] : vector<16x256xf32> to vector<16xf32>
    %254 = vector.shape_cast %253 : vector<16xf32> to vector<16x1xf32>
    %cst_78 = arith.constant 6.250000e-02 : f32
    %255 = vector.broadcast %cst_78 : f32 to vector<16x1xf32>
    %256 = arith.mulf %254, %255 : vector<16x1xf32>
    %c0_79 = arith.constant 0 : index
    %c0_80 = arith.constant 0 : index
    %257 = vector.load %arg19[%c0_79, %c0_80] : memref<16x5xf32, #tpu.memory_space<vmem>>, vector<16x5xf32>
    %258 = vector.broadcast %256 : vector<16x1xf32> to vector<16x5xf32>
    %259 = arith.mulf %257, %258 : vector<16x5xf32>
    %cst_81 = arith.constant dense<0.000000e+00> : vector<5xf32>
    %260 = vector.multi_reduction <add>, %259, %cst_81 [0] : vector<16x5xf32> to vector<5xf32>
    %261 = vector.shape_cast %260 : vector<5xf32> to vector<1x5xf32>
    %cst_82 = arith.constant 0.000000e+00 : f32
    %262 = vector.broadcast %cst_82 : f32 to vector<1x5xf32>
    %263 = arith.maximumf %261, %262 : vector<1x5xf32>
    %c0_83 = arith.constant 0 : index
    %c0_84 = arith.constant 0 : index
    %264 = vector.load %arg20[%c0_83, %c0_84] : memref<2x5xf32, #tpu.memory_space<vmem>>, vector<2x5xf32>
    %265 = vector.broadcast %263 : vector<1x5xf32> to vector<2x5xf32>
    %266 = arith.mulf %264, %265 : vector<2x5xf32>
    %cst_85 = arith.constant dense<0.000000e+00> : vector<2xf32>
    %267 = vector.multi_reduction <add>, %266, %cst_85 [1] : vector<2x5xf32> to vector<2xf32>
    %268 = vector.shape_cast %267 : vector<2xf32> to vector<2x1xf32>
    %c0_86 = arith.constant 0 : index
    %c0_87 = arith.constant 0 : index
    %269 = vector.load %arg21[%c0_86, %c0_87] : memref<2x1xf32, #tpu.memory_space<vmem>>, vector<2x1xf32>
    %270 = arith.addf %268, %269 : vector<2x1xf32>
    %cst_88 = arith.constant 0.0333333351 : f32
    %271 = vector.broadcast %cst_88 : f32 to vector<2x1xf32>
    %272 = arith.mulf %270, %271 : vector<2x1xf32>
    %cst_89 = arith.constant dense<0xFF800000> : vector<1xf32>
    %273 = vector.multi_reduction <maximumf>, %272, %cst_89 [0] : vector<2x1xf32> to vector<1xf32>
    %274 = vector.shape_cast %273 : vector<1xf32> to vector<1x1xf32>
    %275 = vector.broadcast %274 : vector<1x1xf32> to vector<2x1xf32>
    %276 = arith.subf %272, %275 : vector<2x1xf32>
    %277 = math.exp %276 : vector<2x1xf32>
    %cst_90 = arith.constant dense<0.000000e+00> : vector<1xf32>
    %278 = vector.multi_reduction <add>, %277, %cst_90 [0] : vector<2x1xf32> to vector<1xf32>
    %279 = vector.shape_cast %278 : vector<1xf32> to vector<1x1xf32>
    %280 = vector.broadcast %279 : vector<1x1xf32> to vector<2x1xf32>
    %281 = arith.divf %277, %280 : vector<2x1xf32>
    %c68_i32 = arith.constant 68 : i32
    %282 = tpu.dynamic_rotate %248 by %c68_i32 dim 1 : vector<16x256xf32>, i32 -> vector<16x256xf32>
    %283 = vector.extract_strided_slice %249 {offsets = [1, 0], sizes = [1, 256], strides = [1, 1]} : vector<10x256xf32> to vector<1x256xf32>
    %284 = vector.broadcast %283 : vector<1x256xf32> to vector<16x256xf32>
    %285 = arith.mulf %282, %284 : vector<16x256xf32>
    %c64_i32 = arith.constant 64 : i32
    %286 = tpu.dynamic_rotate %248 by %c64_i32 dim 1 : vector<16x256xf32>, i32 -> vector<16x256xf32>
    %287 = vector.extract_strided_slice %249 {offsets = [2, 0], sizes = [1, 256], strides = [1, 1]} : vector<10x256xf32> to vector<1x256xf32>
    %288 = vector.broadcast %287 : vector<1x256xf32> to vector<16x256xf32>
    %289 = arith.mulf %286, %288 : vector<16x256xf32>
    %c60_i32 = arith.constant 60 : i32
    %290 = tpu.dynamic_rotate %248 by %c60_i32 dim 1 : vector<16x256xf32>, i32 -> vector<16x256xf32>
    %291 = vector.extract_strided_slice %249 {offsets = [3, 0], sizes = [1, 256], strides = [1, 1]} : vector<10x256xf32> to vector<1x256xf32>
    %292 = vector.broadcast %291 : vector<1x256xf32> to vector<16x256xf32>
    %293 = arith.mulf %290, %292 : vector<16x256xf32>
    %c4_i32 = arith.constant 4 : i32
    %294 = tpu.dynamic_rotate %248 by %c4_i32 dim 1 : vector<16x256xf32>, i32 -> vector<16x256xf32>
    %295 = vector.extract_strided_slice %249 {offsets = [4, 0], sizes = [1, 256], strides = [1, 1]} : vector<10x256xf32> to vector<1x256xf32>
    %296 = vector.broadcast %295 : vector<1x256xf32> to vector<16x256xf32>
    %297 = arith.mulf %294, %296 : vector<16x256xf32>
    %298 = vector.extract_strided_slice %249 {offsets = [5, 0], sizes = [1, 256], strides = [1, 1]} : vector<10x256xf32> to vector<1x256xf32>
    %299 = vector.broadcast %298 : vector<1x256xf32> to vector<16x256xf32>
    %300 = arith.mulf %248, %299 : vector<16x256xf32>
    %c252_i32 = arith.constant 252 : i32
    %301 = tpu.dynamic_rotate %248 by %c252_i32 dim 1 : vector<16x256xf32>, i32 -> vector<16x256xf32>
    %302 = vector.extract_strided_slice %249 {offsets = [6, 0], sizes = [1, 256], strides = [1, 1]} : vector<10x256xf32> to vector<1x256xf32>
    %303 = vector.broadcast %302 : vector<1x256xf32> to vector<16x256xf32>
    %304 = arith.mulf %301, %303 : vector<16x256xf32>
    %c196_i32 = arith.constant 196 : i32
    %305 = tpu.dynamic_rotate %248 by %c196_i32 dim 1 : vector<16x256xf32>, i32 -> vector<16x256xf32>
    %306 = vector.extract_strided_slice %249 {offsets = [7, 0], sizes = [1, 256], strides = [1, 1]} : vector<10x256xf32> to vector<1x256xf32>
    %307 = vector.broadcast %306 : vector<1x256xf32> to vector<16x256xf32>
    %308 = arith.mulf %305, %307 : vector<16x256xf32>
    %c192_i32 = arith.constant 192 : i32
    %309 = tpu.dynamic_rotate %248 by %c192_i32 dim 1 : vector<16x256xf32>, i32 -> vector<16x256xf32>
    %310 = vector.extract_strided_slice %249 {offsets = [8, 0], sizes = [1, 256], strides = [1, 1]} : vector<10x256xf32> to vector<1x256xf32>
    %311 = vector.broadcast %310 : vector<1x256xf32> to vector<16x256xf32>
    %312 = arith.mulf %309, %311 : vector<16x256xf32>
    %c188_i32 = arith.constant 188 : i32
    %313 = tpu.dynamic_rotate %248 by %c188_i32 dim 1 : vector<16x256xf32>, i32 -> vector<16x256xf32>
    %314 = vector.extract_strided_slice %249 {offsets = [9, 0], sizes = [1, 256], strides = [1, 1]} : vector<10x256xf32> to vector<1x256xf32>
    %315 = vector.broadcast %314 : vector<1x256xf32> to vector<16x256xf32>
    %316 = arith.mulf %313, %315 : vector<16x256xf32>
    %317 = tpu.concatenate %285, %289, %293, %297, %300, %304, %308, %312, %316 in 0 : vector<16x256xf32>, vector<16x256xf32>, vector<16x256xf32>, vector<16x256xf32>, vector<16x256xf32>, vector<16x256xf32>, vector<16x256xf32>, vector<16x256xf32>, vector<16x256xf32> -> vector<144x256xf32>
    %318 = arith.truncf %317 : vector<144x256xf32> to vector<144x256xbf16>
    %c0_91 = arith.constant 0 : index
    %c0_92 = arith.constant 0 : index
    %319 = vector.load %arg18[%c0_91, %c0_92] : memref<32x144xbf16, #tpu.memory_space<vmem>>, vector<32x144xbf16>
    %cst_93 = arith.constant dense<0.000000e+00> : vector<32x256xf32>
    %320 = tpu.matmul %319, %318, %cst_93 {dimension_numbers = #tpu.dot_dimension_numbers<[1], [0], [0], [1], [0, 0, 1, 1], [], []>} : vector<32x144xbf16>, vector<144x256xbf16>, vector<32x256xf32> -> vector<32x256xf32>
    %321 = vector.extract_strided_slice %320 {offsets = [0, 0], sizes = [16, 256], strides = [1, 1]} : vector<32x256xf32> to vector<16x256xf32>
    %322 = vector.extract_strided_slice %281 {offsets = [0, 0], sizes = [1, 1], strides = [1, 1]} : vector<2x1xf32> to vector<1x1xf32>
    %323 = vector.broadcast %322 : vector<1x1xf32> to vector<16x256xf32>
    %324 = arith.mulf %321, %323 : vector<16x256xf32>
    %325 = vector.extract_strided_slice %320 {offsets = [16, 0], sizes = [16, 256], strides = [1, 1]} : vector<32x256xf32> to vector<16x256xf32>
    %326 = vector.extract_strided_slice %281 {offsets = [1, 0], sizes = [1, 1], strides = [1, 1]} : vector<2x1xf32> to vector<1x1xf32>
    %327 = vector.broadcast %326 : vector<1x1xf32> to vector<16x256xf32>
    %328 = arith.mulf %325, %327 : vector<16x256xf32>
    %329 = arith.addf %324, %328 : vector<16x256xf32>
    %330 = vector.broadcast %250 : vector<1x256xf32> to vector<16x256xf32>
    %331 = arith.mulf %329, %330 : vector<16x256xf32>
    %cst_94 = arith.constant dense<0.000000e+00> : vector<16xf32>
    %332 = vector.multi_reduction <add>, %331, %cst_94 [1] : vector<16x256xf32> to vector<16xf32>
    %333 = vector.shape_cast %332 : vector<16xf32> to vector<16x1xf32>
    %334 = arith.mulf %331, %329 : vector<16x256xf32>
    %cst_95 = arith.constant dense<0.000000e+00> : vector<16xf32>
    %335 = vector.multi_reduction <add>, %334, %cst_95 [1] : vector<16x256xf32> to vector<16xf32>
    %336 = vector.shape_cast %335 : vector<16xf32> to vector<16x1xf32>
    %337 = tpu.concatenate %333, %336 in 1 : vector<16x1xf32>, vector<16x1xf32> -> vector<16x2xf32>
    %cst_96 = arith.constant dense<0.000000e+00> : vector<16x2xf32>
    %338 = tpu.matmul %0, %337, %cst_96 {dimension_numbers = #tpu.dot_dimension_numbers<[1], [0], [0], [1], [0, 0, 1, 1], [], []>} : vector<16x16xf32>, vector<16x2xf32>, vector<16x2xf32> -> vector<16x2xf32>
    %339 = vector.extract_strided_slice %338 {offsets = [0, 0], sizes = [16, 1], strides = [1, 1]} : vector<16x2xf32> to vector<16x1xf32>
    %cst_97 = arith.constant 3.125000e-02 : f32
    %340 = vector.broadcast %cst_97 : f32 to vector<16x1xf32>
    %341 = arith.mulf %339, %340 : vector<16x1xf32>
    %342 = vector.extract_strided_slice %338 {offsets = [0, 1], sizes = [16, 1], strides = [1, 1]} : vector<16x2xf32> to vector<16x1xf32>
    %cst_98 = arith.constant 3.125000e-02 : f32
    %343 = vector.broadcast %cst_98 : f32 to vector<16x1xf32>
    %344 = arith.mulf %342, %343 : vector<16x1xf32>
    %345 = arith.mulf %341, %341 : vector<16x1xf32>
    %346 = arith.subf %344, %345 : vector<16x1xf32>
    %cst_99 = arith.constant 9.99999974E-6 : f32
    %347 = vector.broadcast %cst_99 : f32 to vector<16x1xf32>
    %348 = arith.addf %346, %347 : vector<16x1xf32>
    %349 = math.rsqrt %348 : vector<16x1xf32>
    %350 = vector.broadcast %341 : vector<16x1xf32> to vector<16x256xf32>
    %351 = arith.subf %329, %350 : vector<16x256xf32>
    %352 = vector.broadcast %349 : vector<16x1xf32> to vector<16x256xf32>
    %353 = arith.mulf %351, %352 : vector<16x256xf32>
    %c0_100 = arith.constant 0 : index
    %c0_101 = arith.constant 0 : index
    %354 = vector.load %arg22[%c0_100, %c0_101] : memref<16x1xf32, #tpu.memory_space<vmem>>, vector<16x1xf32>
    %355 = vector.broadcast %354 : vector<16x1xf32> to vector<16x256xf32>
    %356 = arith.mulf %353, %355 : vector<16x256xf32>
    %c0_102 = arith.constant 0 : index
    %c0_103 = arith.constant 0 : index
    %357 = vector.load %arg23[%c0_102, %c0_103] : memref<16x1xf32, #tpu.memory_space<vmem>>, vector<16x1xf32>
    %358 = vector.broadcast %357 : vector<16x1xf32> to vector<16x256xf32>
    %359 = arith.addf %356, %358 : vector<16x256xf32>
    %cst_104 = arith.constant 0.000000e+00 : f32
    %360 = vector.broadcast %cst_104 : f32 to vector<16x256xf32>
    %361 = arith.cmpf oge, %359, %360 : vector<16x256xf32>
    %cst_105 = arith.constant 0.00999999977 : f32
    %362 = vector.broadcast %cst_105 : f32 to vector<16x256xf32>
    %363 = arith.mulf %362, %359 : vector<16x256xf32>
    %364 = arith.select %361, %359, %363 : vector<16x256xi1>, vector<16x256xf32>
    %c0_106 = arith.constant 0 : index
    %c0_107 = arith.constant 0 : index
    %c0_108 = arith.constant 0 : index
    %365 = vector.load %arg26[%c0_106, %c0_107, %c0_108] : memref<1x16x256xf32, #tpu.memory_space<vmem>>, vector<1x16x256xf32>
    %366 = vector.shape_cast %365 : vector<1x16x256xf32> to vector<16x256xf32>
    %367 = vector.shape_cast %364 : vector<16x256xf32> to vector<1x16x256xf32>
    tpu.vector_store %arg26[%c0_106, %c0_107, %c0_108], %367 {strides = array<i32>} : memref<1x16x256xf32, #tpu.memory_space<vmem>>, vector<1x16x256xf32>,
    return
  }
  func.func @transform_0(%arg0: i32) -> (i32, i32, i32) {
    %c0_i32 = arith.constant 0 : i32
    %c0_i32_0 = arith.constant 0 : i32
    %c0_i32_1 = arith.constant 0 : i32
    return %arg0, %c0_i32, %c0_i32_0 : i32, i32, i32
  }
  func.func @transform_1(%arg0: i32) -> (i32, i32) {
    %c0_i32 = arith.constant 0 : i32
    %c0_i32_0 = arith.constant 0 : i32
    %c0_i32_1 = arith.constant 0 : i32
    return %c0_i32, %c0_i32_0 : i32, i32
  }
  func.func @transform_2(%arg0: i32) -> (i32, i32) {
    %c0_i32 = arith.constant 0 : i32
    %c0_i32_0 = arith.constant 0 : i32
    %c0_i32_1 = arith.constant 0 : i32
    return %c0_i32, %c0_i32_0 : i32, i32
  }
  func.func @transform_3(%arg0: i32) -> (i32, i32) {
    %c0_i32 = arith.constant 0 : i32
    %c0_i32_0 = arith.constant 0 : i32
    %c0_i32_1 = arith.constant 0 : i32
    return %c0_i32, %c0_i32_0 : i32, i32
  }
  func.func @transform_4(%arg0: i32) -> (i32, i32) {
    %c0_i32 = arith.constant 0 : i32
    %c0_i32_0 = arith.constant 0 : i32
    %c0_i32_1 = arith.constant 0 : i32
    return %c0_i32, %c0_i32_0 : i32, i32
  }
  func.func @transform_5(%arg0: i32) -> (i32, i32) {
    %c0_i32 = arith.constant 0 : i32
    %c0_i32_0 = arith.constant 0 : i32
    %c0_i32_1 = arith.constant 0 : i32
    return %c0_i32, %c0_i32_0 : i32, i32
  }
  func.func @transform_6(%arg0: i32) -> (i32, i32) {
    %c0_i32 = arith.constant 0 : i32
    %c0_i32_0 = arith.constant 0 : i32
    %c0_i32_1 = arith.constant 0 : i32
    return %c0_i32, %c0_i32_0 : i32, i32
  }
  func.func @transform_7(%arg0: i32) -> (i32, i32) {
    %c0_i32 = arith.constant 0 : i32
    %c0_i32_0 = arith.constant 0 : i32
    %c0_i32_1 = arith.constant 0 : i32
    return %c0_i32, %c0_i32_0 : i32, i32
  }
  func.func @transform_8(%arg0: i32) -> (i32, i32) {
    %c0_i32 = arith.constant 0 : i32
    %c0_i32_0 = arith.constant 0 : i32
    %c0_i32_1 = arith.constant 0 : i32
    return %c0_i32, %c0_i32_0 : i32, i32
  }
  func.func @transform_9(%arg0: i32) -> (i32, i32) {
    %c0_i32 = arith.constant 0 : i32
    %c0_i32_0 = arith.constant 0 : i32
    %c0_i32_1 = arith.constant 0 : i32
    return %c0_i32, %c0_i32_0 : i32, i32
  }
  func.func @transform_10(%arg0: i32) -> (i32, i32) {
    %c0_i32 = arith.constant 0 : i32
    %c0_i32_0 = arith.constant 0 : i32
    %c0_i32_1 = arith.constant 0 : i32
    return %c0_i32, %c0_i32_0 : i32, i32
  }
  func.func @transform_11(%arg0: i32) -> (i32, i32) {
    %c0_i32 = arith.constant 0 : i32
    %c0_i32_0 = arith.constant 0 : i32
    %c0_i32_1 = arith.constant 0 : i32
    return %c0_i32, %c0_i32_0 : i32, i32
  }
  func.func @transform_12(%arg0: i32) -> (i32, i32) {
    %c0_i32 = arith.constant 0 : i32
    %c0_i32_0 = arith.constant 0 : i32
    %c0_i32_1 = arith.constant 0 : i32
    return %c0_i32, %c0_i32_0 : i32, i32
  }
  func.func @transform_13(%arg0: i32) -> (i32, i32) {
    %c0_i32 = arith.constant 0 : i32
    %c0_i32_0 = arith.constant 0 : i32
    %c0_i32_1 = arith.constant 0 : i32
    return %c0_i32, %c0_i32_0 : i32, i32
  }
  func.func @transform_14(%arg0: i32) -> (i32, i32) {
    %c0_i32 = arith.constant 0 : i32
    %c0_i32_0 = arith.constant 0 : i32
    %c0_i32_1 = arith.constant 0 : i32
    return %c0_i32, %c0_i32_0 : i32, i32
  }
  func.func @transform_15(%arg0: i32) -> (i32, i32) {
    %c0_i32 = arith.constant 0 : i32
    %c0_i32_0 = arith.constant 0 : i32
    %c0_i32_1 = arith.constant 0 : i32
    return %c0_i32, %c0_i32_0 : i32, i32
  }
  func.func @transform_16(%arg0: i32) -> (i32, i32) {
    %c0_i32 = arith.constant 0 : i32
    %c0_i32_0 = arith.constant 0 : i32
    %c0_i32_1 = arith.constant 0 : i32
    return %c0_i32, %c0_i32_0 : i32, i32
  }
  func.func @transform_17(%arg0: i32) -> (i32, i32) {
    %c0_i32 = arith.constant 0 : i32
    %c0_i32_0 = arith.constant 0 : i32
    %c0_i32_1 = arith.constant 0 : i32
    return %c0_i32, %c0_i32_0 : i32, i32
  }
  func.func @transform_18(%arg0: i32) -> (i32, i32) {
    %c0_i32 = arith.constant 0 : i32
    %c0_i32_0 = arith.constant 0 : i32
    %c0_i32_1 = arith.constant 0 : i32
    return %c0_i32, %c0_i32_0 : i32, i32
  }
  func.func @transform_19(%arg0: i32) -> (i32, i32) {
    %c0_i32 = arith.constant 0 : i32
    %c0_i32_0 = arith.constant 0 : i32
    %c0_i32_1 = arith.constant 0 : i32
    return %c0_i32, %c0_i32_0 : i32, i32
  }
  func.func @transform_20(%arg0: i32) -> (i32, i32) {
    %c0_i32 = arith.constant 0 : i32
    %c0_i32_0 = arith.constant 0 : i32
    %c0_i32_1 = arith.constant 0 : i32
    return %c0_i32, %c0_i32_0 : i32, i32
  }
  func.func @transform_21(%arg0: i32) -> (i32, i32) {
    %c0_i32 = arith.constant 0 : i32
    %c0_i32_0 = arith.constant 0 : i32
    %c0_i32_1 = arith.constant 0 : i32
    return %c0_i32, %c0_i32_0 : i32, i32
  }
  func.func @transform_22(%arg0: i32) -> (i32, i32) {
    %c0_i32 = arith.constant 0 : i32
    %c0_i32_0 = arith.constant 0 : i32
    %c0_i32_1 = arith.constant 0 : i32
    return %c0_i32, %c0_i32_0 : i32, i32
  }
  func.func @transform_23(%arg0: i32) -> (i32, i32, i32) {
    %c0_i32 = arith.constant 0 : i32
    %c0_i32_0 = arith.constant 0 : i32
    %c0_i32_1 = arith.constant 0 : i32
    return %arg0, %c0_i32, %c0_i32_0 : i32, i32, i32
  }
  func.func @transform_24(%arg0: i32) -> (i32, i32, i32) {
    %c0_i32 = arith.constant 0 : i32
    %c0_i32_0 = arith.constant 0 : i32
    %c0_i32_1 = arith.constant 0 : i32
    return %arg0, %c0_i32, %c0_i32_0 : i32, i32, i32
  }
  func.func @transform_25(%arg0: i32) -> (i32, i32, i32) {
    %c0_i32 = arith.constant 0 : i32
    %c0_i32_0 = arith.constant 0 : i32
    %c0_i32_1 = arith.constant 0 : i32
    return %arg0, %c0_i32, %c0_i32_0 : i32, i32, i32
  }
}

</mosaic_0001>

<llo_original>
// kernel: tpu_custom_call.1
$region0: #{tpu_custom_call.1}
  #allocation0 [shape = 'u32[]', space=smem, size = 0x4, offset = 0x4, fixed_abs, tag = 'smem constant byte address 0x4 - core index']
  #allocation1 [shape = 'u32[144,128]{1,0:T(1,128)}', space=vmem, size = 0x12000, scoped, tag = 'internal scratch']
  %s0 = inlined_call_operand.hbm [shape: f32[2,4,256], index: 0, kind: input, shape index: {}]
  %s1 = inlined_call_operand.hbm [shape: f32[16,16], index: 1, kind: input, shape index: {}]
  %s2 = inlined_call_operand.vmem [shape: f32[10,256], index: 2, kind: input, shape index: {}]
  %s3 = inlined_call_operand.vmem [shape: bf16[32,36], index: 3, kind: input, shape index: {}]
  %s4 = inlined_call_operand.vmem [shape: f32[4,2], index: 4, kind: input, shape index: {}]
  %s5 = inlined_call_operand.hbm [shape: f32[2,2], index: 5, kind: input, shape index: {}]
  %s6 = inlined_call_operand.vmem [shape: f32[2,1], index: 6, kind: input, shape index: {}]
  %s7 = inlined_call_operand.vmem [shape: f32[16,1], index: 7, kind: input, shape index: {}]
  %s8 = inlined_call_operand.vmem [shape: f32[16,1], index: 8, kind: input, shape index: {}]
  %s9 = inlined_call_operand.vmem [shape: f32[10,256], index: 9, kind: input, shape index: {}]
  %s10 = inlined_call_operand.vmem [shape: bf16[32,144], index: 10, kind: input, shape index: {}]
  %s11 = inlined_call_operand.vmem [shape: f32[16,5], index: 11, kind: input, shape index: {}]
  %s12 = inlined_call_operand.vmem [shape: f32[2,5], index: 12, kind: input, shape index: {}]
  %s13 = inlined_call_operand.vmem [shape: f32[2,1], index: 13, kind: input, shape index: {}]
  %s14 = inlined_call_operand.vmem [shape: f32[16,1], index: 14, kind: input, shape index: {}]
  %s15 = inlined_call_operand.vmem [shape: f32[16,1], index: 15, kind: input, shape index: {}]
  %s16 = inlined_call_operand.vmem [shape: f32[10,256], index: 16, kind: input, shape index: {}]
  %s17 = inlined_call_operand.vmem [shape: bf16[32,144], index: 17, kind: input, shape index: {}]
  %s18 = inlined_call_operand.vmem [shape: f32[16,5], index: 18, kind: input, shape index: {}]
  %s19 = inlined_call_operand.vmem [shape: f32[2,5], index: 19, kind: input, shape index: {}]
  %s20 = inlined_call_operand.vmem [shape: f32[2,1], index: 20, kind: input, shape index: {}]
  %s21 = inlined_call_operand.vmem [shape: f32[16,1], index: 21, kind: input, shape index: {}]
  %s22 = inlined_call_operand.vmem [shape: f32[16,1], index: 22, kind: input, shape index: {}]
  %s23 = inlined_call_operand.hbm [shape: f32[2,16,256], index: 23, kind: output, shape index: {0}]
  %s24 = inlined_call_operand.hbm [shape: f32[2,16,256], index: 24, kind: output, shape index: {1}]
  %s25 = inlined_call_operand.hbm [shape: f32[2,16,256], index: 25, kind: output, shape index: {2}]
  %26 = xla_tuple %s23, %s24, %s25
  %s27 = sld [smem:[#allocation0]]
  $region153: #{tpu_custom_call.1} parent=0
    _
  %s29 = ssub.s32 1, %s27
  %s30 = scalar_select 0, %s29, %s27
  $region1: #{tpu_custom_call.1} parent=0
    #allocation2 [shape = 'u8[8192]{0}', space=vmem, size = 0x2000, scoped, tag = 'input window, operand 0']
    #allocation3 [shape = 's32[2]{0}', space=sflag, size = 0x8, scoped, tag = 'scoped memory for tpu_custom_call.1']
    #allocation4 [shape = 's32[2]{0}', space=sflag, size = 0x8, scoped, tag = 'scoped memory for tpu_custom_call.1']
    #allocation5 [shape = 'u8[8192]{0}', space=vmem, size = 0x2000, scoped, tag = 'input window, operand 1, single buffered']
    #allocation6 [shape = 's32[1]{0}', space=sflag, size = 0x4, scoped, tag = 'scoped memory for tpu_custom_call.1']
    #allocation7 [shape = 'u8[1024]{0}', space=vmem, size = 0x400, scoped, tag = 'input window, operand 5, single buffered']
    #allocation8 [shape = 'u8[32768]{0}', space=vmem, size = 0x8000, scoped, tag = 'output window, operand 0']
    #allocation9 [shape = 'u8[32768]{0}', space=vmem, size = 0x8000, scoped, tag = 'output window, operand 1']
    #allocation10 [shape = 's32[2]{0}', space=sflag, size = 0x8, scoped, tag = 'scoped memory for tpu_custom_call.1']
    #allocation11 [shape = 'u8[32768]{0}', space=vmem, size = 0x8000, scoped, tag = 'output window, operand 2']
    %31 = vsyncpa [#allocation3], 0
    %s32 = scalar_lea.sflag [#allocation3], 1
    %33 = vsyncpa %s32, 0
    %34 = vsyncpa [#allocation6], 0
    %35 = vsyncpa [#allocation4], 0
    %s36 = scalar_lea.sflag [#allocation4], 1
    %37 = vsyncpa %s36, 0
    %38 = vsyncpa [#allocation10], 0
    %s39 = scalar_lea.sflag [#allocation10], 1
    %40 = vsyncpa %s39, 0
    loop: start=0, step=1, limit=4
    $region2: #{tpu_custom_call.1} parent=1 // loop_pre_header
      _
    $region3: #{tpu_custom_call.1} parent=1 // loop_header
      %s42 = sphi 0, %s46
      %p43 = scmp.ge.s32.totalorder %s42, 4
      %s52 = sphi 0, %s54
      %s55 = sphi 0, %s52
      %s56 = sphi 0, %s55
      %s72 = sphi 0, %s56
      %s76 = sphi 0, %s76
      %s78 = sphi 0, %s76
      %s79 = sphi 0, %s78
      %s93 = sphi 0, %s79
      %s97 = sphi 0, %s97
      %s99 = sphi 0, %s97
      %s100 = sphi 0, %s99
      %s114 = sphi 0, %s100
      %s118 = sphi 0, %s118
      %s120 = sphi 0, %s118
      %s121 = sphi 0, %s120
      %s135 = sphi 0, %s121
      %s139 = sphi 0, %s139
      %s141 = sphi 0, %s139
      %s142 = sphi 0, %s141
      %s156 = sphi 0, %s142
      %s160 = sphi 0, %s160
      %s162 = sphi 0, %s160
      %s163 = sphi 0, %s162
      %s177 = sphi 0, %s163
      %s181 = sphi 0, %s181
      %s183 = sphi 0, %s181
      %s184 = sphi 0, %s183
      %s198 = sphi 0, %s184
      %s202 = sphi 0, %s202
      %s204 = sphi 0, %s202
      %s205 = sphi 0, %s204
      %s219 = sphi 0, %s205
      %s223 = sphi 0, %s223
      %s225 = sphi 0, %s223
      %s226 = sphi 0, %s225
      %s240 = sphi 0, %s226
      %s244 = sphi 0, %s244
      %s246 = sphi 0, %s244
      %s247 = sphi 0, %s246
      %s261 = sphi 0, %s247
      %s265 = sphi 0, %s265
      %s267 = sphi 0, %s265
      %s268 = sphi 0, %s267
      %s282 = sphi 0, %s268
      %s286 = sphi 0, %s286
      %s288 = sphi 0, %s286
      %s289 = sphi 0, %s288
      %s303 = sphi 0, %s289
      %s307 = sphi 0, %s307
      %s309 = sphi 0, %s307
      %s310 = sphi 0, %s309
      %s324 = sphi 0, %s310
      %s328 = sphi 0, %s328
      %s330 = sphi 0, %s328
      %s331 = sphi 0, %s330
      %s345 = sphi 0, %s331
      %s349 = sphi 0, %s349
      %s351 = sphi 0, %s349
      %s352 = sphi 0, %s351
      %s366 = sphi 0, %s352
      %s370 = sphi 0, %s370
      %s372 = sphi 0, %s370
      %s373 = sphi 0, %s372
      %s387 = sphi 0, %s373
      %s391 = sphi 0, %s391
      %s393 = sphi 0, %s391
      %s394 = sphi 0, %s393
      %s408 = sphi 0, %s394
      %s412 = sphi 0, %s412
      %s414 = sphi 0, %s412
      %s415 = sphi 0, %s414
      %s429 = sphi 0, %s415
      %s433 = sphi 0, %s433
      %s435 = sphi 0, %s433
      %s436 = sphi 0, %s435
      %s450 = sphi 0, %s436
      %s454 = sphi 0, %s454
      %s456 = sphi 0, %s454
      %s457 = sphi 0, %s456
      %s471 = sphi 0, %s457
      %s475 = sphi 0, %s475
      %s477 = sphi 0, %s475
      %s478 = sphi 0, %s477
      %s492 = sphi 0, %s478
      %s496 = sphi 0, %s496
      %s498 = sphi 0, %s496
      %s499 = sphi 0, %s498
      %s513 = sphi 0, %s499
      %s517 = sphi 0, %s517
      %s519 = sphi 0, %s517
      %s520 = sphi 0, %s519
      %s534 = sphi 0, %s520
      %s540 = sphi 0, %s542
      %s543 = sphi 0, %s540
      %s544 = sphi 0, %s543
      %s560 = sphi 0, %s544
      %s566 = sphi 0, %s568
      %s569 = sphi 0, %s566
      %s570 = sphi 0, %s569
      %s586 = sphi 0, %s570
      %s592 = sphi 0, %s594
      %s595 = sphi 0, %s592
      %s596 = sphi 0, %s595
      %s612 = sphi 0, %s596
    $region4: #{tpu_custom_call.1} parent=1 // loop_header_branch
      %45 = sbr.rel (%p43) target = $region8
    $region5: #{tpu_custom_call.1} parent=1 // loop_body
      %s47 = ssub.s32 %s42, 1
      %s48 = ssub.s32 %s42, 2
      %s49 = sadd.s32 %s42, 1
      %s50 = ssub.s32 %s42, %s49
      %p51 = scmp.eq.s32.totalorder %s50, 0
      %s53 = sadd.s32 %s52, 1
      %s54 = scalar_select %p51, %s52, %s53
      %p57 = pneg %p51
      %p58 = scmp.eq.s32.totalorder %s42, 1
      %p59 = por %p57, %p58
      %p60 = scmp.ne.s32.totalorder %s52, %s55
      %p61 = scmp.eq.s32.totalorder %s42, 0
      %p62 = por %p60, %p61
      %p63 = scmp.ne.s32.totalorder %s52, %s55
      %p64 = scmp.eq.s32.totalorder %s47, 1
      %p65 = por %p63, %p64
      %p66 = scmp.ne.s32.totalorder %s55, %s56
      %p67 = scmp.eq.s32.totalorder %s47, 0
      %p68 = por %p66, %p67
      %p69 = scmp.ne.s32.totalorder %s55, %s56
      %p70 = scmp.eq.s32.totalorder %s48, 1
      %p71 = por %p69, %p70
      %p73 = scmp.ne.s32.totalorder %s56, %s72
      %p74 = scmp.eq.s32.totalorder %s48, 0
      %p75 = por %p73, %p74
      %s77 = sadd.s32 %s76, 1
      %p80 = scmp.eq.s32.totalorder %s42, 1
      %p81 = scmp.ne.s32.totalorder %s76, %s78
      %p82 = scmp.eq.s32.totalorder %s42, 0
      %p83 = por %p81, %p82
      %p84 = scmp.ne.s32.totalorder %s76, %s78
      %p85 = scmp.eq.s32.totalorder %s47, 1
      %p86 = por %p84, %p85
      %p87 = scmp.ne.s32.totalorder %s78, %s79
      %p88 = scmp.eq.s32.totalorder %s47, 0
      %p89 = por %p87, %p88
      %p90 = scmp.ne.s32.totalorder %s78, %s79
      %p91 = scmp.eq.s32.totalorder %s48, 1
      %p92 = por %p90, %p91
      %p94 = scmp.ne.s32.totalorder %s79, %s93
      %p95 = scmp.eq.s32.totalorder %s48, 0
      %p96 = por %p94, %p95
      %s98 = sadd.s32 %s97, 1
      %p101 = scmp.eq.s32.totalorder %s42, 1
      %p102 = scmp.ne.s32.totalorder %s97, %s99
      %p103 = scmp.eq.s32.totalorder %s42, 0
      %p104 = por %p102, %p103
      %p105 = scmp.ne.s32.totalorder %s97, %s99
      %p106 = scmp.eq.s32.totalorder %s47, 1
      %p107 = por %p105, %p106
      %p108 = scmp.ne.s32.totalorder %s99, %s100
      %p109 = scmp.eq.s32.totalorder %s47, 0
      %p110 = por %p108, %p109
      %p111 = scmp.ne.s32.totalorder %s99, %s100
      %p112 = scmp.eq.s32.totalorder %s48, 1
      %p113 = por %p111, %p112
      %p115 = scmp.ne.s32.totalorder %s100, %s114
      %p116 = scmp.eq.s32.totalorder %s48, 0
      %p117 = por %p115, %p116
      %s119 = sadd.s32 %s118, 1
      %p122 = scmp.eq.s32.totalorder %s42, 1
      %p123 = scmp.ne.s32.totalorder %s118, %s120
      %p124 = scmp.eq.s32.totalorder %s42, 0
      %p125 = por %p123, %p124
      %p126 = scmp.ne.s32.totalorder %s118, %s120
      %p127 = scmp.eq.s32.totalorder %s47, 1
      %p128 = por %p126, %p127
      %p129 = scmp.ne.s32.totalorder %s120, %s121
      %p130 = scmp.eq.s32.totalorder %s47, 0
      %p131 = por %p129, %p130
      %p132 = scmp.ne.s32.totalorder %s120, %s121
      %p133 = scmp.eq.s32.totalorder %s48, 1
      %p134 = por %p132, %p133
      %p136 = scmp.ne.s32.totalorder %s121, %s135
      %p137 = scmp.eq.s32.totalorder %s48, 0
      %p138 = por %p136, %p137
      %s140 = sadd.s32 %s139, 1
      %p143 = scmp.eq.s32.totalorder %s42, 1
      %p144 = scmp.ne.s32.totalorder %s139, %s141
      %p145 = scmp.eq.s32.totalorder %s42, 0
      %p146 = por %p144, %p145
      %p147 = scmp.ne.s32.totalorder %s139, %s141
      %p148 = scmp.eq.s32.totalorder %s47, 1
      %p149 = por %p147, %p148
      %p150 = scmp.ne.s32.totalorder %s141, %s142
      %p151 = scmp.eq.s32.totalorder %s47, 0
      %p152 = por %p150, %p151
      %p153 = scmp.ne.s32.totalorder %s141, %s142
      %p154 = scmp.eq.s32.totalorder %s48, 1
      %p155 = por %p153, %p154
      %p157 = scmp.ne.s32.totalorder %s142, %s156
      %p158 = scmp.eq.s32.totalorder %s48, 0
      %p159 = por %p157, %p158
      %s161 = sadd.s32 %s160, 1
      %p164 = scmp.eq.s32.totalorder %s42, 1
      %p165 = scmp.ne.s32.totalorder %s160, %s162
      %p166 = scmp.eq.s32.totalorder %s42, 0
      %p167 = por %p165, %p166
      %p168 = scmp.ne.s32.totalorder %s160, %s162
      %p169 = scmp.eq.s32.totalorder %s47, 1
      %p170 = por %p168, %p169
      %p171 = scmp.ne.s32.totalorder %s162, %s163
      %p172 = scmp.eq.s32.totalorder %s47, 0
      %p173 = por %p171, %p172
      %p174 = scmp.ne.s32.totalorder %s162, %s163
      %p175 = scmp.eq.s32.totalorder %s48, 1
      %p176 = por %p174, %p175
      %p178 = scmp.ne.s32.totalorder %s163, %s177
      %p179 = scmp.eq.s32.totalorder %s48, 0
      %p180 = por %p178, %p179
      %s182 = sadd.s32 %s181, 1
      %p185 = scmp.eq.s32.totalorder %s42, 1
      %p186 = scmp.ne.s32.totalorder %s181, %s183
      %p187 = scmp.eq.s32.totalorder %s42, 0
      %p188 = por %p186, %p187
      %p189 = scmp.ne.s32.totalorder %s181, %s183
      %p190 = scmp.eq.s32.totalorder %s47, 1
      %p191 = por %p189, %p190
      %p192 = scmp.ne.s32.totalorder %s183, %s184
      %p193 = scmp.eq.s32.totalorder %s47, 0
      %p194 = por %p192, %p193
      %p195 = scmp.ne.s32.totalorder %s183, %s184
      %p196 = scmp.eq.s32.totalorder %s48, 1
      %p197 = por %p195, %p196
      %p199 = scmp.ne.s32.totalorder %s184, %s198
      %p200 = scmp.eq.s32.totalorder %s48, 0
      %p201 = por %p199, %p200
      %s203 = sadd.s32 %s202, 1
      %p206 = scmp.eq.s32.totalorder %s42, 1
      %p207 = scmp.ne.s32.totalorder %s202, %s204
      %p208 = scmp.eq.s32.totalorder %s42, 0
      %p209 = por %p207, %p208
      %p210 = scmp.ne.s32.totalorder %s202, %s204
      %p211 = scmp.eq.s32.totalorder %s47, 1
      %p212 = por %p210, %p211
      %p213 = scmp.ne.s32.totalorder %s204, %s205
      %p214 = scmp.eq.s32.totalorder %s47, 0
      %p215 = por %p213, %p214
      %p216 = scmp.ne.s32.totalorder %s204, %s205
      %p217 = scmp.eq.s32.totalorder %s48, 1
      %p218 = por %p216, %p217
      %p220 = scmp.ne.s32.totalorder %s205, %s219
      %p221 = scmp.eq.s32.totalorder %s48, 0
      %p222 = por %p220, %p221
      %s224 = sadd.s32 %s223, 1
      %p227 = scmp.eq.s32.totalorder %s42, 1
      %p228 = scmp.ne.s32.totalorder %s223, %s225
      %p229 = scmp.eq.s32.totalorder %s42, 0
      %p230 = por %p228, %p229
      %p231 = scmp.ne.s32.totalorder %s223, %s225
      %p232 = scmp.eq.s32.totalorder %s47, 1
      %p233 = por %p231, %p232
      %p234 = scmp.ne.s32.totalorder %s225, %s226
      %p235 = scmp.eq.s32.totalorder %s47, 0
      %p236 = por %p234, %p235
      %p237 = scmp.ne.s32.totalorder %s225, %s226
      %p238 = scmp.eq.s32.totalorder %s48, 1
      %p239 = por %p237, %p238
      %p241 = scmp.ne.s32.totalorder %s226, %s240
      %p242 = scmp.eq.s32.totalorder %s48, 0
      %p243 = por %p241, %p242
      %s245 = sadd.s32 %s244, 1
      %p248 = scmp.eq.s32.totalorder %s42, 1
      %p249 = scmp.ne.s32.totalorder %s244, %s246
      %p250 = scmp.eq.s32.totalorder %s42, 0
      %p251 = por %p249, %p250
      %p252 = scmp.ne.s32.totalorder %s244, %s246
      %p253 = scmp.eq.s32.totalorder %s47, 1
      %p254 = por %p252, %p253
      %p255 = scmp.ne.s32.totalorder %s246, %s247
      %p256 = scmp.eq.s32.totalorder %s47, 0
      %p257 = por %p255, %p256
      %p258 = scmp.ne.s32.totalorder %s246, %s247
      %p259 = scmp.eq.s32.totalorder %s48, 1
      %p260 = por %p258, %p259
      %p262 = scmp.ne.s32.totalorder %s247, %s261
      %p263 = scmp.eq.s32.totalorder %s48, 0
      %p264 = por %p262, %p263
      %s266 = sadd.s32 %s265, 1
      %p269 = scmp.eq.s32.totalorder %s42, 1
      %p270 = scmp.ne.s32.totalorder %s265, %s267
      %p271 = scmp.eq.s32.totalorder %s42, 0
      %p272 = por %p270, %p271
      %p273 = scmp.ne.s32.totalorder %s265, %s267
      %p274 = scmp.eq.s32.totalorder %s47, 1
      %p275 = por %p273, %p274
      %p276 = scmp.ne.s32.totalorder %s267, %s268
      %p277 = scmp.eq.s32.totalorder %s47, 0
      %p278 = por %p276, %p277
      %p279 = scmp.ne.s32.totalorder %s267, %s268
      %p280 = scmp.eq.s32.totalorder %s48, 1
      %p281 = por %p279, %p280
      %p283 = scmp.ne.s32.totalorder %s268, %s282
      %p284 = scmp.eq.s32.totalorder %s48, 0
      %p285 = por %p283, %p284
      %s287 = sadd.s32 %s286, 1
      %p290 = scmp.eq.s32.totalorder %s42, 1
      %p291 = scmp.ne.s32.totalorder %s286, %s288
      %p292 = scmp.eq.s32.totalorder %s42, 0
      %p293 = por %p291, %p292
      %p294 = scmp.ne.s32.totalorder %s286, %s288
      %p295 = scmp.eq.s32.totalorder %s47, 1
      %p296 = por %p294, %p295
      %p297 = scmp.ne.s32.totalorder %s288, %s289
      %p298 = scmp.eq.s32.totalorder %s47, 0
      %p299 = por %p297, %p298
      %p300 = scmp.ne.s32.totalorder %s288, %s289
      %p301 = scmp.eq.s32.totalorder %s48, 1
      %p302 = por %p300, %p301
      %p304 = scmp.ne.s32.totalorder %s289, %s303
      %p305 = scmp.eq.s32.totalorder %s48, 0
      %p306 = por %p304, %p305
      %s308 = sadd.s32 %s307, 1
      %p311 = scmp.eq.s32.totalorder %s42, 1
      %p312 = scmp.ne.s32.totalorder %s307, %s309
      %p313 = scmp.eq.s32.totalorder %s42, 0
      %p314 = por %p312, %p313
      %p315 = scmp.ne.s32.totalorder %s307, %s309
      %p316 = scmp.eq.s32.totalorder %s47, 1
      %p317 = por %p315, %p316
      %p318 = scmp.ne.s32.totalorder %s309, %s310
      %p319 = scmp.eq.s32.totalorder %s47, 0
      %p320 = por %p318, %p319
      %p321 = scmp.ne.s32.totalorder %s309, %s310
      %p322 = scmp.eq.s32.totalorder %s48, 1
      %p323 = por %p321, %p322
      %p325 = scmp.ne.s32.totalorder %s310, %s324
      %p326 = scmp.eq.s32.totalorder %s48, 0
      %p327 = por %p325, %p326
      %s329 = sadd.s32 %s328, 1
      %p332 = scmp.eq.s32.totalorder %s42, 1
      %p333 = scmp.ne.s32.totalorder %s328, %s330
      %p334 = scmp.eq.s32.totalorder %s42, 0
      %p335 = por %p333, %p334
      %p336 = scmp.ne.s32.totalorder %s328, %s330
      %p337 = scmp.eq.s32.totalorder %s47, 1
      %p338 = por %p336, %p337
      %p339 = scmp.ne.s32.totalorder %s330, %s331
      %p340 = scmp.eq.s32.totalorder %s47, 0
      %p341 = por %p339, %p340
      %p342 = scmp.ne.s32.totalorder %s330, %s331
      %p343 = scmp.eq.s32.totalorder %s48, 1
      %p344 = por %p342, %p343
      %p346 = scmp.ne.s32.totalorder %s331, %s345
      %p347 = scmp.eq.s32.totalorder %s48, 0
      %p348 = por %p346, %p347
      %s350 = sadd.s32 %s349, 1
      %p353 = scmp.eq.s32.totalorder %s42, 1
      %p354 = scmp.ne.s32.totalorder %s349, %s351
      %p355 = scmp.eq.s32.totalorder %s42, 0
      %p356 = por %p354, %p355
      %p357 = scmp.ne.s32.totalorder %s349, %s351
      %p358 = scmp.eq.s32.totalorder %s47, 1
      %p359 = por %p357, %p358
      %p360 = scmp.ne.s32.totalorder %s351, %s352
      %p361 = scmp.eq.s32.totalorder %s47, 0
      %p362 = por %p360, %p361
      %p363 = scmp.ne.s32.totalorder %s351, %s352
      %p364 = scmp.eq.s32.totalorder %s48, 1
      %p365 = por %p363, %p364
      %p367 = scmp.ne.s32.totalorder %s352, %s366
      %p368 = scmp.eq.s32.totalorder %s48, 0
      %p369 = por %p367, %p368
      %s371 = sadd.s32 %s370, 1
      %p374 = scmp.eq.s32.totalorder %s42, 1
      %p375 = scmp.ne.s32.totalorder %s370, %s372
      %p376 = scmp.eq.s32.totalorder %s42, 0
      %p377 = por %p375, %p376
      %p378 = scmp.ne.s32.totalorder %s370, %s372
      %p379 = scmp.eq.s32.totalorder %s47, 1
      %p380 = por %p378, %p379
      %p381 = scmp.ne.s32.totalorder %s372, %s373
      %p382 = scmp.eq.s32.totalorder %s47, 0
      %p383 = por %p381, %p382
      %p384 = scmp.ne.s32.totalorder %s372, %s373
      %p385 = scmp.eq.s32.totalorder %s48, 1
      %p386 = por %p384, %p385
      %p388 = scmp.ne.s32.totalorder %s373, %s387
      %p389 = scmp.eq.s32.totalorder %s48, 0
      %p390 = por %p388, %p389
      %s392 = sadd.s32 %s391, 1
      %p395 = scmp.eq.s32.totalorder %s42, 1
      %p396 = scmp.ne.s32.totalorder %s391, %s393
      %p397 = scmp.eq.s32.totalorder %s42, 0
      %p398 = por %p396, %p397
      %p399 = scmp.ne.s32.totalorder %s391, %s393
      %p400 = scmp.eq.s32.totalorder %s47, 1
      %p401 = por %p399, %p400
      %p402 = scmp.ne.s32.totalorder %s393, %s394
      %p403 = scmp.eq.s32.totalorder %s47, 0
      %p404 = por %p402, %p403
      %p405 = scmp.ne.s32.totalorder %s393, %s394
      %p406 = scmp.eq.s32.totalorder %s48, 1
      %p407 = por %p405, %p406
      %p409 = scmp.ne.s32.totalorder %s394, %s408
      %p410 = scmp.eq.s32.totalorder %s48, 0
      %p411 = por %p409, %p410
      %s413 = sadd.s32 %s412, 1
      %p416 = scmp.eq.s32.totalorder %s42, 1
      %p417 = scmp.ne.s32.totalorder %s412, %s414
      %p418 = scmp.eq.s32.totalorder %s42, 0
      %p419 = por %p417, %p418
      %p420 = scmp.ne.s32.totalorder %s412, %s414
      %p421 = scmp.eq.s32.totalorder %s47, 1
      %p422 = por %p420, %p421
      %p423 = scmp.ne.s32.totalorder %s414, %s415
      %p424 = scmp.eq.s32.totalorder %s47, 0
      %p425 = por %p423, %p424
      %p426 = scmp.ne.s32.totalorder %s414, %s415
      %p427 = scmp.eq.s32.totalorder %s48, 1
      %p428 = por %p426, %p427
      %p430 = scmp.ne.s32.totalorder %s415, %s429
      %p431 = scmp.eq.s32.totalorder %s48, 0
      %p432 = por %p430, %p431
      %s434 = sadd.s32 %s433, 1
      %p437 = scmp.eq.s32.totalorder %s42, 1
      %p438 = scmp.ne.s32.totalorder %s433, %s435
      %p439 = scmp.eq.s32.totalorder %s42, 0
      %p440 = por %p438, %p439
      %p441 = scmp.ne.s32.totalorder %s433, %s435
      %p442 = scmp.eq.s32.totalorder %s47, 1
      %p443 = por %p441, %p442
      %p444 = scmp.ne.s32.totalorder %s435, %s436
      %p445 = scmp.eq.s32.totalorder %s47, 0
      %p446 = por %p444, %p445
      %p447 = scmp.ne.s32.totalorder %s435, %s436
      %p448 = scmp.eq.s32.totalorder %s48, 1
      %p449 = por %p447, %p448
      %p451 = scmp.ne.s32.totalorder %s436, %s450
      %p452 = scmp.eq.s32.totalorder %s48, 0
      %p453 = por %p451, %p452
      %s455 = sadd.s32 %s454, 1
      %p458 = scmp.eq.s32.totalorder %s42, 1
      %p459 = scmp.ne.s32.totalorder %s454, %s456
      %p460 = scmp.eq.s32.totalorder %s42, 0
      %p461 = por %p459, %p460
      %p462 = scmp.ne.s32.totalorder %s454, %s456
      %p463 = scmp.eq.s32.totalorder %s47, 1
      %p464 = por %p462, %p463
      %p465 = scmp.ne.s32.totalorder %s456, %s457
      %p466 = scmp.eq.s32.totalorder %s47, 0
      %p467 = por %p465, %p466
      %p468 = scmp.ne.s32.totalorder %s456, %s457
      %p469 = scmp.eq.s32.totalorder %s48, 1
      %p470 = por %p468, %p469
      %p472 = scmp.ne.s32.totalorder %s457, %s471
      %p473 = scmp.eq.s32.totalorder %s48, 0
      %p474 = por %p472, %p473
      %s476 = sadd.s32 %s475, 1
      %p479 = scmp.eq.s32.totalorder %s42, 1
      %p480 = scmp.ne.s32.totalorder %s475, %s477
      %p481 = scmp.eq.s32.totalorder %s42, 0
      %p482 = por %p480, %p481
      %p483 = scmp.ne.s32.totalorder %s475, %s477
      %p484 = scmp.eq.s32.totalorder %s47, 1
      %p485 = por %p483, %p484
      %p486 = scmp.ne.s32.totalorder %s477, %s478
      %p487 = scmp.eq.s32.totalorder %s47, 0
      %p488 = por %p486, %p487
      %p489 = scmp.ne.s32.totalorder %s477, %s478
      %p490 = scmp.eq.s32.totalorder %s48, 1
      %p491 = por %p489, %p490
      %p493 = scmp.ne.s32.totalorder %s478, %s492
      %p494 = scmp.eq.s32.totalorder %s48, 0
      %p495 = por %p493, %p494
      %s497 = sadd.s32 %s496, 1
      %p500 = scmp.eq.s32.totalorder %s42, 1
      %p501 = scmp.ne.s32.totalorder %s496, %s498
      %p502 = scmp.eq.s32.totalorder %s42, 0
      %p503 = por %p501, %p502
      %p504 = scmp.ne.s32.totalorder %s496, %s498
      %p505 = scmp.eq.s32.totalorder %s47, 1
      %p506 = por %p504, %p505
      %p507 = scmp.ne.s32.totalorder %s498, %s499
      %p508 = scmp.eq.s32.totalorder %s47, 0
      %p509 = por %p507, %p508
      %p510 = scmp.ne.s32.totalorder %s498, %s499
      %p511 = scmp.eq.s32.totalorder %s48, 1
      %p512 = por %p510, %p511
      %p514 = scmp.ne.s32.totalorder %s499, %s513
      %p515 = scmp.eq.s32.totalorder %s48, 0
      %p516 = por %p514, %p515
      %s518 = sadd.s32 %s517, 1
      %p521 = scmp.eq.s32.totalorder %s42, 1
      %p522 = scmp.ne.s32.totalorder %s517, %s519
      %p523 = scmp.eq.s32.totalorder %s42, 0
      %p524 = por %p522, %p523
      %p525 = scmp.ne.s32.totalorder %s517, %s519
      %p526 = scmp.eq.s32.totalorder %s47, 1
      %p527 = por %p525, %p526
      %p528 = scmp.ne.s32.totalorder %s519, %s520
      %p529 = scmp.eq.s32.totalorder %s47, 0
      %p530 = por %p528, %p529
      %p531 = scmp.ne.s32.totalorder %s519, %s520
      %p532 = scmp.eq.s32.totalorder %s48, 1
      %p533 = por %p531, %p532
      %p535 = scmp.ne.s32.totalorder %s520, %s534
      %p536 = scmp.eq.s32.totalorder %s48, 0
      %p537 = por %p535, %p536
      %s538 = ssub.s32 %s42, %s49
      %p539 = scmp.eq.s32.totalorder %s538, 0
      %s541 = sadd.s32 %s540, 1
      %s542 = scalar_select %p539, %s540, %s541
      %p545 = pneg %p539
      %p546 = scmp.eq.s32.totalorder %s42, 1
      %p547 = por %p545, %p546
      %p548 = scmp.ne.s32.totalorder %s540, %s543
      %p549 = scmp.eq.s32.totalorder %s42, 0
      %p550 = por %p548, %p549
      %p551 = scmp.ne.s32.totalorder %s540, %s543
      %p552 = scmp.eq.s32.totalorder %s47, 1
      %p553 = por %p551, %p552
      %p554 = scmp.ne.s32.totalorder %s543, %s544
      %p555 = scmp.eq.s32.totalorder %s47, 0
      %p556 = por %p554, %p555
      %p557 = scmp.ne.s32.totalorder %s543, %s544
      %p558 = scmp.eq.s32.totalorder %s48, 1
      %p559 = por %p557, %p558
      %p561 = scmp.ne.s32.totalorder %s544, %s560
      %p562 = scmp.eq.s32.totalorder %s48, 0
      %p563 = por %p561, %p562
      %s564 = ssub.s32 %s42, %s49
      %p565 = scmp.eq.s32.totalorder %s564, 0
      %s567 = sadd.s32 %s566, 1
      %s568 = scalar_select %p565, %s566, %s567
      %p571 = pneg %p565
      %p572 = scmp.eq.s32.totalorder %s42, 1
      %p573 = por %p571, %p572
      %p574 = scmp.ne.s32.totalorder %s566, %s569
      %p575 = scmp.eq.s32.totalorder %s42, 0
      %p576 = por %p574, %p575
      %p577 = scmp.ne.s32.totalorder %s566, %s569
      %p578 = scmp.eq.s32.totalorder %s47, 1
      %p579 = por %p577, %p578
      %p580 = scmp.ne.s32.totalorder %s569, %s570
      %p581 = scmp.eq.s32.totalorder %s47, 0
      %p582 = por %p580, %p581
      %p583 = scmp.ne.s32.totalorder %s569, %s570
      %p584 = scmp.eq.s32.totalorder %s48, 1
      %p585 = por %p583, %p584
      %p587 = scmp.ne.s32.totalorder %s570, %s586
      %p588 = scmp.eq.s32.totalorder %s48, 0
      %p589 = por %p587, %p588
      %s590 = ssub.s32 %s42, %s49
      %p591 = scmp.eq.s32.totalorder %s590, 0
      %s593 = sadd.s32 %s592, 1
      %s594 = scalar_select %p591, %s592, %s593
      %p597 = pneg %p591
      %p598 = scmp.eq.s32.totalorder %s42, 1
      %p599 = por %p597, %p598
      %p600 = scmp.ne.s32.totalorder %s592, %s595
      %p601 = scmp.eq.s32.totalorder %s42, 0
      %p602 = por %p600, %p601
      %p603 = scmp.ne.s32.totalorder %s592, %s595
      %p604 = scmp.eq.s32.totalorder %s47, 1
      %p605 = por %p603, %p604
      %p606 = scmp.ne.s32.totalorder %s595, %s596
      %p607 = scmp.eq.s32.totalorder %s47, 0
      %p608 = por %p606, %p607
      %p609 = scmp.ne.s32.totalorder %s595, %s596
      %p610 = scmp.eq.s32.totalorder %s48, 1
      %p611 = por %p609, %p610
      %p613 = scmp.ne.s32.totalorder %s596, %s612
      %p614 = scmp.eq.s32.totalorder %s48, 0
      %p615 = por %p613, %p614
      %p616 = scmp.le.s32.totalorder 1, %s42
      %p617 = scmp.lt.s32.totalorder %s42, 3
      %p618 = pnand %p616, %p617
      %p619 = pneg %p618
      // Predicated region
      $region9: #{tpu_custom_call.1} parent=5 // pred_check
        _
      $region10: #{tpu_custom_call.1} parent=5 // pred_check_branch
        %621 = sbr.rel (%p618) target = $region12
      $region11: #{tpu_custom_call.1} parent=5 // pred_region
        %s622 = ssub.s32 %s42, 1
        // Predicated region
        $region13: #{tpu_custom_call.1} parent=11 // pred_check
          %p623 = pneg %p89
        $region14: #{tpu_custom_call.1} parent=11 // pred_check_branch
          %625 = sbr.rel (%p623) target = $region16
        $region15: #{tpu_custom_call.1} parent=11 // pred_region
          %s627 = ssub.s32 256, 256
          %628 = vsyncadd [#allocation6], %s627
          %s629 = sshll.u32 [#allocation5], 4
          %s630 = int_to_ptr.vmem [resolvable:$true] %s629
          %635 = dma.hbm_to_vmem [thread:$0]  %s1, 256, %s630, [#allocation6], 128, 128, 8
        $region16: #{tpu_custom_call.1} parent=11 // pred_fallthru
          _
        // Predicated region
        $region17: #{tpu_custom_call.1} parent=11 // pred_check
          %p636 = pneg %p110
        $region18: #{tpu_custom_call.1} parent=11 // pred_check_branch
          %638 = sbr.rel (%p636) target = $region20
        $region19: #{tpu_custom_call.1} parent=11 // pred_region
          _
        $region20: #{tpu_custom_call.1} parent=11 // pred_fallthru
          _
        // Predicated region
        $region21: #{tpu_custom_call.1} parent=11 // pred_check
          %p639 = pneg %p131
        $region22: #{tpu_custom_call.1} parent=11 // pred_check_branch
          %641 = sbr.rel (%p639) target = $region24
        $region23: #{tpu_custom_call.1} parent=11 // pred_region
          _
        $region24: #{tpu_custom_call.1} parent=11 // pred_fallthru
          _
        // Predicated region
        $region25: #{tpu_custom_call.1} parent=11 // pred_check
          %p642 = pneg %p152
        $region26: #{tpu_custom_call.1} parent=11 // pred_check_branch
          %644 = sbr.rel (%p642) target = $region28
        $region27: #{tpu_custom_call.1} parent=11 // pred_region
          _
        $region28: #{tpu_custom_call.1} parent=11 // pred_fallthru
          _
        // Predicated region
        $region29: #{tpu_custom_call.1} parent=11 // pred_check
          %p645 = pneg %p173
        $region30: #{tpu_custom_call.1} parent=11 // pred_check_branch
          %647 = sbr.rel (%p645) target = $region32
        $region31: #{tpu_custom_call.1} parent=11 // pred_region
          %s649 = ssub.s32 32, 32
          %650 = vsyncadd [#allocation6], %s649
          %s652 = sshll.u32 [#allocation7], 4
          %s653 = int_to_ptr.vmem [resolvable:$true] %s652
          %655 = dma.hbm_to_vmem [thread:$0]  %s5, 32, %s653, [#allocation6]
        $region32: #{tpu_custom_call.1} parent=11 // pred_fallthru
          _
        // Predicated region
        $region33: #{tpu_custom_call.1} parent=11 // pred_check
          %p656 = pneg %p194
        $region34: #{tpu_custom_call.1} parent=11 // pred_check_branch
          %658 = sbr.rel (%p656) target = $region36
        $region35: #{tpu_custom_call.1} parent=11 // pred_region
          _
        $region36: #{tpu_custom_call.1} parent=11 // pred_fallthru
          _
        // Predicated region
        $region37: #{tpu_custom_call.1} parent=11 // pred_check
          %p659 = pneg %p215
        $region38: #{tpu_custom_call.1} parent=11 // pred_check_branch
          %661 = sbr.rel (%p659) target = $region40
        $region39: #{tpu_custom_call.1} parent=11 // pred_region
          _
        $region40: #{tpu_custom_call.1} parent=11 // pred_fallthru
          _
        // Predicated region
        $region41: #{tpu_custom_call.1} parent=11 // pred_check
          %p662 = pneg %p236
        $region42: #{tpu_custom_call.1} parent=11 // pred_check_branch
          %664 = sbr.rel (%p662) target = $region44
        $region43: #{tpu_custom_call.1} parent=11 // pred_region
          _
        $region44: #{tpu_custom_call.1} parent=11 // pred_fallthru
          _
        // Predicated region
        $region45: #{tpu_custom_call.1} parent=11 // pred_check
          %p665 = pneg %p257
        $region46: #{tpu_custom_call.1} parent=11 // pred_check_branch
          %667 = sbr.rel (%p665) target = $region48
        $region47: #{tpu_custom_call.1} parent=11 // pred_region
          _
        $region48: #{tpu_custom_call.1} parent=11 // pred_fallthru
          _
        // Predicated region
        $region49: #{tpu_custom_call.1} parent=11 // pred_check
          %p668 = pneg %p278
        $region50: #{tpu_custom_call.1} parent=11 // pred_check_branch
          %670 = sbr.rel (%p668) target = $region52
        $region51: #{tpu_custom_call.1} parent=11 // pred_region
          _
        $region52: #{tpu_custom_call.1} parent=11 // pred_fallthru
          _
        // Predicated region
        $region53: #{tpu_custom_call.1} parent=11 // pred_check
          %p671 = pneg %p299
        $region54: #{tpu_custom_call.1} parent=11 // pred_check_branch
          %673 = sbr.rel (%p671) target = $region56
        $region55: #{tpu_custom_call.1} parent=11 // pred_region
          _
        $region56: #{tpu_custom_call.1} parent=11 // pred_fallthru
          _
        // Predicated region
        $region57: #{tpu_custom_call.1} parent=11 // pred_check
          %p674 = pneg %p320
        $region58: #{tpu_custom_call.1} parent=11 // pred_check_branch
          %676 = sbr.rel (%p674) target = $region60
        $region59: #{tpu_custom_call.1} parent=11 // pred_region
          _
        $region60: #{tpu_custom_call.1} parent=11 // pred_fallthru
          _
        // Predicated region
        $region61: #{tpu_custom_call.1} parent=11 // pred_check
          %p677 = pneg %p341
        $region62: #{tpu_custom_call.1} parent=11 // pred_check_branch
          %679 = sbr.rel (%p677) target = $region64
        $region63: #{tpu_custom_call.1} parent=11 // pred_region
          _
        $region64: #{tpu_custom_call.1} parent=11 // pred_fallthru
          _
        // Predicated region
        $region65: #{tpu_custom_call.1} parent=11 // pred_check
          %p680 = pneg %p362
        $region66: #{tpu_custom_call.1} parent=11 // pred_check_branch
          %682 = sbr.rel (%p680) target = $region68
        $region67: #{tpu_custom_call.1} parent=11 // pred_region
          _
        $region68: #{tpu_custom_call.1} parent=11 // pred_fallthru
          _
        // Predicated region
        $region69: #{tpu_custom_call.1} parent=11 // pred_check
          %p683 = pneg %p383
        $region70: #{tpu_custom_call.1} parent=11 // pred_check_branch
          %685 = sbr.rel (%p683) target = $region72
        $region71: #{tpu_custom_call.1} parent=11 // pred_region
          _
        $region72: #{tpu_custom_call.1} parent=11 // pred_fallthru
          _
        // Predicated region
        $region73: #{tpu_custom_call.1} parent=11 // pred_check
          %p686 = pneg %p404
        $region74: #{tpu_custom_call.1} parent=11 // pred_check_branch
          %688 = sbr.rel (%p686) target = $region76
        $region75: #{tpu_custom_call.1} parent=11 // pred_region
          _
        $region76: #{tpu_custom_call.1} parent=11 // pred_fallthru
          _
        // Predicated region
        $region77: #{tpu_custom_call.1} parent=11 // pred_check
          %p689 = pneg %p425
        $region78: #{tpu_custom_call.1} parent=11 // pred_check_branch
          %691 = sbr.rel (%p689) target = $region80
        $region79: #{tpu_custom_call.1} parent=11 // pred_region
          _
        $region80: #{tpu_custom_call.1} parent=11 // pred_fallthru
          _
        // Predicated region
        $region81: #{tpu_custom_call.1} parent=11 // pred_check
          %p692 = pneg %p446
        $region82: #{tpu_custom_call.1} parent=11 // pred_check_branch
          %694 = sbr.rel (%p692) target = $region84
        $region83: #{tpu_custom_call.1} parent=11 // pred_region
          _
        $region84: #{tpu_custom_call.1} parent=11 // pred_fallthru
          _
        // Predicated region
        $region85: #{tpu_custom_call.1} parent=11 // pred_check
          %p695 = pneg %p467
        $region86: #{tpu_custom_call.1} parent=11 // pred_check_branch
          %697 = sbr.rel (%p695) target = $region88
        $region87: #{tpu_custom_call.1} parent=11 // pred_region
          _
        $region88: #{tpu_custom_call.1} parent=11 // pred_fallthru
          _
        // Predicated region
        $region89: #{tpu_custom_call.1} parent=11 // pred_check
          %p698 = pneg %p488
        $region90: #{tpu_custom_call.1} parent=11 // pred_check_branch
          %700 = sbr.rel (%p698) target = $region92
        $region91: #{tpu_custom_call.1} parent=11 // pred_region
          _
        $region92: #{tpu_custom_call.1} parent=11 // pred_fallthru
          _
        // Predicated region
        $region93: #{tpu_custom_call.1} parent=11 // pred_check
          %p701 = pneg %p509
        $region94: #{tpu_custom_call.1} parent=11 // pred_check_branch
          %703 = sbr.rel (%p701) target = $region96
        $region95: #{tpu_custom_call.1} parent=11 // pred_region
          _
        $region96: #{tpu_custom_call.1} parent=11 // pred_fallthru
          _
        // Predicated region
        $region97: #{tpu_custom_call.1} parent=11 // pred_check
          %p704 = pneg %p530
        $region98: #{tpu_custom_call.1} parent=11 // pred_check_branch
          %706 = sbr.rel (%p704) target = $region100
        $region99: #{tpu_custom_call.1} parent=11 // pred_region
          _
        $region100: #{tpu_custom_call.1} parent=11 // pred_fallthru
          _
      $region12: #{tpu_custom_call.1} parent=5 // pred_fallthru
        _
      %p707 = scmp.lt.s32.totalorder %s42, 2
      // Predicated region
      $region101: #{tpu_custom_call.1} parent=5 // pred_check
        %p708 = pneg %p707
      $region102: #{tpu_custom_call.1} parent=5 // pred_check_branch
        %710 = sbr.rel (%p708) target = $region104
      $region103: #{tpu_custom_call.1} parent=5 // pred_region
        // Predicated region
        $region105: #{tpu_custom_call.1} parent=103 // pred_check
          %p711 = pneg %p62
        $region106: #{tpu_custom_call.1} parent=103 // pred_check_branch
          %713 = sbr.rel (%p711) target = $region108
        $region107: #{tpu_custom_call.1} parent=103 // pred_region
          %s714 = sand.u32 %s52, 1
          %s715 = scalar_lea.sflag [#allocation3], %s714
          %s716 = sand.u32 %s52, 1
          %s717 = smul.addr %s716, 8
          %s718 = scalar_lea.vmem [#allocation2], %s717
          %s720 = ssub.s32 128, 128
          %721 = vsyncadd %s715, %s720
          %s722 = smul.addr %s42, 2
          %s723 = smul.addr %s722, 64
          %s724 = scalar_lea.hbm %s0, %s723
          %s726 = sshll.u32 %s718, 4
          %s727 = int_to_ptr.vmem [resolvable:$true] %s726
          %729 = dma.hbm_to_vmem [thread:$0]  %s724, 128, %s727, %s715
        $region108: #{tpu_custom_call.1} parent=103 // pred_fallthru
          _
      $region104: #{tpu_custom_call.1} parent=5 // pred_fallthru
        _
      %p730 = scmp.le.s32.totalorder 1, %s42
      %p731 = scmp.lt.s32.totalorder %s42, 3
      %p732 = pnand %p730, %p731
      %p733 = pneg %p732
      // Predicated region
      $region109: #{tpu_custom_call.1} parent=5 // pred_check
        _
      $region110: #{tpu_custom_call.1} parent=5 // pred_check_branch
        %735 = sbr.rel (%p732) target = $region112
      $region111: #{tpu_custom_call.1} parent=5 // pred_region
        %s736 = ssub.s32 %s42, 1
        %s737 = sand.u32 %s55, 1
        %s738 = scalar_lea.sflag [#allocation3], %s737
        %s739 = sand.u32 %s55, 1
        %s740 = smul.addr %s739, 8
        %s741 = scalar_lea.vmem [#allocation2], %s740
        // Predicated region
        $region113: #{tpu_custom_call.1} parent=111 // pred_check
          %p742 = pneg %p68
        $region114: #{tpu_custom_call.1} parent=111 // pred_check_branch
          %744 = sbr.rel (%p742) target = $region116
        $region115: #{tpu_custom_call.1} parent=111 // pred_region
          %745 = dma.done %s738, 128
        $region116: #{tpu_custom_call.1} parent=111 // pred_fallthru
          _
        // Predicated region
        $region117: #{tpu_custom_call.1} parent=111 // pred_check
          %p746 = pneg %p89
        $region118: #{tpu_custom_call.1} parent=111 // pred_check_branch
          %748 = sbr.rel (%p746) target = $region120
        $region119: #{tpu_custom_call.1} parent=111 // pred_region
          %749 = dma.done [#allocation6], 256
        $region120: #{tpu_custom_call.1} parent=111 // pred_fallthru
          _
        // Predicated region
        $region121: #{tpu_custom_call.1} parent=111 // pred_check
          %p750 = pneg %p173
        $region122: #{tpu_custom_call.1} parent=111 // pred_check_branch
          %752 = sbr.rel (%p750) target = $region124
        $region123: #{tpu_custom_call.1} parent=111 // pred_region
          %753 = dma.done [#allocation6], 32
        $region124: #{tpu_custom_call.1} parent=111 // pred_fallthru
          _
        %s754 = sand.u32 %s55, 1
        %s755 = scalar_lea.sflag [#allocation3], %s754
        %s756 = sand.u32 %s55, 1
        %s757 = smul.addr %s756, 8
        %s758 = scalar_lea.vmem [#allocation2], %s757
        %p759 = pneg %p68
        %p760 = pneg %p65
        %p761 = pneg %p89
        %p762 = pneg %p86
        %p763 = pneg %p110
        %p764 = pneg %p107
        %p765 = pneg %p131
        %p766 = pneg %p128
        %p767 = pneg %p152
        %p768 = pneg %p149
        %p769 = pneg %p173
        %p770 = pneg %p170
        %p771 = pneg %p194
        %p772 = pneg %p191
        %p773 = pneg %p215
        %p774 = pneg %p212
        %p775 = pneg %p236
        %p776 = pneg %p233
        %p777 = pneg %p257
        %p778 = pneg %p254
        %p779 = pneg %p278
        %p780 = pneg %p275
        %p781 = pneg %p299
        %p782 = pneg %p296
        %p783 = pneg %p320
        %p784 = pneg %p317
        %p785 = pneg %p341
        %p786 = pneg %p338
        %p787 = pneg %p362
        %p788 = pneg %p359
        %p789 = pneg %p383
        %p790 = pneg %p380
        %p791 = pneg %p404
        %p792 = pneg %p401
        %p793 = pneg %p425
        %p794 = pneg %p422
        %p795 = pneg %p446
        %p796 = pneg %p443
        %p797 = pneg %p467
        %p798 = pneg %p464
        %p799 = pneg %p488
        %p800 = pneg %p485
        %p801 = pneg %p509
        %p802 = pneg %p506
        %p803 = pneg %p530
        %p804 = pneg %p527
        %p805 = pneg %p556
        %p806 = pneg %p553
        %s807 = sand.u32 %s543, 1
        %s808 = scalar_lea.sflag [#allocation4], %s807
        %s809 = sand.u32 %s543, 1
        %s810 = smul.addr %s809, 32
        %s811 = scalar_lea.vmem [#allocation8], %s810
        %p812 = pneg %p582
        %p813 = pneg %p579
        %s814 = sand.u32 %s47, 1
        %s815 = scalar_lea.sflag [#allocation10], %s814
        %s816 = sand.u32 %s569, 1
        %s817 = smul.addr %s816, 32
        %s818 = scalar_lea.vmem [#allocation9], %s817
        %p819 = pneg %p608
        %p820 = pneg %p605
        %s821 = sand.u32 %s47, 1
        %s822 = scalar_lea.sflag [#allocation10], %s821
        %s823 = sand.u32 %s595, 1
        %s824 = smul.addr %s823, 32
        %s825 = scalar_lea.vmem [#allocation11], %s824
        %v827 = vld [vmem:[#allocation5] sm:$0xff]
        %v828 = vld [vmem:[#allocation5 + $0x8] sm:$0xff]
        %v829 = vld [vmem:[%s741] sm:$0xff]
        %v830 = vld [vmem:[%s2] sm:$0xff]
        %v831 = vld [vmem:[%s2 + $0x8] sm:$0xff]
        %v832 = vld [vmem:[%s2 + $0x10] sm:$0x3]
        %v833 = vld [vmem:[%s2 + $0x18] sm:$0x3]
        %v834 = vlaneseq
        %v835 = vshrl.u32 %v834, 7
        %v836 = vsub.s32 0, %v835
        %v837 = vrot.slane %v830, %v836
        %v838 = vlaneseq
        %v839 = vshrl.u32 %v838, 7
        %v840 = vsub.s32 0, %v839
        %v841 = vrot.slane %v831, %v840
        %v844 = vcombine.low %v837, %v841
        %v846 = vmul.f32 %v829, %v844
        %v848 = vcombine.high %v846, %v846
        %vm850 = vcmask 1043456
        %v851 = vsel %vm850, %v846, 0.0
        %v852 = vsel %vm850, %v848, 0.0
        %v853 = vadd.f32 %v851, %v852
        %854 = vadd.xlane.f32.xlu0 %v853
        %v855 = vpop.xlane.xlu0 %854
        %v856 = vmul.f32 %v855, 0.00390625
        %v857 = vld [vmem:[%s4] sm:$0xf]
        %v858 = vmul.f32 %v857, %v856
        %vm859 = vcmask 11264
        %v860 = vsel %vm859, %v858, 0.0
        %v861 = vrot.slane %v860, 4
        %v862 = vadd.f32 %v860, %v861
        %v863 = vrot.slane %v862, 2
        %v864 = vadd.f32 %v862, %v863
        %v865 = vrot.slane %v864, 1
        %v866 = vadd.f32 %v864, %v865
        %v867 = vmax.f32 %v866, 0.0
        %v868 = vld [vmem:[#allocation7] sm:$0x3]
        %v869 = vmul.f32 %v868, %v867
        %vm870 = vcmask 9216
        %v871 = vsel %vm870, %v869, 0.0
        %872 = vadd.xlane.f32.xlu0 %v871
        %v873 = vpop.xlane.xlu0 %872
        %v874 = vld [vmem:[%s6] sm:$0x3]
        %v875 = vadd.f32 %v873, %v874
        %v876 = vmul.f32 %v875, 0.033333335
        %vm877 = vcmask 1024
        %v878 = vsel %vm877, %v876, -inf
        %v879 = vrot.slane %v878, 4
        %v880 = vmax.f32 %v878, %v879
        %v881 = vrot.slane %v880, 2
        %v882 = vmax.f32 %v880, %v881
        %v883 = vrot.slane %v882, 1
        %v884 = vmax.f32 %v882, %v883
        %v885 = vsub.f32 %v876, %v884
        %v886 = vmul.f32 %v885, 1.442695
        %v887 = vpow.pop %v886
        %v888 = vsel %vm877, %v887, 0.0
        %v889 = vrot.slane %v888, 4
        %v890 = vadd.f32 %v888, %v889
        %v891 = vrot.slane %v890, 2
        %v892 = vadd.f32 %v890, %v891
        %v893 = vrot.slane %v892, 1
        %v894 = vadd.f32 %v892, %v893
        %v895 = vrcp.pop %v894
        %v896 = vmul.f32 %v887, %v895
        %v898 = vcombine.high %v829, %v829
        %900 = vrot.lane.b32.xlu0 %v829, 17
        %v901 = vpop.permute.xlu0 %900
        %902 = vrot.lane.b32.xlu0 %v898, 17
        %v903 = vpop.permute.xlu0 %902
        %v904 = vlaneseq
        %v905 = vand.u32 %v904, 127
        %vm906 = vcmp.lt.s32.totalorder %v905, 17
        %v907 = vsel %vm906, %v901, %v903
        %v908 = vsel %vm906, %v903, %v901
        %v909 = vlaneseq
        %v910 = vshrl.u32 %v909, 7
        %v911 = vsub.s32 1, %v910
        %v912 = vrot.slane %v830, %v911
        %v913 = vlaneseq
        %v914 = vshrl.u32 %v913, 7
        %v915 = vsub.s32 1, %v914
        %v916 = vrot.slane %v831, %v915
        %v917 = vmul.f32 %v908, %v912
        %v918 = vmul.f32 %v907, %v916
        %919 = vrot.lane.b32.xlu0 %v829, 16
        %v920 = vpop.permute.xlu0 %919
        %921 = vrot.lane.b32.xlu0 %v898, 16
        %v922 = vpop.permute.xlu0 %921
        %vm923 = vcmp.lt.s32.totalorder %v905, 16
        %v924 = vsel %vm923, %v920, %v922
        %v925 = vsel %vm923, %v922, %v920
        %v926 = vlaneseq
        %v927 = vshrl.u32 %v926, 7
        %v928 = vsub.s32 2, %v927
        %v929 = vrot.slane %v830, %v928
        %v930 = vlaneseq
        %v931 = vshrl.u32 %v930, 7
        %v932 = vsub.s32 2, %v931
        %v933 = vrot.slane %v831, %v932
        %v934 = vmul.f32 %v925, %v929
        %v935 = vmul.f32 %v924, %v933
        %936 = vrot.lane.b32.xlu0 %v829, 15
        %v937 = vpop.permute.xlu0 %936
        %938 = vrot.lane.b32.xlu0 %v898, 15
        %v939 = vpop.permute.xlu0 %938
        %vm940 = vcmp.lt.s32.totalorder %v905, 15
        %v941 = vsel %vm940, %v937, %v939
        %v942 = vsel %vm940, %v939, %v937
        %v943 = vlaneseq
        %v944 = vshrl.u32 %v943, 7
        %v945 = vsub.s32 3, %v944
        %v946 = vrot.slane %v830, %v945
        %v947 = vlaneseq
        %v948 = vshrl.u32 %v947, 7
        %v949 = vsub.s32 3, %v948
        %v950 = vrot.slane %v831, %v949
        %v951 = vmul.f32 %v942, %v946
        %v952 = vmul.f32 %v941, %v950
        %953 = vrot.lane.b32.xlu0 %v829, 1
        %v954 = vpop.permute.xlu0 %953
        %955 = vrot.lane.b32.xlu0 %v898, 1
        %v956 = vpop.permute.xlu0 %955
        %vm957 = vcmp.lt.s32.totalorder %v905, 1
        %v958 = vsel %vm957, %v954, %v956
        %v959 = vsel %vm957, %v956, %v954
        %v960 = vlaneseq
        %v961 = vshrl.u32 %v960, 7
        %v962 = vsub.s32 4, %v961
        %v963 = vrot.slane %v830, %v962
        %v964 = vlaneseq
        %v965 = vshrl.u32 %v964, 7
        %v966 = vsub.s32 4, %v965
        %v967 = vrot.slane %v831, %v966
        %v968 = vmul.f32 %v959, %v963
        %v969 = vmul.f32 %v958, %v967
        %v970 = vlaneseq
        %v971 = vshrl.u32 %v970, 7
        %v972 = vsub.s32 5, %v971
        %v973 = vrot.slane %v830, %v972
        %v974 = vlaneseq
        %v975 = vshrl.u32 %v974, 7
        %v976 = vsub.s32 5, %v975
        %v977 = vrot.slane %v831, %v976
        %v980 = vcombine.low %v973, %v977
        %v982 = vmul.f32 %v829, %v980
        %983 = vrot.lane.b32.xlu0 %v829, 127
        %v984 = vpop.permute.xlu0 %983
        %985 = vrot.lane.b32.xlu0 %v898, 127
        %v986 = vpop.permute.xlu0 %985
        %vm987 = vcmp.lt.s32.totalorder %v905, 127
        %v988 = vsel %vm987, %v984, %v986
        %v989 = vsel %vm987, %v986, %v984
        %v990 = vlaneseq
        %v991 = vshrl.u32 %v990, 7
        %v992 = vsub.s32 6, %v991
        %v993 = vrot.slane %v830, %v992
        %v994 = vlaneseq
        %v995 = vshrl.u32 %v994, 7
        %v996 = vsub.s32 6, %v995
        %v997 = vrot.slane %v831, %v996
        %v998 = vmul.f32 %v988, %v993
        %v999 = vmul.f32 %v989, %v997
        %1000 = vrot.lane.b32.xlu0 %v829, 113
        %v1001 = vpop.permute.xlu0 %1000
        %1002 = vrot.lane.b32.xlu0 %v898, 113
        %v1003 = vpop.permute.xlu0 %1002
        %vm1004 = vcmp.lt.s32.totalorder %v905, 113
        %v1005 = vsel %vm1004, %v1001, %v1003
        %v1006 = vsel %vm1004, %v1003, %v1001
        %v1007 = vlaneseq
        %v1008 = vshrl.u32 %v1007, 7
        %v1009 = vsub.s32 7, %v1008
        %v1010 = vrot.slane %v830, %v1009
        %v1011 = vlaneseq
        %v1012 = vshrl.u32 %v1011, 7
        %v1013 = vsub.s32 7, %v1012
        %v1014 = vrot.slane %v831, %v1013
        %v1015 = vmul.f32 %v1005, %v1010
        %v1016 = vmul.f32 %v1006, %v1014
        %1017 = vrot.lane.b32.xlu0 %v829, 112
        %v1018 = vpop.permute.xlu0 %1017
        %1019 = vrot.lane.b32.xlu0 %v898, 112
        %v1020 = vpop.permute.xlu0 %1019
        %vm1021 = vcmp.lt.s32.totalorder %v905, 112
        %v1022 = vsel %vm1021, %v1018, %v1020
        %v1023 = vsel %vm1021, %v1020, %v1018
        %v1024 = vlaneseq
        %v1025 = vshrl.u32 %v1024, 7
        %v1026 = vsub.s32 0, %v1025
        %v1027 = vrot.slane %v832, %v1026
        %v1028 = vlaneseq
        %v1029 = vshrl.u32 %v1028, 7
        %v1030 = vsub.s32 0, %v1029
        %v1031 = vrot.slane %v833, %v1030
        %v1032 = vmul.f32 %v1022, %v1027
        %v1033 = vmul.f32 %v1023, %v1031
        %1034 = vrot.lane.b32.xlu0 %v829, 111
        %v1035 = vpop.permute.xlu0 %1034
        %1036 = vrot.lane.b32.xlu0 %v898, 111
        %v1037 = vpop.permute.xlu0 %1036
        %vm1038 = vcmp.lt.s32.totalorder %v905, 111
        %v1039 = vsel %vm1038, %v1035, %v1037
        %v1040 = vsel %vm1038, %v1037, %v1035
        %v1041 = vlaneseq
        %v1042 = vshrl.u32 %v1041, 7
        %v1043 = vsub.s32 1, %v1042
        %v1044 = vrot.slane %v832, %v1043
        %v1045 = vlaneseq
        %v1046 = vshrl.u32 %v1045, 7
        %v1047 = vsub.s32 1, %v1046
        %v1048 = vrot.slane %v833, %v1047
        %v1049 = vmul.f32 %v1039, %v1044
        %v1050 = vmul.f32 %v1040, %v1048
        %v1053 = vrot.slane %v934, 4
        %v1054 = vrot.slane %v935, 4
        %v1059 = vrot.slane %v968, 4
        %v1060 = vrot.slane %v969, 4
        %v1064 = vcombine.high %v982, %v982
        %v1068 = vrot.slane %v998, 4
        %v1069 = vrot.slane %v999, 4
        %v1074 = vrot.slane %v1032, 4
        %v1075 = vrot.slane %v1033, 4
        %v1078 = vsel %vm850, %v917, %v1053
        %v1079 = vsel %vm850, %v918, %v1054
        %v1080 = vsel %vm850, %v951, %v1059
        %v1081 = vsel %vm850, %v952, %v1060
        %v1082 = vsel %vm850, %v982, %v1068
        %v1083 = vsel %vm850, %v1064, %v1069
        %v1084 = vsel %vm850, %v1015, %v1074
        %v1085 = vsel %vm850, %v1016, %v1075
        %v1086 = vpack.c.bf16 %v1080, %v1078
        %v1087 = vpack.c.bf16 %v1081, %v1079
        %v1088 = vpack.c.bf16 %v1084, %v1082
        %v1089 = vpack.c.bf16 %v1085, %v1083
        %v1090 = vpack.c.bf16 %v1049, %v1049
        %v1091 = vpack.c.bf16 %v1050, %v1050
        %v1092 = vld [vmem:[%s3] sm:$0xf]
        %v1093 = vld [vmem:[%s3 + $0x4] sm:$0xf]
        %v1094 = vld [vmem:[%s3 + $0x8] sm:$0xf]
        %v1095 = vld [vmem:[%s3 + $0xc] sm:$0xf]
        %v1100 = vunpack.c.l.b16 %v1092
        %v1101 = vunpack.c.l.b16 %v1093
        %v1102 = vunpack.c.l.b16 %v1094
        %v1103 = vunpack.c.l.b16 %v1095
        %v1104 = vpack.c.b16 %v1101, %v1100
        %v1105 = vpack.c.b16 %v1103, %v1102
        %vm1106 = vcmask 293888
        %v1108 = vsel %vm1106, %v1104, 0
        %v1111 = vsel %vm1106, %v1105, 0
        %vm1113 = vcmask 1041408
        %v1115 = vsel %vm1113, %v1090, 0
        %v1118 = vsel %vm1113, %v1091, 0
        %1120 = vmatprep.subr.bf16.mxu0 %v1087
        %1121 = vmatpush1.bf16.msra.mxu0 %v1086
        %1122 = vmatprep.subr.bf16.mxu0 %v1089
        %1123 = vmatpush1.bf16.msra.mxu0 %v1088
        %1124 = vmatprep.subr.bf16.mxu0 %v1118
        %1125 = vmatpush1.bf16.msra.mxu0 %v1115
        %1126 = vmatprep.subr.bf16.mxu0 0
        %1127 = vmatpush1.bf16.msra.mxu0 0
        %1128 = vmatprep.subr.bf16.mxu0 0
        %1129 = vmatpush1.bf16.msra.mxu0 0
        %1130 = vmatprep.subr.bf16.mxu0 0
        %1131 = vmatpush1.bf16.msra.mxu0 0
        %1132 = vmatprep.subr.bf16.mxu0 0
        %1133 = vmatpush1.bf16.msra.mxu0 0
        %1134 = vmatprep.subr.bf16.mxu0 0
        %1135 = vmatpush1.bf16.msra.mxu0 0
        %1136 = vmatprep.subr.bf16.mxu0 0
        %1137 = vmatpush1.bf16.msra.mxu0 0
        %1138 = vmatprep.subr.bf16.mxu0 0
        %1139 = vmatpush1.bf16.msra.mxu0 0
        %1140 = vmatprep.subr.bf16.mxu0 0
        %1141 = vmatpush1.bf16.msra.mxu0 0
        %1142 = vmatprep.subr.bf16.mxu0 0
        %1143 = vmatpush1.bf16.msra.mxu0 0
        %1144 = vmatprep.subr.bf16.mxu0 0
        %1145 = vmatpush1.bf16.msra.mxu0 0
        %1146 = vmatprep.subr.bf16.mxu0 0
        %1147 = vmatpush1.bf16.msra.mxu0 0
        %1148 = vmatprep.subr.bf16.mxu0 0
        %1149 = vmatpush1.bf16.msra.mxu0 0
        %1150 = vmatprep.subr.bf16.mxu0 0
        %1151 = vmatpush1.bf16.msra.mxu0 0
        %1152 = vmatprep.mubr.bf16.mxu0 0
        %1153 = vmatmul.mubr.bf16.gmra.mrb[0].mxu0 %v1108
        %v1154 = vpop.f32.mrb[0].mxu0
        %v1155 = vadd.f32 0.0, %v1154
        %v1156 = vpop.f32.mrb[0].mxu0
        %v1157 = vadd.f32 0.0, %v1156
        %v1158 = vpop.f32.mrb[0].mxu0
        %v1159 = vadd.f32 0.0, %v1158
        %v1160 = vpop.f32.mrb[0].mxu0
        %v1161 = vadd.f32 0.0, %v1160
        %1162 = vmatprep.mubr.bf16.mxu0 0
        %1163 = vmatmul.mubr.bf16.gmra.mrb[0].mxu0 %v1111
        %v1164 = vpop.f32.mrb[0].mxu0
        %v1165 = vadd.f32 0.0, %v1164
        %v1166 = vpop.f32.mrb[0].mxu0
        %v1167 = vadd.f32 0.0, %v1166
        %v1168 = vpop.f32.mrb[0].mxu0
        %v1169 = vadd.f32 0.0, %v1168
        %v1170 = vpop.f32.mrb[0].mxu0
        %v1171 = vadd.f32 0.0, %v1170
        %1172 = vdwg.mxu0
        %s1174 = vtos %v896
        %v1175 = vstv %s1174
        %v1177 = vmul.f32 %v1155, %v1175
        %v1178 = vmul.f32 %v1157, %v1175
        %v1179 = vmul.f32 %v1159, %v1175
        %v1180 = vmul.f32 %v1161, %v1175
        %v1181 = vrot.slane %v896, 1
        %s1182 = vtos %v1181
        %v1183 = vstv %s1182
        %v1185 = vmul.f32 %v1165, %v1183
        %v1186 = vmul.f32 %v1167, %v1183
        %v1187 = vmul.f32 %v1169, %v1183
        %v1188 = vmul.f32 %v1171, %v1183
        %v1189 = vadd.f32 %v1177, %v1185
        %v1190 = vadd.f32 %v1178, %v1186
        %v1191 = vadd.f32 %v1179, %v1187
        %v1192 = vadd.f32 %v1180, %v1188
        %v1193 = vmul.f32 %v1189, %v837
        %v1194 = vmul.f32 %v1190, %v841
        %v1195 = vmul.f32 %v1191, %v837
        %v1196 = vmul.f32 %v1192, %v841
        %v1197 = vadd.f32 %v1193, %v1194
        %1198 = vadd.xlane.f32.xlu0 %v1197
        %v1199 = vpop.xlane.xlu0 %1198
        %v1200 = vadd.f32 %v1195, %v1196
        %1201 = vadd.xlane.f32.xlu0 %v1200
        %v1202 = vpop.xlane.xlu0 %1201
        %v1203 = vmul.f32 %v1193, %v1189
        %v1204 = vmul.f32 %v1194, %v1190
        %v1205 = vmul.f32 %v1195, %v1191
        %v1206 = vmul.f32 %v1196, %v1192
        %v1207 = vadd.f32 %v1203, %v1204
        %1208 = vadd.xlane.f32.xlu0 %v1207
        %v1209 = vpop.xlane.xlu0 %1208
        %v1210 = vadd.f32 %v1205, %v1206
        %1211 = vadd.xlane.f32.xlu0 %v1210
        %v1212 = vpop.xlane.xlu0 %1211
        %vm1213 = vcmask 7168
        %v1214 = vsel %vm1213, %v1199, %v1209
        %v1215 = vsel %vm1213, %v1202, %v1212
        %vm1216 = vcmask 130048
        %v1218 = vsel %vm1216, %v827, 0
        %v1221 = vsel %vm1216, %v828, 0
        %1223 = vmatprep.subr.mxu0 0.0
        %1224 = vmatpush1.msra.mxu0 %v1214
        %1225 = vmatprep.subr.mxu0 0.0
        %1226 = vmatpush1.msra.mxu0 %v1215
        %1227 = vmatprep.subr.mxu0 0.0
        %1228 = vmatpush1.msra.mxu0 0.0
        %1229 = vmatprep.subr.mxu0 0.0
        %1230 = vmatpush1.msra.mxu0 0.0
        %1231 = vmatprep.subr.mxu0 0.0
        %1232 = vmatpush1.msra.mxu0 0.0
        %1233 = vmatprep.subr.mxu0 0.0
        %1234 = vmatpush1.msra.mxu0 0.0
        %1235 = vmatprep.subr.mxu0 0.0
        %1236 = vmatpush1.msra.mxu0 0.0
        %1237 = vmatprep.subr.mxu0 0.0
        %1238 = vmatpush1.msra.mxu0 0.0
        %1239 = vmatprep.subr.mxu0 0.0
        %1240 = vmatpush1.msra.mxu0 0.0
        %1241 = vmatprep.subr.mxu0 0.0
        %1242 = vmatpush1.msra.mxu0 0.0
        %1243 = vmatprep.subr.mxu0 0.0
        %1244 = vmatpush1.msra.mxu0 0.0
        %1245 = vmatprep.subr.mxu0 0.0
        %1246 = vmatpush1.msra.mxu0 0.0
        %1247 = vmatprep.subr.mxu0 0.0
        %1248 = vmatpush1.msra.mxu0 0.0
        %1249 = vmatprep.subr.mxu0 0.0
        %1250 = vmatpush1.msra.mxu0 0.0
        %1251 = vmatprep.subr.mxu0 0.0
        %1252 = vmatpush1.msra.mxu0 0.0
        %1253 = vmatprep.subr.mxu0 0.0
        %1254 = vmatpush1.msra.mxu0 0.0
        %1255 = vmatprep.subr.mxu0 0.0
        %1256 = vmatpush1.msra.mxu0 0.0
        %1257 = vmatprep.subr.mxu0 0.0
        %1258 = vmatpush1.msra.mxu0 0.0
        %1259 = vmatprep.subr.mxu0 0.0
        %1260 = vmatpush1.msra.mxu0 0.0
        %1261 = vmatprep.subr.mxu0 0.0
        %1262 = vmatpush1.msra.mxu0 0.0
        %1263 = vmatprep.subr.mxu0 0.0
        %1264 = vmatpush1.msra.mxu0 0.0
        %1265 = vmatprep.subr.mxu0 0.0
        %1266 = vmatpush1.msra.mxu0 0.0
        %1267 = vmatprep.subr.mxu0 0.0
        %1268 = vmatpush1.msra.mxu0 0.0
        %1269 = vmatprep.subr.mxu0 0.0
        %1270 = vmatpush1.msra.mxu0 0.0
        %1271 = vmatprep.subr.mxu0 0.0
        %1272 = vmatpush1.msra.mxu0 0.0
        %1273 = vmatprep.subr.mxu0 0.0
        %1274 = vmatpush1.msra.mxu0 0.0
        %1275 = vmatprep.subr.mxu0 0.0
        %1276 = vmatpush1.msra.mxu0 0.0
        %1277 = vmatprep.subr.mxu0 0.0
        %1278 = vmatpush1.msra.mxu0 0.0
        %1279 = vmatprep.subr.mxu0 0.0
        %1280 = vmatpush1.msra.mxu0 0.0
        %1281 = vmatprep.subr.mxu0 0.0
        %1282 = vmatpush1.msra.mxu0 0.0
        %1283 = vmatprep.subr.mxu0 0.0
        %1284 = vmatpush1.msra.mxu0 0.0
        %1285 = vmatprep.subr.mxu0 0.0
        %1286 = vmatpush1.msra.mxu0 0.0
        %1287 = vmatprep.mubr.f32.mxu0 0.0
        %1288 = vmatmul.mubr.f32.gmra.mrb[0].mxu0 %v1218
        %v1289 = vpop.f32.mrb[0].mxu0
        %v1290 = vadd.f32 0.0, %v1289
        %v1291 = vpop.f32.mrb[0].mxu0
        %1292 = vmatprep.mubr.f32.mxu0 0.0
        %1293 = vmatmul.mubr.f32.gmra.mrb[0].mxu0 %v1221
        %v1294 = vpop.f32.mrb[0].mxu0
        %v1295 = vadd.f32 0.0, %v1294
        %v1296 = vpop.f32.mrb[0].mxu0
        %1297 = vdwg.mxu0
        %v1298 = vmul.f32 %v1290, 0.001953125
        %v1299 = vmul.f32 %v1295, 0.001953125
        %v1300 = vmul.f32 %v1298, %v1298
        %v1301 = vmul.f32 %v1299, %v1299
        %1304 = vrot.lane.b32.xlu0 %v1300, 1
        %v1305 = vpop.permute.xlu0 %1304
        %1306 = vrot.lane.b32.xlu0 %v1301, 1
        %v1307 = vpop.permute.xlu0 %1306
        %v1310 = vsub.f32 %v1298, %v1305
        %v1311 = vsub.f32 %v1299, %v1307
        %v1312 = vadd.f32 %v1310, 1e-05
        %v1313 = vadd.f32 %v1311, 1e-05
        %v1314 = vrsqrt.pop %v1312
        %v1315 = vrsqrt.pop %v1313
        %1317 = vset.pattern.permute.xlu0 0
        %1318 = vperm.xlu0 %1317, %v1298
        %v1319 = vpop.permute.xlu0 %1318
        %1322 = vset.pattern.permute.xlu0 0
        %1323 = vperm.xlu0 %1322, %v1299
        %v1324 = vpop.permute.xlu0 %1323
        %v1326 = vsub.f32 %v1189, %v1319
        %v1327 = vsub.f32 %v1190, %v1319
        %v1328 = vsub.f32 %v1191, %v1324
        %v1329 = vsub.f32 %v1192, %v1324
        %1331 = vset.pattern.permute.xlu0 1
        %1332 = vperm.xlu0 %1331, %v1314
        %v1333 = vpop.permute.xlu0 %1332
        %1336 = vset.pattern.permute.xlu0 1
        %1337 = vperm.xlu0 %1336, %v1315
        %v1338 = vpop.permute.xlu0 %1337
        %v1340 = vmul.f32 %v1326, %v1333
        %v1341 = vmul.f32 %v1327, %v1333
        %v1342 = vmul.f32 %v1328, %v1338
        %v1343 = vmul.f32 %v1329, %v1338
        %v1344 = vld [vmem:[%s7] sm:$0xff]
        %v1345 = vld [vmem:[%s7 + $0x8] sm:$0xff]
        %1347 = vset.pattern.permute.xlu0 0
        %1348 = vperm.xlu0 %1347, %v1344
        %v1349 = vpop.permute.xlu0 %1348
        %1352 = vset.pattern.permute.xlu0 0
        %1353 = vperm.xlu0 %1352, %v1345
        %v1354 = vpop.permute.xlu0 %1353
        %v1356 = vmul.f32 %v1340, %v1349
        %v1357 = vmul.f32 %v1341, %v1349
        %v1358 = vmul.f32 %v1342, %v1354
        %v1359 = vmul.f32 %v1343, %v1354
        %v1360 = vld [vmem:[%s8] sm:$0xff]
        %v1361 = vld [vmem:[%s8 + $0x8] sm:$0xff]
        %1363 = vset.pattern.permute.xlu0 0
        %1364 = vperm.xlu0 %1363, %v1360
        %v1365 = vpop.permute.xlu0 %1364
        %1368 = vset.pattern.permute.xlu0 0
        %1369 = vperm.xlu0 %1368, %v1361
        %v1370 = vpop.permute.xlu0 %1369
        %v1372 = vadd.f32 %v1356, %v1365
        %v1373 = vadd.f32 %v1357, %v1365
        %v1374 = vadd.f32 %v1358, %v1370
        %v1375 = vadd.f32 %v1359, %v1370
        %vm1376 = vcmp.ge.f32.partialorder %v1372, 0.0
        %vm1377 = vcmp.ge.f32.partialorder %v1373, 0.0
        %vm1378 = vcmp.ge.f32.partialorder %v1374, 0.0
        %vm1379 = vcmp.ge.f32.partialorder %v1375, 0.0
        %v1380 = vmul.f32 %v1372, 0.01
        %v1381 = vmul.f32 %v1373, 0.01
        %v1382 = vmul.f32 %v1374, 0.01
        %v1383 = vmul.f32 %v1375, 0.01
        %v1384 = vsel %vm1376, %v1372, %v1380
        %v1385 = vsel %vm1377, %v1373, %v1381
        %v1386 = vsel %vm1378, %v1374, %v1382
        %v1387 = vsel %vm1379, %v1375, %v1383
        %1388 = vst [vmem:[%s811] sm:$0xff] %v1384
        %1389 = vst [vmem:[%s811 + $0x8] sm:$0xff] %v1385
        %1390 = vst [vmem:[%s811 + $0x10] sm:$0xff] %v1386
        %1391 = vst [vmem:[%s811 + $0x18] sm:$0xff] %v1387
        %1392 = vrot.lane.b32.xlu0 %v1384, 127
        %v1393 = vpop.permute.xlu0 %1392
        %1394 = vrot.lane.b32.xlu0 %v1386, 127
        %v1395 = vpop.permute.xlu0 %1394
        %1396 = vrot.lane.b32.xlu0 %v1385, 127
        %v1397 = vpop.permute.xlu0 %1396
        %1398 = vrot.lane.b32.xlu0 %v1387, 127
        %v1399 = vpop.permute.xlu0 %1398
        %v1400 = vsel %vm987, %v1393, %v1397
        %v1401 = vsel %vm987, %v1395, %v1399
        %v1402 = vsel %vm987, %v1397, %v1393
        %v1403 = vsel %vm987, %v1399, %v1395
        %v1404 = vmax.f32 %v1384, %v1400
        %v1405 = vmax.f32 %v1385, %v1402
        %v1406 = vmax.f32 %v1386, %v1401
        %v1407 = vmax.f32 %v1387, %v1403
        %1408 = vrot.lane.b32.xlu0 %v1404, 112
        %v1409 = vpop.permute.xlu0 %1408
        %1410 = vrot.lane.b32.xlu0 %v1406, 112
        %v1411 = vpop.permute.xlu0 %1410
        %1412 = vrot.lane.b32.xlu0 %v1405, 112
        %v1413 = vpop.permute.xlu0 %1412
        %1414 = vrot.lane.b32.xlu0 %v1407, 112
        %v1415 = vpop.permute.xlu0 %1414
        %v1416 = vsel %vm1021, %v1409, %v1413
        %v1417 = vsel %vm1021, %v1411, %v1415
        %v1418 = vsel %vm1021, %v1413, %v1409
        %v1419 = vsel %vm1021, %v1415, %v1411
        %v1420 = vmax.f32 %v1404, %v1416
        %v1421 = vmax.f32 %v1405, %v1418
        %v1422 = vmax.f32 %v1406, %v1417
        %v1423 = vmax.f32 %v1407, %v1419
        %v1424 = vld [vmem:[%s9] sm:$0xff]
        %v1425 = vld [vmem:[%s9 + $0x8] sm:$0xff]
        %v1426 = vld [vmem:[%s9 + $0x10] sm:$0x3]
        %v1427 = vld [vmem:[%s9 + $0x18] sm:$0x3]
        %v1428 = vlaneseq
        %v1429 = vshrl.u32 %v1428, 7
        %v1430 = vsub.s32 0, %v1429
        %v1431 = vrot.slane %v1424, %v1430
        %v1432 = vlaneseq
        %v1433 = vshrl.u32 %v1432, 7
        %v1434 = vsub.s32 0, %v1433
        %v1435 = vrot.slane %v1425, %v1434
        %v1436 = vmul.f32 %v1420, %v1431
        %v1437 = vmul.f32 %v1421, %v1435
        %v1438 = vmul.f32 %v1422, %v1431
        %v1439 = vmul.f32 %v1423, %v1435
        %v1440 = vadd.f32 %v1436, %v1437
        %1441 = vadd.xlane.f32.xlu0 %v1440
        %v1442 = vpop.xlane.xlu0 %1441
        %v1443 = vadd.f32 %v1438, %v1439
        %1444 = vadd.xlane.f32.xlu0 %v1443
        %v1445 = vpop.xlane.xlu0 %1444
        %v1446 = vmul.f32 %v1442, 0.015625
        %v1447 = vmul.f32 %v1445, 0.015625
        %v1448 = vld [vmem:[%s11] sm:$0xff]
        %v1449 = vld [vmem:[%s11 + $0x8] sm:$0xff]
        %v1450 = vmul.f32 %v1448, %v1446
        %v1451 = vmul.f32 %v1449, %v1447
        %vm1452 = vcmask 39936
        %v1453 = vsel %vm1452, %v1450, 0.0
        %v1454 = vsel %vm1452, %v1451, 0.0
        %v1455 = vadd.f32 %v1453, %v1454
        %v1456 = vrot.slane %v1455, 4
        %v1457 = vadd.f32 %v1455, %v1456
        %v1458 = vrot.slane %v1457, 2
        %v1459 = vadd.f32 %v1457, %v1458
        %v1460 = vrot.slane %v1459, 1
        %v1461 = vadd.f32 %v1459, %v1460
        %v1462 = vmax.f32 %v1461, 0.0
        %v1463 = vld [vmem:[%s12] sm:$0x3]
        %v1464 = vmul.f32 %v1463, %v1462
        %vm1465 = vcmask 33792
        %v1466 = vsel %vm1465, %v1464, 0.0
        %1467 = vadd.xlane.f32.xlu0 %v1466
        %v1468 = vpop.xlane.xlu0 %1467
        %v1469 = vld [vmem:[%s13] sm:$0x3]
        %v1470 = vadd.f32 %v1468, %v1469
        %v1471 = vmul.f32 %v1470, 0.033333335
        %v1472 = vsel %vm877, %v1471, -inf
        %v1473 = vrot.slane %v1472, 4
        %v1474 = vmax.f32 %v1472, %v1473
        %v1475 = vrot.slane %v1474, 2
        %v1476 = vmax.f32 %v1474, %v1475
        %v1477 = vrot.slane %v1476, 1
        %v1478 = vmax.f32 %v1476, %v1477
        %v1479 = vsub.f32 %v1471, %v1478
        %v1480 = vmul.f32 %v1479, 1.442695
        %v1481 = vpow.pop %v1480
        %v1482 = vsel %vm877, %v1481, 0.0
        %v1483 = vrot.slane %v1482, 4
        %v1484 = vadd.f32 %v1482, %v1483
        %v1485 = vrot.slane %v1484, 2
        %v1486 = vadd.f32 %v1484, %v1485
        %v1487 = vrot.slane %v1486, 1
        %v1488 = vadd.f32 %v1486, %v1487
        %v1489 = vrcp.pop %v1488
        %v1490 = vmul.f32 %v1481, %v1489
        %1491 = vrot.lane.b32.xlu0 %v1420, 34
        %v1492 = vpop.permute.xlu0 %1491
        %1493 = vrot.lane.b32.xlu0 %v1422, 34
        %v1494 = vpop.permute.xlu0 %1493
        %1495 = vrot.lane.b32.xlu0 %v1421, 34
        %v1496 = vpop.permute.xlu0 %1495
        %1497 = vrot.lane.b32.xlu0 %v1423, 34
        %v1498 = vpop.permute.xlu0 %1497
        %vm1499 = vcmp.lt.s32.totalorder %v905, 34
        %v1500 = vsel %vm1499, %v1492, %v1496
        %v1501 = vsel %vm1499, %v1494, %v1498
        %v1502 = vsel %vm1499, %v1496, %v1492
        %v1503 = vsel %vm1499, %v1498, %v1494
        %v1504 = vlaneseq
        %v1505 = vshrl.u32 %v1504, 7
        %v1506 = vsub.s32 1, %v1505
        %v1507 = vrot.slane %v1424, %v1506
        %v1508 = vlaneseq
        %v1509 = vshrl.u32 %v1508, 7
        %v1510 = vsub.s32 1, %v1509
        %v1511 = vrot.slane %v1425, %v1510
        %v1512 = vmul.f32 %v1502, %v1507
        %v1513 = vmul.f32 %v1500, %v1511
        %v1514 = vmul.f32 %v1503, %v1507
        %v1515 = vmul.f32 %v1501, %v1511
        %1516 = vrot.lane.b32.xlu0 %v1420, 32
        %v1517 = vpop.permute.xlu0 %1516
        %1518 = vrot.lane.b32.xlu0 %v1422, 32
        %v1519 = vpop.permute.xlu0 %1518
        %1520 = vrot.lane.b32.xlu0 %v1421, 32
        %v1521 = vpop.permute.xlu0 %1520
        %1522 = vrot.lane.b32.xlu0 %v1423, 32
        %v1523 = vpop.permute.xlu0 %1522
        %vm1524 = vcmp.lt.s32.totalorder %v905, 32
        %v1525 = vsel %vm1524, %v1517, %v1521
        %v1526 = vsel %vm1524, %v1519, %v1523
        %v1527 = vsel %vm1524, %v1521, %v1517
        %v1528 = vsel %vm1524, %v1523, %v1519
        %v1529 = vlaneseq
        %v1530 = vshrl.u32 %v1529, 7
        %v1531 = vsub.s32 2, %v1530
        %v1532 = vrot.slane %v1424, %v1531
        %v1533 = vlaneseq
        %v1534 = vshrl.u32 %v1533, 7
        %v1535 = vsub.s32 2, %v1534
        %v1536 = vrot.slane %v1425, %v1535
        %v1537 = vmul.f32 %v1527, %v1532
        %v1538 = vmul.f32 %v1525, %v1536
        %v1539 = vmul.f32 %v1528, %v1532
        %v1540 = vmul.f32 %v1526, %v1536
        %1541 = vrot.lane.b32.xlu0 %v1420, 30
        %v1542 = vpop.permute.xlu0 %1541
        %1543 = vrot.lane.b32.xlu0 %v1422, 30
        %v1544 = vpop.permute.xlu0 %1543
        %1545 = vrot.lane.b32.xlu0 %v1421, 30
        %v1546 = vpop.permute.xlu0 %1545
        %1547 = vrot.lane.b32.xlu0 %v1423, 30
        %v1548 = vpop.permute.xlu0 %1547
        %vm1549 = vcmp.lt.s32.totalorder %v905, 30
        %v1550 = vsel %vm1549, %v1542, %v1546
        %v1551 = vsel %vm1549, %v1544, %v1548
        %v1552 = vsel %vm1549, %v1546, %v1542
        %v1553 = vsel %vm1549, %v1548, %v1544
        %v1554 = vlaneseq
        %v1555 = vshrl.u32 %v1554, 7
        %v1556 = vsub.s32 3, %v1555
        %v1557 = vrot.slane %v1424, %v1556
        %v1558 = vlaneseq
        %v1559 = vshrl.u32 %v1558, 7
        %v1560 = vsub.s32 3, %v1559
        %v1561 = vrot.slane %v1425, %v1560
        %v1562 = vmul.f32 %v1552, %v1557
        %v1563 = vmul.f32 %v1550, %v1561
        %v1564 = vmul.f32 %v1553, %v1557
        %v1565 = vmul.f32 %v1551, %v1561
        %1566 = vrot.lane.b32.xlu0 %v1420, 2
        %v1567 = vpop.permute.xlu0 %1566
        %1568 = vrot.lane.b32.xlu0 %v1422, 2
        %v1569 = vpop.permute.xlu0 %1568
        %1570 = vrot.lane.b32.xlu0 %v1421, 2
        %v1571 = vpop.permute.xlu0 %1570
        %1572 = vrot.lane.b32.xlu0 %v1423, 2
        %v1573 = vpop.permute.xlu0 %1572
        %vm1574 = vcmp.lt.s32.totalorder %v905, 2
        %v1575 = vsel %vm1574, %v1567, %v1571
        %v1576 = vsel %vm1574, %v1569, %v1573
        %v1577 = vsel %vm1574, %v1571, %v1567
        %v1578 = vsel %vm1574, %v1573, %v1569
        %v1579 = vlaneseq
        %v1580 = vshrl.u32 %v1579, 7
        %v1581 = vsub.s32 4, %v1580
        %v1582 = vrot.slane %v1424, %v1581
        %v1583 = vlaneseq
        %v1584 = vshrl.u32 %v1583, 7
        %v1585 = vsub.s32 4, %v1584
        %v1586 = vrot.slane %v1425, %v1585
        %v1587 = vmul.f32 %v1577, %v1582
        %v1588 = vmul.f32 %v1575, %v1586
        %v1589 = vmul.f32 %v1578, %v1582
        %v1590 = vmul.f32 %v1576, %v1586
        %v1591 = vlaneseq
        %v1592 = vshrl.u32 %v1591, 7
        %v1593 = vsub.s32 5, %v1592
        %v1594 = vrot.slane %v1424, %v1593
        %v1595 = vlaneseq
        %v1596 = vshrl.u32 %v1595, 7
        %v1597 = vsub.s32 5, %v1596
        %v1598 = vrot.slane %v1425, %v1597
        %v1599 = vmul.f32 %v1420, %v1594
        %v1600 = vmul.f32 %v1421, %v1598
        %v1601 = vmul.f32 %v1422, %v1594
        %v1602 = vmul.f32 %v1423, %v1598
        %1603 = vrot.lane.b32.xlu0 %v1420, 126
        %v1604 = vpop.permute.xlu0 %1603
        %1605 = vrot.lane.b32.xlu0 %v1422, 126
        %v1606 = vpop.permute.xlu0 %1605
        %1607 = vrot.lane.b32.xlu0 %v1421, 126
        %v1608 = vpop.permute.xlu0 %1607
        %1609 = vrot.lane.b32.xlu0 %v1423, 126
        %v1610 = vpop.permute.xlu0 %1609
        %vm1611 = vcmp.lt.s32.totalorder %v905, 126
        %v1612 = vsel %vm1611, %v1604, %v1608
        %v1613 = vsel %vm1611, %v1606, %v1610
        %v1614 = vsel %vm1611, %v1608, %v1604
        %v1615 = vsel %vm1611, %v1610, %v1606
        %v1616 = vlaneseq
        %v1617 = vshrl.u32 %v1616, 7
        %v1618 = vsub.s32 6, %v1617
        %v1619 = vrot.slane %v1424, %v1618
        %v1620 = vlaneseq
        %v1621 = vshrl.u32 %v1620, 7
        %v1622 = vsub.s32 6, %v1621
        %v1623 = vrot.slane %v1425, %v1622
        %v1624 = vmul.f32 %v1612, %v1619
        %v1625 = vmul.f32 %v1614, %v1623
        %v1626 = vmul.f32 %v1613, %v1619
        %v1627 = vmul.f32 %v1615, %v1623
        %1628 = vrot.lane.b32.xlu0 %v1420, 98
        %v1629 = vpop.permute.xlu0 %1628
        %1630 = vrot.lane.b32.xlu0 %v1422, 98
        %v1631 = vpop.permute.xlu0 %1630
        %1632 = vrot.lane.b32.xlu0 %v1421, 98
        %v1633 = vpop.permute.xlu0 %1632
        %1634 = vrot.lane.b32.xlu0 %v1423, 98
        %v1635 = vpop.permute.xlu0 %1634
        %vm1636 = vcmp.lt.s32.totalorder %v905, 98
        %v1637 = vsel %vm1636, %v1629, %v1633
        %v1638 = vsel %vm1636, %v1631, %v1635
        %v1639 = vsel %vm1636, %v1633, %v1629
        %v1640 = vsel %vm1636, %v1635, %v1631
        %v1641 = vlaneseq
        %v1642 = vshrl.u32 %v1641, 7
        %v1643 = vsub.s32 7, %v1642
        %v1644 = vrot.slane %v1424, %v1643
        %v1645 = vlaneseq
        %v1646 = vshrl.u32 %v1645, 7
        %v1647 = vsub.s32 7, %v1646
        %v1648 = vrot.slane %v1425, %v1647
        %v1649 = vmul.f32 %v1637, %v1644
        %v1650 = vmul.f32 %v1639, %v1648
        %v1651 = vmul.f32 %v1638, %v1644
        %v1652 = vmul.f32 %v1640, %v1648
        %1653 = vrot.lane.b32.xlu0 %v1420, 96
        %v1654 = vpop.permute.xlu0 %1653
        %1655 = vrot.lane.b32.xlu0 %v1422, 96
        %v1656 = vpop.permute.xlu0 %1655
        %1657 = vrot.lane.b32.xlu0 %v1421, 96
        %v1658 = vpop.permute.xlu0 %1657
        %1659 = vrot.lane.b32.xlu0 %v1423, 96
        %v1660 = vpop.permute.xlu0 %1659
        %vm1661 = vcmp.lt.s32.totalorder %v905, 96
        %v1662 = vsel %vm1661, %v1654, %v1658
        %v1663 = vsel %vm1661, %v1656, %v1660
        %v1664 = vsel %vm1661, %v1658, %v1654
        %v1665 = vsel %vm1661, %v1660, %v1656
        %v1666 = vlaneseq
        %v1667 = vshrl.u32 %v1666, 7
        %v1668 = vsub.s32 0, %v1667
        %v1669 = vrot.slane %v1426, %v1668
        %v1670 = vlaneseq
        %v1671 = vshrl.u32 %v1670, 7
        %v1672 = vsub.s32 0, %v1671
        %v1673 = vrot.slane %v1427, %v1672
        %v1674 = vmul.f32 %v1662, %v1669
        %v1675 = vmul.f32 %v1664, %v1673
        %v1676 = vmul.f32 %v1663, %v1669
        %v1677 = vmul.f32 %v1665, %v1673
        %1678 = vrot.lane.b32.xlu0 %v1420, 94
        %v1679 = vpop.permute.xlu0 %1678
        %1680 = vrot.lane.b32.xlu0 %v1422, 94
        %v1681 = vpop.permute.xlu0 %1680
        %1682 = vrot.lane.b32.xlu0 %v1421, 94
        %v1683 = vpop.permute.xlu0 %1682
        %1684 = vrot.lane.b32.xlu0 %v1423, 94
        %v1685 = vpop.permute.xlu0 %1684
        %vm1686 = vcmp.lt.s32.totalorder %v905, 94
        %v1687 = vsel %vm1686, %v1679, %v1683
        %v1688 = vsel %vm1686, %v1681, %v1685
        %v1689 = vsel %vm1686, %v1683, %v1679
        %v1690 = vsel %vm1686, %v1685, %v1681
        %v1691 = vlaneseq
        %v1692 = vshrl.u32 %v1691, 7
        %v1693 = vsub.s32 1, %v1692
        %v1694 = vrot.slane %v1426, %v1693
        %v1695 = vlaneseq
        %v1696 = vshrl.u32 %v1695, 7
        %v1697 = vsub.s32 1, %v1696
        %v1698 = vrot.slane %v1427, %v1697
        %v1699 = vmul.f32 %v1687, %v1694
        %v1700 = vmul.f32 %v1689, %v1698
        %v1701 = vmul.f32 %v1688, %v1694
        %v1702 = vmul.f32 %v1690, %v1698
        %v1703 = vpack.c.bf16 %v1514, %v1512
        %v1704 = vpack.c.bf16 %v1515, %v1513
        %v1705 = vpack.c.bf16 %v1539, %v1537
        %v1706 = vpack.c.bf16 %v1540, %v1538
        %v1707 = vpack.c.bf16 %v1564, %v1562
        %v1708 = vpack.c.bf16 %v1565, %v1563
        %v1709 = vpack.c.bf16 %v1589, %v1587
        %v1710 = vpack.c.bf16 %v1590, %v1588
        %v1711 = vpack.c.bf16 %v1601, %v1599
        %v1712 = vpack.c.bf16 %v1602, %v1600
        %v1713 = vpack.c.bf16 %v1626, %v1624
        %v1714 = vpack.c.bf16 %v1627, %v1625
        %v1715 = vpack.c.bf16 %v1651, %v1649
        %v1716 = vpack.c.bf16 %v1652, %v1650
        %v1717 = vpack.c.bf16 %v1676, %v1674
        %v1718 = vpack.c.bf16 %v1677, %v1675
        %v1719 = vpack.c.bf16 %v1701, %v1699
        %v1720 = vpack.c.bf16 %v1702, %v1700
        %v1721 = vld [vmem:[%s10] sm:$0xff]
        %v1722 = vld [vmem:[%s10 + $0x8] sm:$0xff]
        %v1723 = vld [vmem:[%s10 + $0x10] sm:$0xff]
        %v1724 = vld [vmem:[%s10 + $0x18] sm:$0xff]
        %v1729 = vunpack.c.l.b16 %v1721
        %v1730 = vunpack.c.h.b16 %v1721
        %v1731 = vunpack.c.l.b16 %v1722
        %v1732 = vunpack.c.h.b16 %v1722
        %v1733 = vunpack.c.l.b16 %v1723
        %v1734 = vunpack.c.h.b16 %v1723
        %v1735 = vunpack.c.l.b16 %v1724
        %v1736 = vunpack.c.h.b16 %v1724
        %v1737 = vpack.c.b16 %v1731, %v1729
        %v1738 = vpack.c.b16 %v1732, %v1730
        %v1739 = vpack.c.b16 %v1735, %v1733
        %v1740 = vpack.c.b16 %v1736, %v1734
        %v1744 = vsel %vm1216, %v1738, 0
        %v1747 = vsel %vm1216, %v1740, 0
        %1749 = vmatprep.subr.bf16.mxu0 %v1704
        %1750 = vmatpush1.bf16.msra.mxu0 %v1703
        %1751 = vmatprep.subr.bf16.mxu0 %v1706
        %1752 = vmatpush1.bf16.msra.mxu0 %v1705
        %1753 = vmatprep.subr.bf16.mxu0 %v1708
        %1754 = vmatpush1.bf16.msra.mxu0 %v1707
        %1755 = vmatprep.subr.bf16.mxu0 %v1710
        %1756 = vmatpush1.bf16.msra.mxu0 %v1709
        %1757 = vmatprep.subr.bf16.mxu0 %v1712
        %1758 = vmatpush1.bf16.msra.mxu0 %v1711
        %1759 = vmatprep.subr.bf16.mxu0 %v1714
        %1760 = vmatpush1.bf16.msra.mxu0 %v1713
        %1761 = vmatprep.subr.bf16.mxu0 %v1716
        %1762 = vmatpush1.bf16.msra.mxu0 %v1715
        %1763 = vmatprep.subr.bf16.mxu0 %v1718
        %1764 = vmatpush1.bf16.msra.mxu0 %v1717
        %1765 = vmatprep.subr.bf16.mxu0 %v1720
        %1766 = vmatpush1.bf16.msra.mxu0 %v1719
        %1767 = vmatprep.subr.bf16.mxu0 0
        %1768 = vmatpush1.bf16.msra.mxu0 0
        %1769 = vmatprep.subr.bf16.mxu0 0
        %1770 = vmatpush1.bf16.msra.mxu0 0
        %1771 = vmatprep.subr.bf16.mxu0 0
        %1772 = vmatpush1.bf16.msra.mxu0 0
        %1773 = vmatprep.subr.bf16.mxu0 0
        %1774 = vmatpush1.bf16.msra.mxu0 0
        %1775 = vmatprep.subr.bf16.mxu0 0
        %1776 = vmatpush1.bf16.msra.mxu0 0
        %1777 = vmatprep.subr.bf16.mxu0 0
        %1778 = vmatpush1.bf16.msra.mxu0 0
        %1779 = vmatprep.subr.bf16.mxu0 0
        %1780 = vmatpush1.bf16.msra.mxu0 0
        %1781 = vmatprep.mubr.bf16.mxu0 %v1744
        %1782 = vmatmul.mubr.bf16.gmra.mrb[0].mxu0 %v1737
        %v1783 = vpop.f32.mrb[0].mxu0
        %v1784 = vadd.f32 0.0, %v1783
        %v1785 = vpop.f32.mrb[0].mxu0
        %v1786 = vadd.f32 0.0, %v1785
        %v1787 = vpop.f32.mrb[0].mxu0
        %v1788 = vadd.f32 0.0, %v1787
        %v1789 = vpop.f32.mrb[0].mxu0
        %v1790 = vadd.f32 0.0, %v1789
        %1791 = vmatprep.mubr.bf16.mxu0 %v1747
        %1792 = vmatmul.mubr.bf16.gmra.mrb[0].mxu0 %v1739
        %v1793 = vpop.f32.mrb[0].mxu0
        %v1794 = vadd.f32 0.0, %v1793
        %v1795 = vpop.f32.mrb[0].mxu0
        %v1796 = vadd.f32 0.0, %v1795
        %v1797 = vpop.f32.mrb[0].mxu0
        %v1798 = vadd.f32 0.0, %v1797
        %v1799 = vpop.f32.mrb[0].mxu0
        %v1800 = vadd.f32 0.0, %v1799
        %1801 = vdwg.mxu0
        %s1803 = vtos %v1490
        %v1804 = vstv %s1803
        %v1806 = vmul.f32 %v1784, %v1804
        %v1807 = vmul.f32 %v1786, %v1804
        %v1808 = vmul.f32 %v1788, %v1804
        %v1809 = vmul.f32 %v1790, %v1804
        %v1810 = vrot.slane %v1490, 1
        %s1811 = vtos %v1810
        %v1812 = vstv %s1811
        %v1814 = vmul.f32 %v1794, %v1812
        %v1815 = vmul.f32 %v1796, %v1812
        %v1816 = vmul.f32 %v1798, %v1812
        %v1817 = vmul.f32 %v1800, %v1812
        %v1818 = vadd.f32 %v1806, %v1814
        %v1819 = vadd.f32 %v1807, %v1815
        %v1820 = vadd.f32 %v1808, %v1816
        %v1821 = vadd.f32 %v1809, %v1817
        %v1822 = vmul.f32 %v1818, %v1431
        %v1823 = vmul.f32 %v1819, %v1435
        %v1824 = vmul.f32 %v1820, %v1431
        %v1825 = vmul.f32 %v1821, %v1435
        %v1826 = vadd.f32 %v1822, %v1823
        %1827 = vadd.xlane.f32.xlu0 %v1826
        %v1828 = vpop.xlane.xlu0 %1827
        %v1829 = vadd.f32 %v1824, %v1825
        %1830 = vadd.xlane.f32.xlu0 %v1829
        %v1831 = vpop.xlane.xlu0 %1830
        %v1832 = vmul.f32 %v1822, %v1818
        %v1833 = vmul.f32 %v1823, %v1819
        %v1834 = vmul.f32 %v1824, %v1820
        %v1835 = vmul.f32 %v1825, %v1821
        %v1836 = vadd.f32 %v1832, %v1833
        %1837 = vadd.xlane.f32.xlu0 %v1836
        %v1838 = vpop.xlane.xlu0 %1837
        %v1839 = vadd.f32 %v1834, %v1835
        %1840 = vadd.xlane.f32.xlu0 %v1839
        %v1841 = vpop.xlane.xlu0 %1840
        %v1842 = vsel %vm1213, %v1828, %v1838
        %v1843 = vsel %vm1213, %v1831, %v1841
        %1844 = vmatprep.subr.mxu0 0.0
        %1845 = vmatpush1.msra.mxu0 %v1842
        %1846 = vmatprep.subr.mxu0 0.0
        %1847 = vmatpush1.msra.mxu0 %v1843
        %1848 = vmatprep.subr.mxu0 0.0
        %1849 = vmatpush1.msra.mxu0 0.0
        %1850 = vmatprep.subr.mxu0 0.0
        %1851 = vmatpush1.msra.mxu0 0.0
        %1852 = vmatprep.subr.mxu0 0.0
        %1853 = vmatpush1.msra.mxu0 0.0
        %1854 = vmatprep.subr.mxu0 0.0
        %1855 = vmatpush1.msra.mxu0 0.0
        %1856 = vmatprep.subr.mxu0 0.0
        %1857 = vmatpush1.msra.mxu0 0.0
        %1858 = vmatprep.subr.mxu0 0.0
        %1859 = vmatpush1.msra.mxu0 0.0
        %1860 = vmatprep.subr.mxu0 0.0
        %1861 = vmatpush1.msra.mxu0 0.0
        %1862 = vmatprep.subr.mxu0 0.0
        %1863 = vmatpush1.msra.mxu0 0.0
        %1864 = vmatprep.subr.mxu0 0.0
        %1865 = vmatpush1.msra.mxu0 0.0
        %1866 = vmatprep.subr.mxu0 0.0
        %1867 = vmatpush1.msra.mxu0 0.0
        %1868 = vmatprep.subr.mxu0 0.0
        %1869 = vmatpush1.msra.mxu0 0.0
        %1870 = vmatprep.subr.mxu0 0.0
        %1871 = vmatpush1.msra.mxu0 0.0
        %1872 = vmatprep.subr.mxu0 0.0
        %1873 = vmatpush1.msra.mxu0 0.0
        %1874 = vmatprep.subr.mxu0 0.0
        %1875 = vmatpush1.msra.mxu0 0.0
        %1876 = vmatprep.subr.mxu0 0.0
        %1877 = vmatpush1.msra.mxu0 0.0
        %1878 = vmatprep.subr.mxu0 0.0
        %1879 = vmatpush1.msra.mxu0 0.0
        %1880 = vmatprep.subr.mxu0 0.0
        %1881 = vmatpush1.msra.mxu0 0.0
        %1882 = vmatprep.subr.mxu0 0.0
        %1883 = vmatpush1.msra.mxu0 0.0
        %1884 = vmatprep.subr.mxu0 0.0
        %1885 = vmatpush1.msra.mxu0 0.0
        %1886 = vmatprep.subr.mxu0 0.0
        %1887 = vmatpush1.msra.mxu0 0.0
        %1888 = vmatprep.subr.mxu0 0.0
        %1889 = vmatpush1.msra.mxu0 0.0
        %1890 = vmatprep.subr.mxu0 0.0
        %1891 = vmatpush1.msra.mxu0 0.0
        %1892 = vmatprep.subr.mxu0 0.0
        %1893 = vmatpush1.msra.mxu0 0.0
        %1894 = vmatprep.subr.mxu0 0.0
        %1895 = vmatpush1.msra.mxu0 0.0
        %1896 = vmatprep.subr.mxu0 0.0
        %1897 = vmatpush1.msra.mxu0 0.0
        %1898 = vmatprep.subr.mxu0 0.0
        %1899 = vmatpush1.msra.mxu0 0.0
        %1900 = vmatprep.subr.mxu0 0.0
        %1901 = vmatpush1.msra.mxu0 0.0
        %1902 = vmatprep.subr.mxu0 0.0
        %1903 = vmatpush1.msra.mxu0 0.0
        %1904 = vmatprep.subr.mxu0 0.0
        %1905 = vmatpush1.msra.mxu0 0.0
        %1906 = vmatprep.subr.mxu0 0.0
        %1907 = vmatpush1.msra.mxu0 0.0
        %1908 = vmatprep.mubr.f32.mxu0 0.0
        %1909 = vmatmul.mubr.f32.gmra.mrb[0].mxu0 %v1218
        %v1910 = vpop.f32.mrb[0].mxu0
        %v1911 = vadd.f32 0.0, %v1910
        %v1912 = vpop.f32.mrb[0].mxu0
        %1913 = vmatprep.mubr.f32.mxu0 0.0
        %1914 = vmatmul.mubr.f32.gmra.mrb[0].mxu0 %v1221
        %v1915 = vpop.f32.mrb[0].mxu0
        %v1916 = vadd.f32 0.0, %v1915
        %v1917 = vpop.f32.mrb[0].mxu0
        %1918 = vdwg.mxu0
        %v1919 = vmul.f32 %v1911, 0.0078125
        %v1920 = vmul.f32 %v1916, 0.0078125
        %v1921 = vmul.f32 %v1919, %v1919
        %v1922 = vmul.f32 %v1920, %v1920
        %1925 = vrot.lane.b32.xlu0 %v1921, 1
        %v1926 = vpop.permute.xlu0 %1925
        %1927 = vrot.lane.b32.xlu0 %v1922, 1
        %v1928 = vpop.permute.xlu0 %1927
        %v1931 = vsub.f32 %v1919, %v1926
        %v1932 = vsub.f32 %v1920, %v1928
        %v1933 = vadd.f32 %v1931, 1e-05
        %v1934 = vadd.f32 %v1932, 1e-05
        %v1935 = vrsqrt.pop %v1933
        %v1936 = vrsqrt.pop %v1934
        %1938 = vset.pattern.permute.xlu0 0
        %1939 = vperm.xlu0 %1938, %v1919
        %v1940 = vpop.permute.xlu0 %1939
        %1943 = vset.pattern.permute.xlu0 0
        %1944 = vperm.xlu0 %1943, %v1920
        %v1945 = vpop.permute.xlu0 %1944
        %v1947 = vsub.f32 %v1818, %v1940
        %v1948 = vsub.f32 %v1819, %v1940
        %v1949 = vsub.f32 %v1820, %v1945
        %v1950 = vsub.f32 %v1821, %v1945
        %1952 = vset.pattern.permute.xlu0 1
        %1953 = vperm.xlu0 %1952, %v1935
        %v1954 = vpop.permute.xlu0 %1953
        %1957 = vset.pattern.permute.xlu0 1
        %1958 = vperm.xlu0 %1957, %v1936
        %v1959 = vpop.permute.xlu0 %1958
        %v1961 = vmul.f32 %v1947, %v1954
        %v1962 = vmul.f32 %v1948, %v1954
        %v1963 = vmul.f32 %v1949, %v1959
        %v1964 = vmul.f32 %v1950, %v1959
        %v1965 = vld [vmem:[%s14] sm:$0xff]
        %v1966 = vld [vmem:[%s14 + $0x8] sm:$0xff]
        %1968 = vset.pattern.permute.xlu0 0
        %1969 = vperm.xlu0 %1968, %v1965
        %v1970 = vpop.permute.xlu0 %1969
        %1973 = vset.pattern.permute.xlu0 0
        %1974 = vperm.xlu0 %1973, %v1966
        %v1975 = vpop.permute.xlu0 %1974
        %v1977 = vmul.f32 %v1961, %v1970
        %v1978 = vmul.f32 %v1962, %v1970
        %v1979 = vmul.f32 %v1963, %v1975
        %v1980 = vmul.f32 %v1964, %v1975
        %v1981 = vld [vmem:[%s15] sm:$0xff]
        %v1982 = vld [vmem:[%s15 + $0x8] sm:$0xff]
        %1984 = vset.pattern.permute.xlu0 0
        %1985 = vperm.xlu0 %1984, %v1981
        %v1986 = vpop.permute.xlu0 %1985
        %1989 = vset.pattern.permute.xlu0 0
        %1990 = vperm.xlu0 %1989, %v1982
        %v1991 = vpop.permute.xlu0 %1990
        %v1993 = vadd.f32 %v1977, %v1986
        %v1994 = vadd.f32 %v1978, %v1986
        %v1995 = vadd.f32 %v1979, %v1991
        %v1996 = vadd.f32 %v1980, %v1991
        %vm1997 = vcmp.ge.f32.partialorder %v1993, 0.0
        %vm1998 = vcmp.ge.f32.partialorder %v1994, 0.0
        %vm1999 = vcmp.ge.f32.partialorder %v1995, 0.0
        %vm2000 = vcmp.ge.f32.partialorder %v1996, 0.0
        %v2001 = vmul.f32 %v1993, 0.01
        %v2002 = vmul.f32 %v1994, 0.01
        %v2003 = vmul.f32 %v1995, 0.01
        %v2004 = vmul.f32 %v1996, 0.01
        %v2005 = vsel %vm1997, %v1993, %v2001
        %v2006 = vsel %vm1998, %v1994, %v2002
        %v2007 = vsel %vm1999, %v1995, %v2003
        %v2008 = vsel %vm2000, %v1996, %v2004
        %2009 = vst [vmem:[%s818] sm:$0xff] %v2005
        %2010 = vst [vmem:[%s818 + $0x8] sm:$0xff] %v2006
        %2011 = vst [vmem:[%s818 + $0x10] sm:$0xff] %v2007
        %2012 = vst [vmem:[%s818 + $0x18] sm:$0xff] %v2008
        %2013 = vrot.lane.b32.xlu0 %v2005, 126
        %v2014 = vpop.permute.xlu0 %2013
        %2015 = vrot.lane.b32.xlu0 %v2007, 126
        %v2016 = vpop.permute.xlu0 %2015
        %2017 = vrot.lane.b32.xlu0 %v2006, 126
        %v2018 = vpop.permute.xlu0 %2017
        %2019 = vrot.lane.b32.xlu0 %v2008, 126
        %v2020 = vpop.permute.xlu0 %2019
        %v2021 = vsel %vm1611, %v2014, %v2018
        %v2022 = vsel %vm1611, %v2016, %v2020
        %v2023 = vsel %vm1611, %v2018, %v2014
        %v2024 = vsel %vm1611, %v2020, %v2016
        %v2025 = vmax.f32 %v2005, %v2021
        %v2026 = vmax.f32 %v2006, %v2023
        %v2027 = vmax.f32 %v2007, %v2022
        %v2028 = vmax.f32 %v2008, %v2024
        %2029 = vrot.lane.b32.xlu0 %v2025, 96
        %v2030 = vpop.permute.xlu0 %2029
        %2031 = vrot.lane.b32.xlu0 %v2027, 96
        %v2032 = vpop.permute.xlu0 %2031
        %2033 = vrot.lane.b32.xlu0 %v2026, 96
        %v2034 = vpop.permute.xlu0 %2033
        %2035 = vrot.lane.b32.xlu0 %v2028, 96
        %v2036 = vpop.permute.xlu0 %2035
        %v2037 = vsel %vm1661, %v2030, %v2034
        %v2038 = vsel %vm1661, %v2032, %v2036
        %v2039 = vsel %vm1661, %v2034, %v2030
        %v2040 = vsel %vm1661, %v2036, %v2032
        %v2041 = vmax.f32 %v2025, %v2037
        %v2042 = vmax.f32 %v2026, %v2039
        %v2043 = vmax.f32 %v2027, %v2038
        %v2044 = vmax.f32 %v2028, %v2040
        %v2045 = vld [vmem:[%s16] sm:$0xff]
        %v2046 = vld [vmem:[%s16 + $0x8] sm:$0xff]
        %v2047 = vld [vmem:[%s16 + $0x10] sm:$0x3]
        %v2048 = vld [vmem:[%s16 + $0x18] sm:$0x3]
        %v2049 = vlaneseq
        %v2050 = vshrl.u32 %v2049, 7
        %v2051 = vsub.s32 0, %v2050
        %v2052 = vrot.slane %v2045, %v2051
        %v2053 = vlaneseq
        %v2054 = vshrl.u32 %v2053, 7
        %v2055 = vsub.s32 0, %v2054
        %v2056 = vrot.slane %v2046, %v2055
        %v2057 = vmul.f32 %v2041, %v2052
        %v2058 = vmul.f32 %v2042, %v2056
        %v2059 = vmul.f32 %v2043, %v2052
        %v2060 = vmul.f32 %v2044, %v2056
        %v2061 = vadd.f32 %v2057, %v2058
        %2062 = vadd.xlane.f32.xlu0 %v2061
        %v2063 = vpop.xlane.xlu0 %2062
        %v2064 = vadd.f32 %v2059, %v2060
        %2065 = vadd.xlane.f32.xlu0 %v2064
        %v2066 = vpop.xlane.xlu0 %2065
        %v2067 = vmul.f32 %v2063, 0.0625
        %v2068 = vmul.f32 %v2066, 0.0625
        %v2069 = vld [vmem:[%s18] sm:$0xff]
        %v2070 = vld [vmem:[%s18 + $0x8] sm:$0xff]
        %v2071 = vmul.f32 %v2069, %v2067
        %v2072 = vmul.f32 %v2070, %v2068
        %v2073 = vsel %vm1452, %v2071, 0.0
        %v2074 = vsel %vm1452, %v2072, 0.0
        %v2075 = vadd.f32 %v2073, %v2074
        %v2076 = vrot.slane %v2075, 4
        %v2077 = vadd.f32 %v2075, %v2076
        %v2078 = vrot.slane %v2077, 2
        %v2079 = vadd.f32 %v2077, %v2078
        %v2080 = vrot.slane %v2079, 1
        %v2081 = vadd.f32 %v2079, %v2080
        %v2082 = vmax.f32 %v2081, 0.0
        %v2083 = vld [vmem:[%s19] sm:$0x3]
        %v2084 = vmul.f32 %v2083, %v2082
        %v2085 = vsel %vm1465, %v2084, 0.0
        %2086 = vadd.xlane.f32.xlu0 %v2085
        %v2087 = vpop.xlane.xlu0 %2086
        %v2088 = vld [vmem:[%s20] sm:$0x3]
        %v2089 = vadd.f32 %v2087, %v2088
        %v2090 = vmul.f32 %v2089, 0.033333335
        %v2091 = vsel %vm877, %v2090, -inf
        %v2092 = vrot.slane %v2091, 4
        %v2093 = vmax.f32 %v2091, %v2092
        %v2094 = vrot.slane %v2093, 2
        %v2095 = vmax.f32 %v2093, %v2094
        %v2096 = vrot.slane %v2095, 1
        %v2097 = vmax.f32 %v2095, %v2096
        %v2098 = vsub.f32 %v2090, %v2097
        %v2099 = vmul.f32 %v2098, 1.442695
        %v2100 = vpow.pop %v2099
        %v2101 = vsel %vm877, %v2100, 0.0
        %v2102 = vrot.slane %v2101, 4
        %v2103 = vadd.f32 %v2101, %v2102
        %v2104 = vrot.slane %v2103, 2
        %v2105 = vadd.f32 %v2103, %v2104
        %v2106 = vrot.slane %v2105, 1
        %v2107 = vadd.f32 %v2105, %v2106
        %v2108 = vrcp.pop %v2107
        %v2109 = vmul.f32 %v2100, %v2108
        %2110 = vrot.lane.b32.xlu0 %v2041, 68
        %v2111 = vpop.permute.xlu0 %2110
        %2112 = vrot.lane.b32.xlu0 %v2043, 68
        %v2113 = vpop.permute.xlu0 %2112
        %2114 = vrot.lane.b32.xlu0 %v2042, 68
        %v2115 = vpop.permute.xlu0 %2114
        %2116 = vrot.lane.b32.xlu0 %v2044, 68
        %v2117 = vpop.permute.xlu0 %2116
        %vm2118 = vcmp.lt.s32.totalorder %v905, 68
        %v2119 = vsel %vm2118, %v2111, %v2115
        %v2120 = vsel %vm2118, %v2113, %v2117
        %v2121 = vsel %vm2118, %v2115, %v2111
        %v2122 = vsel %vm2118, %v2117, %v2113
        %v2123 = vlaneseq
        %v2124 = vshrl.u32 %v2123, 7
        %v2125 = vsub.s32 1, %v2124
        %v2126 = vrot.slane %v2045, %v2125
        %v2127 = vlaneseq
        %v2128 = vshrl.u32 %v2127, 7
        %v2129 = vsub.s32 1, %v2128
        %v2130 = vrot.slane %v2046, %v2129
        %v2131 = vmul.f32 %v2121, %v2126
        %v2132 = vmul.f32 %v2119, %v2130
        %v2133 = vmul.f32 %v2122, %v2126
        %v2134 = vmul.f32 %v2120, %v2130
        %2135 = vrot.lane.b32.xlu0 %v2041, 64
        %v2136 = vpop.permute.xlu0 %2135
        %2137 = vrot.lane.b32.xlu0 %v2043, 64
        %v2138 = vpop.permute.xlu0 %2137
        %2139 = vrot.lane.b32.xlu0 %v2042, 64
        %v2140 = vpop.permute.xlu0 %2139
        %2141 = vrot.lane.b32.xlu0 %v2044, 64
        %v2142 = vpop.permute.xlu0 %2141
        %vm2143 = vcmp.lt.s32.totalorder %v905, 64
        %v2144 = vsel %vm2143, %v2136, %v2140
        %v2145 = vsel %vm2143, %v2138, %v2142
        %v2146 = vsel %vm2143, %v2140, %v2136
        %v2147 = vsel %vm2143, %v2142, %v2138
        %v2148 = vlaneseq
        %v2149 = vshrl.u32 %v2148, 7
        %v2150 = vsub.s32 2, %v2149
        %v2151 = vrot.slane %v2045, %v2150
        %v2152 = vlaneseq
        %v2153 = vshrl.u32 %v2152, 7
        %v2154 = vsub.s32 2, %v2153
        %v2155 = vrot.slane %v2046, %v2154
        %v2156 = vmul.f32 %v2146, %v2151
        %v2157 = vmul.f32 %v2144, %v2155
        %v2158 = vmul.f32 %v2147, %v2151
        %v2159 = vmul.f32 %v2145, %v2155
        %2160 = vrot.lane.b32.xlu0 %v2041, 60
        %v2161 = vpop.permute.xlu0 %2160
        %2162 = vrot.lane.b32.xlu0 %v2043, 60
        %v2163 = vpop.permute.xlu0 %2162
        %2164 = vrot.lane.b32.xlu0 %v2042, 60
        %v2165 = vpop.permute.xlu0 %2164
        %2166 = vrot.lane.b32.xlu0 %v2044, 60
        %v2167 = vpop.permute.xlu0 %2166
        %vm2168 = vcmp.lt.s32.totalorder %v905, 60
        %v2169 = vsel %vm2168, %v2161, %v2165
        %v2170 = vsel %vm2168, %v2163, %v2167
        %v2171 = vsel %vm2168, %v2165, %v2161
        %v2172 = vsel %vm2168, %v2167, %v2163
        %v2173 = vlaneseq
        %v2174 = vshrl.u32 %v2173, 7
        %v2175 = vsub.s32 3, %v2174
        %v2176 = vrot.slane %v2045, %v2175
        %v2177 = vlaneseq
        %v2178 = vshrl.u32 %v2177, 7
        %v2179 = vsub.s32 3, %v2178
        %v2180 = vrot.slane %v2046, %v2179
        %v2181 = vmul.f32 %v2171, %v2176
        %v2182 = vmul.f32 %v2169, %v2180
        %v2183 = vmul.f32 %v2172, %v2176
        %v2184 = vmul.f32 %v2170, %v2180
        %2185 = vrot.lane.b32.xlu0 %v2041, 4
        %v2186 = vpop.permute.xlu0 %2185
        %2187 = vrot.lane.b32.xlu0 %v2043, 4
        %v2188 = vpop.permute.xlu0 %2187
        %2189 = vrot.lane.b32.xlu0 %v2042, 4
        %v2190 = vpop.permute.xlu0 %2189
        %2191 = vrot.lane.b32.xlu0 %v2044, 4
        %v2192 = vpop.permute.xlu0 %2191
        %vm2193 = vcmp.lt.s32.totalorder %v905, 4
        %v2194 = vsel %vm2193, %v2186, %v2190
        %v2195 = vsel %vm2193, %v2188, %v2192
        %v2196 = vsel %vm2193, %v2190, %v2186
        %v2197 = vsel %vm2193, %v2192, %v2188
        %v2198 = vlaneseq
        %v2199 = vshrl.u32 %v2198, 7
        %v2200 = vsub.s32 4, %v2199
        %v2201 = vrot.slane %v2045, %v2200
        %v2202 = vlaneseq
        %v2203 = vshrl.u32 %v2202, 7
        %v2204 = vsub.s32 4, %v2203
        %v2205 = vrot.slane %v2046, %v2204
        %v2206 = vmul.f32 %v2196, %v2201
        %v2207 = vmul.f32 %v2194, %v2205
        %v2208 = vmul.f32 %v2197, %v2201
        %v2209 = vmul.f32 %v2195, %v2205
        %v2210 = vlaneseq
        %v2211 = vshrl.u32 %v2210, 7
        %v2212 = vsub.s32 5, %v2211
        %v2213 = vrot.slane %v2045, %v2212
        %v2214 = vlaneseq
        %v2215 = vshrl.u32 %v2214, 7
        %v2216 = vsub.s32 5, %v2215
        %v2217 = vrot.slane %v2046, %v2216
        %v2218 = vmul.f32 %v2041, %v2213
        %v2219 = vmul.f32 %v2042, %v2217
        %v2220 = vmul.f32 %v2043, %v2213
        %v2221 = vmul.f32 %v2044, %v2217
        %2222 = vrot.lane.b32.xlu0 %v2041, 124
        %v2223 = vpop.permute.xlu0 %2222
        %2224 = vrot.lane.b32.xlu0 %v2043, 124
        %v2225 = vpop.permute.xlu0 %2224
        %2226 = vrot.lane.b32.xlu0 %v2042, 124
        %v2227 = vpop.permute.xlu0 %2226
        %2228 = vrot.lane.b32.xlu0 %v2044, 124
        %v2229 = vpop.permute.xlu0 %2228
        %vm2230 = vcmp.lt.s32.totalorder %v905, 124
        %v2231 = vsel %vm2230, %v2223, %v2227
        %v2232 = vsel %vm2230, %v2225, %v2229
        %v2233 = vsel %vm2230, %v2227, %v2223
        %v2234 = vsel %vm2230, %v2229, %v2225
        %v2235 = vlaneseq
        %v2236 = vshrl.u32 %v2235, 7
        %v2237 = vsub.s32 6, %v2236
        %v2238 = vrot.slane %v2045, %v2237
        %v2239 = vlaneseq
        %v2240 = vshrl.u32 %v2239, 7
        %v2241 = vsub.s32 6, %v2240
        %v2242 = vrot.slane %v2046, %v2241
        %v2243 = vmul.f32 %v2231, %v2238
        %v2244 = vmul.f32 %v2233, %v2242
        %v2245 = vmul.f32 %v2232, %v2238
        %v2246 = vmul.f32 %v2234, %v2242
        %v2247 = vlaneseq
        %v2248 = vshrl.u32 %v2247, 7
        %v2249 = vsub.s32 7, %v2248
        %v2250 = vrot.slane %v2045, %v2249
        %v2251 = vlaneseq
        %v2252 = vshrl.u32 %v2251, 7
        %v2253 = vsub.s32 7, %v2252
        %v2254 = vrot.slane %v2046, %v2253
        %v2255 = vmul.f32 %v2119, %v2250
        %v2256 = vmul.f32 %v2121, %v2254
        %v2257 = vmul.f32 %v2120, %v2250
        %v2258 = vmul.f32 %v2122, %v2254
        %v2259 = vlaneseq
        %v2260 = vshrl.u32 %v2259, 7
        %v2261 = vsub.s32 0, %v2260
        %v2262 = vrot.slane %v2047, %v2261
        %v2263 = vlaneseq
        %v2264 = vshrl.u32 %v2263, 7
        %v2265 = vsub.s32 0, %v2264
        %v2266 = vrot.slane %v2048, %v2265
        %v2267 = vmul.f32 %v2144, %v2262
        %v2268 = vmul.f32 %v2146, %v2266
        %v2269 = vmul.f32 %v2145, %v2262
        %v2270 = vmul.f32 %v2147, %v2266
        %v2271 = vlaneseq
        %v2272 = vshrl.u32 %v2271, 7
        %v2273 = vsub.s32 1, %v2272
        %v2274 = vrot.slane %v2047, %v2273
        %v2275 = vlaneseq
        %v2276 = vshrl.u32 %v2275, 7
        %v2277 = vsub.s32 1, %v2276
        %v2278 = vrot.slane %v2048, %v2277
        %v2279 = vmul.f32 %v2169, %v2274
        %v2280 = vmul.f32 %v2171, %v2278
        %v2281 = vmul.f32 %v2170, %v2274
        %v2282 = vmul.f32 %v2172, %v2278
        %v2283 = vpack.c.bf16 %v2133, %v2131
        %v2284 = vpack.c.bf16 %v2134, %v2132
        %v2285 = vpack.c.bf16 %v2158, %v2156
        %v2286 = vpack.c.bf16 %v2159, %v2157
        %v2287 = vpack.c.bf16 %v2183, %v2181
        %v2288 = vpack.c.bf16 %v2184, %v2182
        %v2289 = vpack.c.bf16 %v2208, %v2206
        %v2290 = vpack.c.bf16 %v2209, %v2207
        %v2291 = vpack.c.bf16 %v2220, %v2218
        %v2292 = vpack.c.bf16 %v2221, %v2219
        %v2293 = vpack.c.bf16 %v2245, %v2243
        %v2294 = vpack.c.bf16 %v2246, %v2244
        %v2295 = vpack.c.bf16 %v2257, %v2255
        %v2296 = vpack.c.bf16 %v2258, %v2256
        %v2297 = vpack.c.bf16 %v2269, %v2267
        %v2298 = vpack.c.bf16 %v2270, %v2268
        %v2299 = vpack.c.bf16 %v2281, %v2279
        %v2300 = vpack.c.bf16 %v2282, %v2280
        %v2301 = vld [vmem:[%s17] sm:$0xff]
        %v2302 = vld [vmem:[%s17 + $0x8] sm:$0xff]
        %v2303 = vld [vmem:[%s17 + $0x10] sm:$0xff]
        %v2304 = vld [vmem:[%s17 + $0x18] sm:$0xff]
        %v2309 = vunpack.c.l.b16 %v2301
        %v2310 = vunpack.c.h.b16 %v2301
        %v2311 = vunpack.c.l.b16 %v2302
        %v2312 = vunpack.c.h.b16 %v2302
        %v2313 = vunpack.c.l.b16 %v2303
        %v2314 = vunpack.c.h.b16 %v2303
        %v2315 = vunpack.c.l.b16 %v2304
        %v2316 = vunpack.c.h.b16 %v2304
        %v2317 = vpack.c.b16 %v2311, %v2309
        %v2318 = vpack.c.b16 %v2312, %v2310
        %v2319 = vpack.c.b16 %v2315, %v2313
        %v2320 = vpack.c.b16 %v2316, %v2314
        %v2324 = vsel %vm1216, %v2318, 0
        %v2327 = vsel %vm1216, %v2320, 0
        %2329 = vmatprep.subr.bf16.mxu0 %v2284
        %2330 = vmatpush1.bf16.msra.mxu0 %v2283
        %2331 = vmatprep.subr.bf16.mxu0 %v2286
        %2332 = vmatpush1.bf16.msra.mxu0 %v2285
        %2333 = vmatprep.subr.bf16.mxu0 %v2288
        %2334 = vmatpush1.bf16.msra.mxu0 %v2287
        %2335 = vmatprep.subr.bf16.mxu0 %v2290
        %2336 = vmatpush1.bf16.msra.mxu0 %v2289
        %2337 = vmatprep.subr.bf16.mxu0 %v2292
        %2338 = vmatpush1.bf16.msra.mxu0 %v2291
        %2339 = vmatprep.subr.bf16.mxu0 %v2294
        %2340 = vmatpush1.bf16.msra.mxu0 %v2293
        %2341 = vmatprep.subr.bf16.mxu0 %v2296
        %2342 = vmatpush1.bf16.msra.mxu0 %v2295
        %2343 = vmatprep.subr.bf16.mxu0 %v2298
        %2344 = vmatpush1.bf16.msra.mxu0 %v2297
        %2345 = vmatprep.subr.bf16.mxu0 %v2300
        %2346 = vmatpush1.bf16.msra.mxu0 %v2299
        %2347 = vmatprep.subr.bf16.mxu0 0
        %2348 = vmatpush1.bf16.msra.mxu0 0
        %2349 = vmatprep.subr.bf16.mxu0 0
        %2350 = vmatpush1.bf16.msra.mxu0 0
        %2351 = vmatprep.subr.bf16.mxu0 0
        %2352 = vmatpush1.bf16.msra.mxu0 0
        %2353 = vmatprep.subr.bf16.mxu0 0
        %2354 = vmatpush1.bf16.msra.mxu0 0
        %2355 = vmatprep.subr.bf16.mxu0 0
        %2356 = vmatpush1.bf16.msra.mxu0 0
        %2357 = vmatprep.subr.bf16.mxu0 0
        %2358 = vmatpush1.bf16.msra.mxu0 0
        %2359 = vmatprep.subr.bf16.mxu0 0
        %2360 = vmatpush1.bf16.msra.mxu0 0
        %2361 = vmatprep.mubr.bf16.mxu0 %v2324
        %2362 = vmatmul.mubr.bf16.gmra.mrb[0].mxu0 %v2317
        %v2363 = vpop.f32.mrb[0].mxu0
        %v2364 = vadd.f32 0.0, %v2363
        %v2365 = vpop.f32.mrb[0].mxu0
        %v2366 = vadd.f32 0.0, %v2365
        %v2367 = vpop.f32.mrb[0].mxu0
        %v2368 = vadd.f32 0.0, %v2367
        %v2369 = vpop.f32.mrb[0].mxu0
        %v2370 = vadd.f32 0.0, %v2369
        %2371 = vmatprep.mubr.bf16.mxu0 %v2327
        %2372 = vmatmul.mubr.bf16.gmra.mrb[0].mxu0 %v2319
        %v2373 = vpop.f32.mrb[0].mxu0
        %v2374 = vadd.f32 0.0, %v2373
        %v2375 = vpop.f32.mrb[0].mxu0
        %v2376 = vadd.f32 0.0, %v2375
        %v2377 = vpop.f32.mrb[0].mxu0
        %v2378 = vadd.f32 0.0, %v2377
        %v2379 = vpop.f32.mrb[0].mxu0
        %v2380 = vadd.f32 0.0, %v2379
        %2381 = vdwg.mxu0
        %s2383 = vtos %v2109
        %v2384 = vstv %s2383
        %v2386 = vmul.f32 %v2364, %v2384
        %v2387 = vmul.f32 %v2366, %v2384
        %v2388 = vmul.f32 %v2368, %v2384
        %v2389 = vmul.f32 %v2370, %v2384
        %v2390 = vrot.slane %v2109, 1
        %s2391 = vtos %v2390
        %v2392 = vstv %s2391
        %v2394 = vmul.f32 %v2374, %v2392
        %v2395 = vmul.f32 %v2376, %v2392
        %v2396 = vmul.f32 %v2378, %v2392
        %v2397 = vmul.f32 %v2380, %v2392
        %v2398 = vadd.f32 %v2386, %v2394
        %v2399 = vadd.f32 %v2387, %v2395
        %v2400 = vadd.f32 %v2388, %v2396
        %v2401 = vadd.f32 %v2389, %v2397
        %v2402 = vmul.f32 %v2398, %v2052
        %v2403 = vmul.f32 %v2399, %v2056
        %v2404 = vmul.f32 %v2400, %v2052
        %v2405 = vmul.f32 %v2401, %v2056
        %v2406 = vadd.f32 %v2402, %v2403
        %2407 = vadd.xlane.f32.xlu0 %v2406
        %v2408 = vpop.xlane.xlu0 %2407
        %v2409 = vadd.f32 %v2404, %v2405
        %2410 = vadd.xlane.f32.xlu0 %v2409
        %v2411 = vpop.xlane.xlu0 %2410
        %v2412 = vmul.f32 %v2402, %v2398
        %v2413 = vmul.f32 %v2403, %v2399
        %v2414 = vmul.f32 %v2404, %v2400
        %v2415 = vmul.f32 %v2405, %v2401
        %v2416 = vadd.f32 %v2412, %v2413
        %2417 = vadd.xlane.f32.xlu0 %v2416
        %v2418 = vpop.xlane.xlu0 %2417
        %v2419 = vadd.f32 %v2414, %v2415
        %2420 = vadd.xlane.f32.xlu0 %v2419
        %v2421 = vpop.xlane.xlu0 %2420
        %v2422 = vsel %vm1213, %v2408, %v2418
        %v2423 = vsel %vm1213, %v2411, %v2421
        %2424 = vmatprep.subr.mxu0 0.0
        %2425 = vmatpush1.msra.mxu0 %v2422
        %2426 = vmatprep.subr.mxu0 0.0
        %2427 = vmatpush1.msra.mxu0 %v2423
        %2428 = vmatprep.subr.mxu0 0.0
        %2429 = vmatpush1.msra.mxu0 0.0
        %2430 = vmatprep.subr.mxu0 0.0
        %2431 = vmatpush1.msra.mxu0 0.0
        %2432 = vmatprep.subr.mxu0 0.0
        %2433 = vmatpush1.msra.mxu0 0.0
        %2434 = vmatprep.subr.mxu0 0.0
        %2435 = vmatpush1.msra.mxu0 0.0
        %2436 = vmatprep.subr.mxu0 0.0
        %2437 = vmatpush1.msra.mxu0 0.0
        %2438 = vmatprep.subr.mxu0 0.0
        %2439 = vmatpush1.msra.mxu0 0.0
        %2440 = vmatprep.subr.mxu0 0.0
        %2441 = vmatpush1.msra.mxu0 0.0
        %2442 = vmatprep.subr.mxu0 0.0
        %2443 = vmatpush1.msra.mxu0 0.0
        %2444 = vmatprep.subr.mxu0 0.0
        %2445 = vmatpush1.msra.mxu0 0.0
        %2446 = vmatprep.subr.mxu0 0.0
        %2447 = vmatpush1.msra.mxu0 0.0
        %2448 = vmatprep.subr.mxu0 0.0
        %2449 = vmatpush1.msra.mxu0 0.0
        %2450 = vmatprep.subr.mxu0 0.0
        %2451 = vmatpush1.msra.mxu0 0.0
        %2452 = vmatprep.subr.mxu0 0.0
        %2453 = vmatpush1.msra.mxu0 0.0
        %2454 = vmatprep.subr.mxu0 0.0
        %2455 = vmatpush1.msra.mxu0 0.0
        %2456 = vmatprep.subr.mxu0 0.0
        %2457 = vmatpush1.msra.mxu0 0.0
        %2458 = vmatprep.subr.mxu0 0.0
        %2459 = vmatpush1.msra.mxu0 0.0
        %2460 = vmatprep.subr.mxu0 0.0
        %2461 = vmatpush1.msra.mxu0 0.0
        %2462 = vmatprep.subr.mxu0 0.0
        %2463 = vmatpush1.msra.mxu0 0.0
        %2464 = vmatprep.subr.mxu0 0.0
        %2465 = vmatpush1.msra.mxu0 0.0
        %2466 = vmatprep.subr.mxu0 0.0
        %2467 = vmatpush1.msra.mxu0 0.0
        %2468 = vmatprep.subr.mxu0 0.0
        %2469 = vmatpush1.msra.mxu0 0.0
        %2470 = vmatprep.subr.mxu0 0.0
        %2471 = vmatpush1.msra.mxu0 0.0
        %2472 = vmatprep.subr.mxu0 0.0
        %2473 = vmatpush1.msra.mxu0 0.0
        %2474 = vmatprep.subr.mxu0 0.0
        %2475 = vmatpush1.msra.mxu0 0.0
        %2476 = vmatprep.subr.mxu0 0.0
        %2477 = vmatpush1.msra.mxu0 0.0
        %2478 = vmatprep.subr.mxu0 0.0
        %2479 = vmatpush1.msra.mxu0 0.0
        %2480 = vmatprep.subr.mxu0 0.0
        %2481 = vmatpush1.msra.mxu0 0.0
        %2482 = vmatprep.subr.mxu0 0.0
        %2483 = vmatpush1.msra.mxu0 0.0
        %2484 = vmatprep.subr.mxu0 0.0
        %2485 = vmatpush1.msra.mxu0 0.0
        %2486 = vmatprep.subr.mxu0 0.0
        %2487 = vmatpush1.msra.mxu0 0.0
        %2488 = vmatprep.mubr.f32.mxu0 0.0
        %2489 = vmatmul.mubr.f32.gmra.mrb[0].mxu0 %v1218
        %v2490 = vpop.f32.mrb[0].mxu0
        %v2491 = vadd.f32 0.0, %v2490
        %v2492 = vpop.f32.mrb[0].mxu0
        %2493 = vmatprep.mubr.f32.mxu0 0.0
        %2494 = vmatmul.mubr.f32.gmra.mrb[0].mxu0 %v1221
        %v2495 = vpop.f32.mrb[0].mxu0
        %v2496 = vadd.f32 0.0, %v2495
        %v2497 = vpop.f32.mrb[0].mxu0
        %2498 = vdwg.mxu0
        %v2499 = vmul.f32 %v2491, 0.03125
        %v2500 = vmul.f32 %v2496, 0.03125
        %v2501 = vmul.f32 %v2499, %v2499
        %v2502 = vmul.f32 %v2500, %v2500
        %2505 = vrot.lane.b32.xlu0 %v2501, 1
        %v2506 = vpop.permute.xlu0 %2505
        %2507 = vrot.lane.b32.xlu0 %v2502, 1
        %v2508 = vpop.permute.xlu0 %2507
        %v2511 = vsub.f32 %v2499, %v2506
        %v2512 = vsub.f32 %v2500, %v2508
        %v2513 = vadd.f32 %v2511, 1e-05
        %v2514 = vadd.f32 %v2512, 1e-05
        %v2515 = vrsqrt.pop %v2513
        %v2516 = vrsqrt.pop %v2514
        %2518 = vset.pattern.permute.xlu0 0
        %2519 = vperm.xlu0 %2518, %v2499
        %v2520 = vpop.permute.xlu0 %2519
        %2523 = vset.pattern.permute.xlu0 0
        %2524 = vperm.xlu0 %2523, %v2500
        %v2525 = vpop.permute.xlu0 %2524
        %v2527 = vsub.f32 %v2398, %v2520
        %v2528 = vsub.f32 %v2399, %v2520
        %v2529 = vsub.f32 %v2400, %v2525
        %v2530 = vsub.f32 %v2401, %v2525
        %2532 = vset.pattern.permute.xlu0 1
        %2533 = vperm.xlu0 %2532, %v2515
        %v2534 = vpop.permute.xlu0 %2533
        %2537 = vset.pattern.permute.xlu0 1
        %2538 = vperm.xlu0 %2537, %v2516
        %v2539 = vpop.permute.xlu0 %2538
        %v2541 = vmul.f32 %v2527, %v2534
        %v2542 = vmul.f32 %v2528, %v2534
        %v2543 = vmul.f32 %v2529, %v2539
        %v2544 = vmul.f32 %v2530, %v2539
        %v2545 = vld [vmem:[%s21] sm:$0xff]
        %v2546 = vld [vmem:[%s21 + $0x8] sm:$0xff]
        %2548 = vset.pattern.permute.xlu0 0
        %2549 = vperm.xlu0 %2548, %v2545
        %v2550 = vpop.permute.xlu0 %2549
        %2553 = vset.pattern.permute.xlu0 0
        %2554 = vperm.xlu0 %2553, %v2546
        %v2555 = vpop.permute.xlu0 %2554
        %v2557 = vmul.f32 %v2541, %v2550
        %v2558 = vmul.f32 %v2542, %v2550
        %v2559 = vmul.f32 %v2543, %v2555
        %v2560 = vmul.f32 %v2544, %v2555
        %v2561 = vld [vmem:[%s22] sm:$0xff]
        %v2562 = vld [vmem:[%s22 + $0x8] sm:$0xff]
        %2564 = vset.pattern.permute.xlu0 0
        %2565 = vperm.xlu0 %2564, %v2561
        %v2566 = vpop.permute.xlu0 %2565
        %2569 = vset.pattern.permute.xlu0 0
        %2570 = vperm.xlu0 %2569, %v2562
        %v2571 = vpop.permute.xlu0 %2570
        %v2573 = vadd.f32 %v2557, %v2566
        %v2574 = vadd.f32 %v2558, %v2566
        %v2575 = vadd.f32 %v2559, %v2571
        %v2576 = vadd.f32 %v2560, %v2571
        %vm2577 = vcmp.ge.f32.partialorder %v2573, 0.0
        %vm2578 = vcmp.ge.f32.partialorder %v2574, 0.0
        %vm2579 = vcmp.ge.f32.partialorder %v2575, 0.0
        %vm2580 = vcmp.ge.f32.partialorder %v2576, 0.0
        %v2581 = vmul.f32 %v2573, 0.01
        %v2582 = vmul.f32 %v2574, 0.01
        %v2583 = vmul.f32 %v2575, 0.01
        %v2584 = vmul.f32 %v2576, 0.01
        %v2585 = vsel %vm2577, %v2573, %v2581
        %v2586 = vsel %vm2578, %v2574, %v2582
        %v2587 = vsel %vm2579, %v2575, %v2583
        %v2588 = vsel %vm2580, %v2576, %v2584
        %2589 = vst [vmem:[%s825] sm:$0xff] %v2585
        %2590 = vst [vmem:[%s825 + $0x8] sm:$0xff] %v2586
        %2591 = vst [vmem:[%s825 + $0x10] sm:$0xff] %v2587
        %2592 = vst [vmem:[%s825 + $0x18] sm:$0xff] %v2588
        %s2593 = sand.u32 %s543, 1
        %s2594 = scalar_lea.sflag [#allocation4], %s2593
        %s2595 = sand.u32 %s543, 1
        %s2596 = smul.addr %s2595, 32
        %s2597 = scalar_lea.vmem [#allocation8], %s2596
        %s2598 = sand.u32 %s47, 1
        %s2599 = scalar_lea.sflag [#allocation10], %s2598
        %s2600 = sand.u32 %s569, 1
        %s2601 = smul.addr %s2600, 32
        %s2602 = scalar_lea.vmem [#allocation9], %s2601
        %s2603 = sand.u32 %s47, 1
        %s2604 = scalar_lea.sflag [#allocation10], %s2603
        %s2605 = sand.u32 %s595, 1
        %s2606 = smul.addr %s2605, 32
        %s2607 = scalar_lea.vmem [#allocation11], %s2606
        // Predicated region
        $region125: #{tpu_custom_call.1} parent=111 // pred_check
          %p2608 = pneg %p553
        $region126: #{tpu_custom_call.1} parent=111 // pred_check_branch
          %2610 = sbr.rel (%p2608) target = $region128
        $region127: #{tpu_custom_call.1} parent=111 // pred_region
          %s2612 = ssub.s32 512, 512
          %2613 = vsyncadd %s2594, %s2612
          %s2614 = smul.addr %s47, 4
          %s2615 = smul.addr %s2614, 128
          %s2616 = scalar_lea.hbm %s23, %s2615
          %s2617 = sshll.u32 %s2597, 4
          %s2618 = int_to_ptr.vmem [resolvable:$true] %s2617
          %2623 = dma.vmem_to_hbm [thread:$0]  %s2618, 512, %s2616, %s2594, 256, 256, 16
        $region128: #{tpu_custom_call.1} parent=111 // pred_fallthru
          _
        // Predicated region
        $region129: #{tpu_custom_call.1} parent=111 // pred_check
          %p2624 = pneg %p579
        $region130: #{tpu_custom_call.1} parent=111 // pred_check_branch
          %2626 = sbr.rel (%p2624) target = $region132
        $region131: #{tpu_custom_call.1} parent=111 // pred_region
          %s2628 = ssub.s32 512, 512
          %2629 = vsyncadd %s2599, %s2628
          %s2630 = smul.addr %s47, 4
          %s2631 = smul.addr %s2630, 128
          %s2632 = scalar_lea.hbm %s24, %s2631
          %s2633 = sshll.u32 %s2602, 4
          %s2634 = int_to_ptr.vmem [resolvable:$true] %s2633
          %2639 = dma.vmem_to_hbm [thread:$0]  %s2634, 512, %s2632, %s2599, 256, 256, 16
        $region132: #{tpu_custom_call.1} parent=111 // pred_fallthru
          _
        // Predicated region
        $region133: #{tpu_custom_call.1} parent=111 // pred_check
          %p2640 = pneg %p605
        $region134: #{tpu_custom_call.1} parent=111 // pred_check_branch
          %2642 = sbr.rel (%p2640) target = $region136
        $region135: #{tpu_custom_call.1} parent=111 // pred_region
          %s2644 = ssub.s32 512, 512
          %2645 = vsyncadd %s2604, %s2644
          %s2646 = smul.addr %s47, 4
          %s2647 = smul.addr %s2646, 128
          %s2648 = scalar_lea.hbm %s25, %s2647
          %s2649 = sshll.u32 %s2607, 4
          %s2650 = int_to_ptr.vmem [resolvable:$true] %s2649
          %2655 = dma.vmem_to_hbm [thread:$0]  %s2650, 512, %s2648, %s2604, 256, 256, 16
        $region136: #{tpu_custom_call.1} parent=111 // pred_fallthru
          _
      $region112: #{tpu_custom_call.1} parent=5 // pred_fallthru
        _
      %p2656 = scmp.le.s32.totalorder 2, %s42
      // Predicated region
      $region137: #{tpu_custom_call.1} parent=5 // pred_check
        %p2657 = pneg %p2656
      $region138: #{tpu_custom_call.1} parent=5 // pred_check_branch
        %2659 = sbr.rel (%p2657) target = $region140
      $region139: #{tpu_custom_call.1} parent=5 // pred_region
        %s2660 = ssub.s32 %s42, 2
        // Predicated region
        $region141: #{tpu_custom_call.1} parent=139 // pred_check
          %p2661 = pneg %p559
        $region142: #{tpu_custom_call.1} parent=139 // pred_check_branch
          %2663 = sbr.rel (%p2661) target = $region144
        $region143: #{tpu_custom_call.1} parent=139 // pred_region
          %s2664 = sand.u32 %s544, 1
          %s2665 = scalar_lea.sflag [#allocation4], %s2664
          %s2666 = sand.u32 %s544, 1
          %s2667 = smul.addr %s2666, 32
          %s2668 = scalar_lea.vmem [#allocation8], %s2667
          %2669 = dma.done %s2665, 512
        $region144: #{tpu_custom_call.1} parent=139 // pred_fallthru
          _
        // Predicated region
        $region145: #{tpu_custom_call.1} parent=139 // pred_check
          %p2670 = pneg %p585
        $region146: #{tpu_custom_call.1} parent=139 // pred_check_branch
          %2672 = sbr.rel (%p2670) target = $region148
        $region147: #{tpu_custom_call.1} parent=139 // pred_region
          %s2673 = sand.u32 %s48, 1
          %s2674 = scalar_lea.sflag [#allocation10], %s2673
          %s2675 = sand.u32 %s570, 1
          %s2676 = smul.addr %s2675, 32
          %s2677 = scalar_lea.vmem [#allocation9], %s2676
          %2678 = dma.done %s2674, 512
        $region148: #{tpu_custom_call.1} parent=139 // pred_fallthru
          _
        // Predicated region
        $region149: #{tpu_custom_call.1} parent=139 // pred_check
          %p2679 = pneg %p611
        $region150: #{tpu_custom_call.1} parent=139 // pred_check_branch
          %2681 = sbr.rel (%p2679) target = $region152
        $region151: #{tpu_custom_call.1} parent=139 // pred_region
          %s2682 = sand.u32 %s48, 1
          %s2683 = scalar_lea.sflag [#allocation10], %s2682
          %s2684 = sand.u32 %s596, 1
          %s2685 = smul.addr %s2684, 32
          %s2686 = scalar_lea.vmem [#allocation11], %s2685
          %2687 = dma.done %s2683, 512
        $region152: #{tpu_custom_call.1} parent=139 // pred_fallthru
          _
      $region140: #{tpu_custom_call.1} parent=5 // pred_fallthru
        _
    $region6: #{tpu_custom_call.1} parent=1 // loop_footer
      %s46 = sadd.s32 1, %s42
    $region7: #{tpu_custom_call.1} parent=1 // loop_footer_branch
      %41 = sbr.rel target = $region3
    $region8: #{tpu_custom_call.1} parent=1 // loop_exit
      _
    %2688 = vsyncpa [#allocation3], 1
    %s2689 = scalar_lea.sflag [#allocation3], 1
    %2690 = vsyncpa %s2689, 1
    %2691 = vsyncpa [#allocation6], 1
    %2692 = vsyncpa [#allocation4], 1
    %s2693 = scalar_lea.sflag [#allocation4], 1
    %2694 = vsyncpa %s2693, 1
    %2695 = vsyncpa [#allocation10], 1
    %s2696 = scalar_lea.sflag [#allocation10], 1
    %2697 = vsyncpa %s2696, 1

</llo_original>
